<compile_context>
chip_gen: v5e
topology: v5e:2x2
jax: 0.10.0
libtpu: 0.0.40
codegen_flags: <defaults>
</compile_context>

<pallas_src>
import jax
import jax.numpy as jnp
from jax import lax
from jax.experimental import pallas as pl
from jax.experimental.pallas import tpu as pltpu

H = W = 50
CIN = 3
COUT = 18
HP = WP = 25                   # spatial after 2x2/2 maxpool
FLAT = COUT * HP * WP          # 18 * 25 * 25 = 11250 (matches 18*50//2*50//2)
HID = 64
NOUT = 2

PW = 26                        # parity-plane width: (50 + 2*pad) / 2
PLEN = PW * PW                 # 676  flattened parity plane
LCONV = (HP - 1) * PW + WP     # 649  pooled output in "26-wide" flat layout
KPATCH = CIN * 9               # 27   im2col contraction size


# ---------------------------------------------------------------------------
# Fused per-image kernel: conv + bias + ReLU + maxpool + fc1 + ReLU + fc2
# ---------------------------------------------------------------------------
def fused_cnn_kernel(x_ref, wc_ref, bc_ref, w1_ref, b1_ref, w2_ref, b2_ref,
                     o_ref, patch_ref):
    """Whole SimpleCNN forward for one image.

    x_ref:   (12, 676)    parity-split padded image; row = (p*2+q)*3 + cin,
                          col = r*26 + c, value = x_pad[2r+p, 2c+q, cin]
    wc_ref:  (18, 27)     conv weight, col = cin*9 + dy*3 + dx
    bc_ref:  (18, 1)      conv bias
    w1_ref:  (649, 1152)  fc1 weight: [i*26+j, c*64+n] = w1[c*625+i*25+j, n]
                          for j < 25; the 24 rows with j == 25 are zero
    b1_ref:  (1, 64)      fc1 bias
    w2_ref:  (64, 2)      fc2 weight
    b2_ref:  (1, 2)       fc2 bias
    o_ref:   (1, 2)       logits
    patch_ref: (27, 649)  VMEM scratch for the per-parity im2col matrix
    """
    pooled = None
    for a in range(2):
        for b in range(2):
            # Build the (27, 649) im2col matrix for pooling parity (a, b).
            # Every row is a contiguous lane slice of a flattened parity
            # plane, so this is just 27 aligned-ish copies into scratch.
            for cin in range(CIN):
                for dy in range(3):
                    pp, r0 = (a + dy) % 2, (a + dy) // 2
                    for dx in range(3):
                        qq, c0 = (b + dx) % 2, (b + dx) // 2
                        src = (pp * 2 + qq) * CIN + cin
                        start = r0 * PW + c0
                        k = cin * 9 + dy * 3 + dx
                        patch_ref[k:k + 1, :] = (
                            x_ref[src:src + 1, start:start + LCONV])
            # Conv for this parity = one MXU matmul -> (18, 649)
            y = jnp.dot(wc_ref[...], patch_ref[...],
                        preferred_element_type=jnp.float32)
            pooled = y if pooled is None else jnp.maximum(pooled, y)

    # bias + ReLU (bias is uniform over the pool window and ReLU is monotone,
    # so doing them after the max is exact).
    act = jnp.maximum(pooled + bc_ref[...], 0.0)                 # (18, 649)

    # fc1: single MXU matmul against the block-expanded weight; the useful
    # result is the per-channel diagonal block:
    #   bmat[c, c*64 + n] = sum_s act[c, s] * w1e[c, s, n]
    bmat = jnp.dot(act, w1_ref[...],
                   preferred_element_type=jnp.float32)           # (18, 1152)
    h = b1_ref[...]                                              # (1, 64)
    for c in range(COUT):
        h = h + bmat[c:c + 1, c * HID:(c + 1) * HID]
    h = jnp.maximum(h, 0.0)

    # fc2
    o_ref[...] = jnp.dot(h, w2_ref[...],
                         preferred_element_type=jnp.float32) + b2_ref[...]


def simple_cnn_forward(x_nchw, prepped):
    """Fused forward.  x_nchw: (N, 3, 50, 50) float32."""
    wc2d, bc2d, w1m, b1r, w2m, b2r = prepped
    n = x_nchw.shape[0]

    # Minimal layout glue (~30 KB/image): zero-pad and parity-split so every
    # im2col row needed in-kernel is a contiguous slice of a 676-long row.
    xp = jnp.pad(x_nchw.astype(jnp.float32),
                 ((0, 0), (0, 0), (1, 1), (1, 1)))               # (N,3,52,52)
    xf = (xp.reshape(n, CIN, PW, 2, PW, 2)
            .transpose(0, 3, 5, 1, 2, 4)                         # (N,2,2,3,26,26)
            .reshape(n, 4 * CIN, PLEN))                          # (N,12,676)

    out = pl.pallas_call(
        fused_cnn_kernel,
        out_shape=jax.ShapeDtypeStruct((n, 1, NOUT), jnp.float32),
        grid=(n,),
        in_specs=[
            pl.BlockSpec((None, 4 * CIN, PLEN), lambda b: (b, 0, 0)),
            pl.BlockSpec((COUT, KPATCH), lambda b: (0, 0)),
            pl.BlockSpec((COUT, 1), lambda b: (0, 0)),
            # constant block index -> loaded once, stays VMEM-resident
            pl.BlockSpec((LCONV, COUT * HID), lambda b: (0, 0)),
            pl.BlockSpec((1, HID), lambda b: (0, 0)),
            pl.BlockSpec((HID, NOUT), lambda b: (0, 0)),
            pl.BlockSpec((1, NOUT), lambda b: (0, 0)),
        ],
        out_specs=pl.BlockSpec((None, 1, NOUT), lambda b: (b, 0, 0)),
        scratch_shapes=[pltpu.VMEM((KPATCH, LCONV), jnp.float32)],
        compiler_params=pltpu.CompilerParams(
            dimension_semantics=("parallel",)),
    )(xf, wc2d, bc2d, w1m, b1r, w2m, b2r)
    return out.reshape(n, NOUT)


# ---------------------------------------------------------------------------
# Parameter handling
# ---------------------------------------------------------------------------
def init_params(key):
    ks = jax.random.split(key, 6)

    def u(k, shape, fan_in):
        bound = 1.0 / (fan_in ** 0.5)
        return jax.random.uniform(k, shape, jnp.float32, -bound, bound)

    wc = u(ks[0], (COUT, CIN, 3, 3), CIN * 9)   # conv weight, OIHW (PyTorch)
    bc = u(ks[1], (COUT,), CIN * 9)
    w1 = u(ks[2], (FLAT, HID), FLAT)            # fc1 weight, (in, out)
    b1 = u(ks[3], (HID,), FLAT)
    w2 = u(ks[4], (HID, NOUT), HID)             # fc2 weight, (in, out)
    b2 = u(ks[5], (NOUT,), HID)
    return wc, bc, w1, b1, w2, b2


def prepare_params(params):
    """One-time weight re-layout (done once, outside the jitted hot path)."""
    wc, bc, w1, b1, w2, b2 = params
    wc2d = wc.reshape(COUT, KPATCH).astype(jnp.float32)          # (18, 27)
    bc2d = bc.reshape(COUT, 1).astype(jnp.float32)
    # fc1 weight -> (649, 18*64): feature (c, i, j) maps to row i*26+j of the
    # c-th 64-wide column block; rows at j == 25 are zero so the kernel's
    # garbage conv columns contribute nothing.
    w1r = w1.reshape(COUT, HP, WP, HID)
    w1p = jnp.pad(w1r, ((0, 0), (0, 0), (0, 1), (0, 0)))         # (18,25,26,64)
    w1e = w1p.reshape(COUT, HP * PW, HID)[:, :LCONV, :]          # (18,649,64)
    w1m = jnp.transpose(w1e, (1, 0, 2)).reshape(LCONV, COUT * HID)
    return (wc2d, bc2d, w1m.astype(jnp.float32),
            b1.reshape(1, HID).astype(jnp.float32),
            w2.astype(jnp.float32),
            b2.reshape(1, NOUT).astype(jnp.float32))


def reference_forward(x_nchw, params):
    """Plain-JAX reference mirroring the PyTorch module."""
    wc, bc, w1, b1, w2, b2 = params
    y = lax.conv_general_dilated(
        x_nchw, wc, window_strides=(1, 1), padding=((1, 1), (1, 1)),
        dimension_numbers=('NCHW', 'OIHW', 'NCHW'))
    y = jnp.maximum(y + bc.reshape(1, COUT, 1, 1), 0.0)
    y = lax.reduce_window(y, -jnp.inf, lax.max,
                          (1, 1, 2, 2), (1, 1, 2, 2), 'VALID')
    f = y.reshape(x_nchw.shape[0], FLAT)
    h = jnp.maximum(f @ w1 + b1, 0.0)
    return h @ w2 + b2


if __name__ == "__main__":
    key = jax.random.PRNGKey(0)
    kx, kp = jax.random.split(key)
    # Spatial size is pinned to 50x50 by fc1's input dimension (18*25*25).
    x = jax.random.normal(kx, (2, CIN, H, W), jnp.float32)
    params = init_params(kp)
    prepped = prepare_params(params)     # one-time weight re-layout

    fwd = jax.jit(simple_cnn_forward)
    out = jax.block_until_ready(fwd(x, prepped))
    ref = jax.block_until_ready(reference_forward(x, params))

    assert out.shape == (2, NOUT), out.shape
    if not jnp.allclose(out, ref, atol=1e-3, rtol=1e-3):
        raise AssertionError(f"Pallas/ref mismatch:\n{out}\n{ref}")
    print("KERNEL_OK")
</pallas_src>

<mosaic_0001>
module attributes {stable_mosaic.version = 11 : i64} {
  func.func @fused_cnn_kernel(%arg0: i32, %arg1: memref<1x12x676xf32, #tpu.memory_space<vmem>>, %arg2: memref<18x27xf32, #tpu.memory_space<vmem>>, %arg3: memref<18x1xf32, #tpu.memory_space<vmem>>, %arg4: memref<649x1152xf32, #tpu.memory_space<vmem>>, %arg5: memref<1x64xf32, #tpu.memory_space<vmem>>, %arg6: memref<64x2xf32, #tpu.memory_space<vmem>>, %arg7: memref<1x2xf32, #tpu.memory_space<vmem>>, %arg8: memref<1x1x2xf32, #tpu.memory_space<vmem>>, %arg9: memref<27x649xf32, #tpu.memory_space<vmem>>) attributes {dimension_semantics = [#tpu.dimension_semantics<parallel>], iteration_bounds = array<i64: 2>, scalar_prefetch = 0 : i64, scratch_operands = 1 : i64, tpu.core_type = #tpu.core_type<tc>, window_params = [{transform_indices = @transform_0, window_bounds = array<i64: 1, 12, 676>}, {pipeline_mode = #tpu.pipeline_mode<synchronous>, transform_indices = @transform_1, window_bounds = array<i64: 18, 27>}, {pipeline_mode = #tpu.pipeline_mode<synchronous>, transform_indices = @transform_2, window_bounds = array<i64: 18, 1>}, {pipeline_mode = #tpu.pipeline_mode<synchronous>, transform_indices = @transform_3, window_bounds = array<i64: 649, 1152>}, {pipeline_mode = #tpu.pipeline_mode<synchronous>, transform_indices = @transform_4, window_bounds = array<i64: 1, 64>}, {pipeline_mode = #tpu.pipeline_mode<synchronous>, transform_indices = @transform_5, window_bounds = array<i64: 64, 2>}, {pipeline_mode = #tpu.pipeline_mode<synchronous>, transform_indices = @transform_6, window_bounds = array<i64: 1, 2>}, {transform_indices = @transform_7, window_bounds = array<i64: 1, 1, 2>}]} {
    %c0 = arith.constant 0 : index
    %c0_0 = arith.constant 0 : index
    %c0_1 = arith.constant 0 : index
    %0 = vector.load %arg1[%c0, %c0_0, %c0_1] : memref<1x12x676xf32, #tpu.memory_space<vmem>>, vector<1x1x649xf32>
    %1 = vector.shape_cast %0 : vector<1x1x649xf32> to vector<1x649xf32>
    %c0_2 = arith.constant 0 : index
    %c0_3 = arith.constant 0 : index
    %2 = vector.load %arg9[%c0_2, %c0_3] : memref<27x649xf32, #tpu.memory_space<vmem>>, vector<1x649xf32>
    tpu.vector_store %arg9[%c0_2, %c0_3], %1 {strides = array<i32>} : memref<27x649xf32, #tpu.memory_space<vmem>>, vector<1x649xf32>,
    %c0_4 = arith.constant 0 : index
    %c3 = arith.constant 3 : index
    %c0_5 = arith.constant 0 : index
    %3 = vector.load %arg1[%c0_4, %c3, %c0_5] : memref<1x12x676xf32, #tpu.memory_space<vmem>>, vector<1x1x649xf32>
    %4 = vector.shape_cast %3 : vector<1x1x649xf32> to vector<1x649xf32>
    %c1 = arith.constant 1 : index
    %c0_6 = arith.constant 0 : index
    %5 = vector.load %arg9[%c1, %c0_6] : memref<27x649xf32, #tpu.memory_space<vmem>>, vector<1x649xf32>
    tpu.vector_store %arg9[%c1, %c0_6], %4 {strides = array<i32>} : memref<27x649xf32, #tpu.memory_space<vmem>>, vector<1x649xf32>,
    %c0_7 = arith.constant 0 : index
    %c0_8 = arith.constant 0 : index
    %c1_9 = arith.constant 1 : index
    %6 = vector.load %arg1[%c0_7, %c0_8, %c1_9] : memref<1x12x676xf32, #tpu.memory_space<vmem>>, vector<1x1x649xf32>
    %7 = vector.shape_cast %6 : vector<1x1x649xf32> to vector<1x649xf32>
    %c2 = arith.constant 2 : index
    %c0_10 = arith.constant 0 : index
    %8 = vector.load %arg9[%c2, %c0_10] : memref<27x649xf32, #tpu.memory_space<vmem>>, vector<1x649xf32>
    tpu.vector_store %arg9[%c2, %c0_10], %7 {strides = array<i32>} : memref<27x649xf32, #tpu.memory_space<vmem>>, vector<1x649xf32>,
    %c0_11 = arith.constant 0 : index
    %c6 = arith.constant 6 : index
    %c0_12 = arith.constant 0 : index
    %9 = vector.load %arg1[%c0_11, %c6, %c0_12] : memref<1x12x676xf32, #tpu.memory_space<vmem>>, vector<1x1x649xf32>
    %10 = vector.shape_cast %9 : vector<1x1x649xf32> to vector<1x649xf32>
    %c3_13 = arith.constant 3 : index
    %c0_14 = arith.constant 0 : index
    %11 = vector.load %arg9[%c3_13, %c0_14] : memref<27x649xf32, #tpu.memory_space<vmem>>, vector<1x649xf32>
    tpu.vector_store %arg9[%c3_13, %c0_14], %10 {strides = array<i32>} : memref<27x649xf32, #tpu.memory_space<vmem>>, vector<1x649xf32>,
    %c0_15 = arith.constant 0 : index
    %c9 = arith.constant 9 : index
    %c0_16 = arith.constant 0 : index
    %12 = vector.load %arg1[%c0_15, %c9, %c0_16] : memref<1x12x676xf32, #tpu.memory_space<vmem>>, vector<1x1x649xf32>
    %13 = vector.shape_cast %12 : vector<1x1x649xf32> to vector<1x649xf32>
    %c4 = arith.constant 4 : index
    %c0_17 = arith.constant 0 : index
    %14 = vector.load %arg9[%c4, %c0_17] : memref<27x649xf32, #tpu.memory_space<vmem>>, vector<1x649xf32>
    tpu.vector_store %arg9[%c4, %c0_17], %13 {strides = array<i32>} : memref<27x649xf32, #tpu.memory_space<vmem>>, vector<1x649xf32>,
    %c0_18 = arith.constant 0 : index
    %c6_19 = arith.constant 6 : index
    %c1_20 = arith.constant 1 : index
    %15 = vector.load %arg1[%c0_18, %c6_19, %c1_20] : memref<1x12x676xf32, #tpu.memory_space<vmem>>, vector<1x1x649xf32>
    %16 = vector.shape_cast %15 : vector<1x1x649xf32> to vector<1x649xf32>
    %c5 = arith.constant 5 : index
    %c0_21 = arith.constant 0 : index
    %17 = vector.load %arg9[%c5, %c0_21] : memref<27x649xf32, #tpu.memory_space<vmem>>, vector<1x649xf32>
    tpu.vector_store %arg9[%c5, %c0_21], %16 {strides = array<i32>} : memref<27x649xf32, #tpu.memory_space<vmem>>, vector<1x649xf32>,
    %c0_22 = arith.constant 0 : index
    %c0_23 = arith.constant 0 : index
    %c26 = arith.constant 26 : index
    %18 = vector.load %arg1[%c0_22, %c0_23, %c26] : memref<1x12x676xf32, #tpu.memory_space<vmem>>, vector<1x1x649xf32>
    %19 = vector.shape_cast %18 : vector<1x1x649xf32> to vector<1x649xf32>
    %c6_24 = arith.constant 6 : index
    %c0_25 = arith.constant 0 : index
    %20 = vector.load %arg9[%c6_24, %c0_25] : memref<27x649xf32, #tpu.memory_space<vmem>>, vector<1x649xf32>
    tpu.vector_store %arg9[%c6_24, %c0_25], %19 {strides = array<i32>} : memref<27x649xf32, #tpu.memory_space<vmem>>, vector<1x649xf32>,
    %c0_26 = arith.constant 0 : index
    %c3_27 = arith.constant 3 : index
    %c26_28 = arith.constant 26 : index
    %21 = vector.load %arg1[%c0_26, %c3_27, %c26_28] : memref<1x12x676xf32, #tpu.memory_space<vmem>>, vector<1x1x649xf32>
    %22 = vector.shape_cast %21 : vector<1x1x649xf32> to vector<1x649xf32>
    %c7 = arith.constant 7 : index
    %c0_29 = arith.constant 0 : index
    %23 = vector.load %arg9[%c7, %c0_29] : memref<27x649xf32, #tpu.memory_space<vmem>>, vector<1x649xf32>
    tpu.vector_store %arg9[%c7, %c0_29], %22 {strides = array<i32>} : memref<27x649xf32, #tpu.memory_space<vmem>>, vector<1x649xf32>,
    %c0_30 = arith.constant 0 : index
    %c0_31 = arith.constant 0 : index
    %c27 = arith.constant 27 : index
    %24 = vector.load %arg1[%c0_30, %c0_31, %c27] : memref<1x12x676xf32, #tpu.memory_space<vmem>>, vector<1x1x649xf32>
    %25 = vector.shape_cast %24 : vector<1x1x649xf32> to vector<1x649xf32>
    %c8 = arith.constant 8 : index
    %c0_32 = arith.constant 0 : index
    %26 = vector.load %arg9[%c8, %c0_32] : memref<27x649xf32, #tpu.memory_space<vmem>>, vector<1x649xf32>
    tpu.vector_store %arg9[%c8, %c0_32], %25 {strides = array<i32>} : memref<27x649xf32, #tpu.memory_space<vmem>>, vector<1x649xf32>,
    %c0_33 = arith.constant 0 : index
    %c1_34 = arith.constant 1 : index
    %c0_35 = arith.constant 0 : index
    %27 = vector.load %arg1[%c0_33, %c1_34, %c0_35] : memref<1x12x676xf32, #tpu.memory_space<vmem>>, vector<1x1x649xf32>
    %28 = vector.shape_cast %27 : vector<1x1x649xf32> to vector<1x649xf32>
    %c9_36 = arith.constant 9 : index
    %c0_37 = arith.constant 0 : index
    %29 = vector.load %arg9[%c9_36, %c0_37] : memref<27x649xf32, #tpu.memory_space<vmem>>, vector<1x649xf32>
    tpu.vector_store %arg9[%c9_36, %c0_37], %28 {strides = array<i32>} : memref<27x649xf32, #tpu.memory_space<vmem>>, vector<1x649xf32>,
    %c0_38 = arith.constant 0 : index
    %c4_39 = arith.constant 4 : index
    %c0_40 = arith.constant 0 : index
    %30 = vector.load %arg1[%c0_38, %c4_39, %c0_40] : memref<1x12x676xf32, #tpu.memory_space<vmem>>, vector<1x1x649xf32>
    %31 = vector.shape_cast %30 : vector<1x1x649xf32> to vector<1x649xf32>
    %c10 = arith.constant 10 : index
    %c0_41 = arith.constant 0 : index
    %32 = vector.load %arg9[%c10, %c0_41] : memref<27x649xf32, #tpu.memory_space<vmem>>, vector<1x649xf32>
    tpu.vector_store %arg9[%c10, %c0_41], %31 {strides = array<i32>} : memref<27x649xf32, #tpu.memory_space<vmem>>, vector<1x649xf32>,
    %c0_42 = arith.constant 0 : index
    %c1_43 = arith.constant 1 : index
    %c1_44 = arith.constant 1 : index
    %33 = vector.load %arg1[%c0_42, %c1_43, %c1_44] : memref<1x12x676xf32, #tpu.memory_space<vmem>>, vector<1x1x649xf32>
    %34 = vector.shape_cast %33 : vector<1x1x649xf32> to vector<1x649xf32>
    %c11 = arith.constant 11 : index
    %c0_45 = arith.constant 0 : index
    %35 = vector.load %arg9[%c11, %c0_45] : memref<27x649xf32, #tpu.memory_space<vmem>>, vector<1x649xf32>
    tpu.vector_store %arg9[%c11, %c0_45], %34 {strides = array<i32>} : memref<27x649xf32, #tpu.memory_space<vmem>>, vector<1x649xf32>,
    %c0_46 = arith.constant 0 : index
    %c7_47 = arith.constant 7 : index
    %c0_48 = arith.constant 0 : index
    %36 = vector.load %arg1[%c0_46, %c7_47, %c0_48] : memref<1x12x676xf32, #tpu.memory_space<vmem>>, vector<1x1x649xf32>
    %37 = vector.shape_cast %36 : vector<1x1x649xf32> to vector<1x649xf32>
    %c12 = arith.constant 12 : index
    %c0_49 = arith.constant 0 : index
    %38 = vector.load %arg9[%c12, %c0_49] : memref<27x649xf32, #tpu.memory_space<vmem>>, vector<1x649xf32>
    tpu.vector_store %arg9[%c12, %c0_49], %37 {strides = array<i32>} : memref<27x649xf32, #tpu.memory_space<vmem>>, vector<1x649xf32>,
    %c0_50 = arith.constant 0 : index
    %c10_51 = arith.constant 10 : index
    %c0_52 = arith.constant 0 : index
    %39 = vector.load %arg1[%c0_50, %c10_51, %c0_52] : memref<1x12x676xf32, #tpu.memory_space<vmem>>, vector<1x1x649xf32>
    %40 = vector.shape_cast %39 : vector<1x1x649xf32> to vector<1x649xf32>
    %c13 = arith.constant 13 : index
    %c0_53 = arith.constant 0 : index
    %41 = vector.load %arg9[%c13, %c0_53] : memref<27x649xf32, #tpu.memory_space<vmem>>, vector<1x649xf32>
    tpu.vector_store %arg9[%c13, %c0_53], %40 {strides = array<i32>} : memref<27x649xf32, #tpu.memory_space<vmem>>, vector<1x649xf32>,
    %c0_54 = arith.constant 0 : index
    %c7_55 = arith.constant 7 : index
    %c1_56 = arith.constant 1 : index
    %42 = vector.load %arg1[%c0_54, %c7_55, %c1_56] : memref<1x12x676xf32, #tpu.memory_space<vmem>>, vector<1x1x649xf32>
    %43 = vector.shape_cast %42 : vector<1x1x649xf32> to vector<1x649xf32>
    %c14 = arith.constant 14 : index
    %c0_57 = arith.constant 0 : index
    %44 = vector.load %arg9[%c14, %c0_57] : memref<27x649xf32, #tpu.memory_space<vmem>>, vector<1x649xf32>
    tpu.vector_store %arg9[%c14, %c0_57], %43 {strides = array<i32>} : memref<27x649xf32, #tpu.memory_space<vmem>>, vector<1x649xf32>,
    %c0_58 = arith.constant 0 : index
    %c1_59 = arith.constant 1 : index
    %c26_60 = arith.constant 26 : index
    %45 = vector.load %arg1[%c0_58, %c1_59, %c26_60] : memref<1x12x676xf32, #tpu.memory_space<vmem>>, vector<1x1x649xf32>
    %46 = vector.shape_cast %45 : vector<1x1x649xf32> to vector<1x649xf32>
    %c15 = arith.constant 15 : index
    %c0_61 = arith.constant 0 : index
    %47 = vector.load %arg9[%c15, %c0_61] : memref<27x649xf32, #tpu.memory_space<vmem>>, vector<1x649xf32>
    tpu.vector_store %arg9[%c15, %c0_61], %46 {strides = array<i32>} : memref<27x649xf32, #tpu.memory_space<vmem>>, vector<1x649xf32>,
    %c0_62 = arith.constant 0 : index
    %c4_63 = arith.constant 4 : index
    %c26_64 = arith.constant 26 : index
    %48 = vector.load %arg1[%c0_62, %c4_63, %c26_64] : memref<1x12x676xf32, #tpu.memory_space<vmem>>, vector<1x1x649xf32>
    %49 = vector.shape_cast %48 : vector<1x1x649xf32> to vector<1x649xf32>
    %c16 = arith.constant 16 : index
    %c0_65 = arith.constant 0 : index
    %50 = vector.load %arg9[%c16, %c0_65] : memref<27x649xf32, #tpu.memory_space<vmem>>, vector<1x649xf32>
    tpu.vector_store %arg9[%c16, %c0_65], %49 {strides = array<i32>} : memref<27x649xf32, #tpu.memory_space<vmem>>, vector<1x649xf32>,
    %c0_66 = arith.constant 0 : index
    %c1_67 = arith.constant 1 : index
    %c27_68 = arith.constant 27 : index
    %51 = vector.load %arg1[%c0_66, %c1_67, %c27_68] : memref<1x12x676xf32, #tpu.memory_space<vmem>>, vector<1x1x649xf32>
    %52 = vector.shape_cast %51 : vector<1x1x649xf32> to vector<1x649xf32>
    %c17 = arith.constant 17 : index
    %c0_69 = arith.constant 0 : index
    %53 = vector.load %arg9[%c17, %c0_69] : memref<27x649xf32, #tpu.memory_space<vmem>>, vector<1x649xf32>
    tpu.vector_store %arg9[%c17, %c0_69], %52 {strides = array<i32>} : memref<27x649xf32, #tpu.memory_space<vmem>>, vector<1x649xf32>,
    %c0_70 = arith.constant 0 : index
    %c2_71 = arith.constant 2 : index
    %c0_72 = arith.constant 0 : index
    %54 = vector.load %arg1[%c0_70, %c2_71, %c0_72] : memref<1x12x676xf32, #tpu.memory_space<vmem>>, vector<1x1x649xf32>
    %55 = vector.shape_cast %54 : vector<1x1x649xf32> to vector<1x649xf32>
    %c18 = arith.constant 18 : index
    %c0_73 = arith.constant 0 : index
    %56 = vector.load %arg9[%c18, %c0_73] : memref<27x649xf32, #tpu.memory_space<vmem>>, vector<1x649xf32>
    tpu.vector_store %arg9[%c18, %c0_73], %55 {strides = array<i32>} : memref<27x649xf32, #tpu.memory_space<vmem>>, vector<1x649xf32>,
    %c0_74 = arith.constant 0 : index
    %c5_75 = arith.constant 5 : index
    %c0_76 = arith.constant 0 : index
    %57 = vector.load %arg1[%c0_74, %c5_75, %c0_76] : memref<1x12x676xf32, #tpu.memory_space<vmem>>, vector<1x1x649xf32>
    %58 = vector.shape_cast %57 : vector<1x1x649xf32> to vector<1x649xf32>
    %c19 = arith.constant 19 : index
    %c0_77 = arith.constant 0 : index
    %59 = vector.load %arg9[%c19, %c0_77] : memref<27x649xf32, #tpu.memory_space<vmem>>, vector<1x649xf32>
    tpu.vector_store %arg9[%c19, %c0_77], %58 {strides = array<i32>} : memref<27x649xf32, #tpu.memory_space<vmem>>, vector<1x649xf32>,
    %c0_78 = arith.constant 0 : index
    %c2_79 = arith.constant 2 : index
    %c1_80 = arith.constant 1 : index
    %60 = vector.load %arg1[%c0_78, %c2_79, %c1_80] : memref<1x12x676xf32, #tpu.memory_space<vmem>>, vector<1x1x649xf32>
    %61 = vector.shape_cast %60 : vector<1x1x649xf32> to vector<1x649xf32>
    %c20 = arith.constant 20 : index
    %c0_81 = arith.constant 0 : index
    %62 = vector.load %arg9[%c20, %c0_81] : memref<27x649xf32, #tpu.memory_space<vmem>>, vector<1x649xf32>
    tpu.vector_store %arg9[%c20, %c0_81], %61 {strides = array<i32>} : memref<27x649xf32, #tpu.memory_space<vmem>>, vector<1x649xf32>,
    %c0_82 = arith.constant 0 : index
    %c8_83 = arith.constant 8 : index
    %c0_84 = arith.constant 0 : index
    %63 = vector.load %arg1[%c0_82, %c8_83, %c0_84] : memref<1x12x676xf32, #tpu.memory_space<vmem>>, vector<1x1x649xf32>
    %64 = vector.shape_cast %63 : vector<1x1x649xf32> to vector<1x649xf32>
    %c21 = arith.constant 21 : index
    %c0_85 = arith.constant 0 : index
    %65 = vector.load %arg9[%c21, %c0_85] : memref<27x649xf32, #tpu.memory_space<vmem>>, vector<1x649xf32>
    tpu.vector_store %arg9[%c21, %c0_85], %64 {strides = array<i32>} : memref<27x649xf32, #tpu.memory_space<vmem>>, vector<1x649xf32>,
    %c0_86 = arith.constant 0 : index
    %c11_87 = arith.constant 11 : index
    %c0_88 = arith.constant 0 : index
    %66 = vector.load %arg1[%c0_86, %c11_87, %c0_88] : memref<1x12x676xf32, #tpu.memory_space<vmem>>, vector<1x1x649xf32>
    %67 = vector.shape_cast %66 : vector<1x1x649xf32> to vector<1x649xf32>
    %c22 = arith.constant 22 : index
    %c0_89 = arith.constant 0 : index
    %68 = vector.load %arg9[%c22, %c0_89] : memref<27x649xf32, #tpu.memory_space<vmem>>, vector<1x649xf32>
    tpu.vector_store %arg9[%c22, %c0_89], %67 {strides = array<i32>} : memref<27x649xf32, #tpu.memory_space<vmem>>, vector<1x649xf32>,
    %c0_90 = arith.constant 0 : index
    %c8_91 = arith.constant 8 : index
    %c1_92 = arith.constant 1 : index
    %69 = vector.load %arg1[%c0_90, %c8_91, %c1_92] : memref<1x12x676xf32, #tpu.memory_space<vmem>>, vector<1x1x649xf32>
    %70 = vector.shape_cast %69 : vector<1x1x649xf32> to vector<1x649xf32>
    %c23 = arith.constant 23 : index
    %c0_93 = arith.constant 0 : index
    %71 = vector.load %arg9[%c23, %c0_93] : memref<27x649xf32, #tpu.memory_space<vmem>>, vector<1x649xf32>
    tpu.vector_store %arg9[%c23, %c0_93], %70 {strides = array<i32>} : memref<27x649xf32, #tpu.memory_space<vmem>>, vector<1x649xf32>,
    %c0_94 = arith.constant 0 : index
    %c2_95 = arith.constant 2 : index
    %c26_96 = arith.constant 26 : index
    %72 = vector.load %arg1[%c0_94, %c2_95, %c26_96] : memref<1x12x676xf32, #tpu.memory_space<vmem>>, vector<1x1x649xf32>
    %73 = vector.shape_cast %72 : vector<1x1x649xf32> to vector<1x649xf32>
    %c24 = arith.constant 24 : index
    %c0_97 = arith.constant 0 : index
    %74 = vector.load %arg9[%c24, %c0_97] : memref<27x649xf32, #tpu.memory_space<vmem>>, vector<1x649xf32>
    tpu.vector_store %arg9[%c24, %c0_97], %73 {strides = array<i32>} : memref<27x649xf32, #tpu.memory_space<vmem>>, vector<1x649xf32>,
    %c0_98 = arith.constant 0 : index
    %c5_99 = arith.constant 5 : index
    %c26_100 = arith.constant 26 : index
    %75 = vector.load %arg1[%c0_98, %c5_99, %c26_100] : memref<1x12x676xf32, #tpu.memory_space<vmem>>, vector<1x1x649xf32>
    %76 = vector.shape_cast %75 : vector<1x1x649xf32> to vector<1x649xf32>
    %c25 = arith.constant 25 : index
    %c0_101 = arith.constant 0 : index
    %77 = vector.load %arg9[%c25, %c0_101] : memref<27x649xf32, #tpu.memory_space<vmem>>, vector<1x649xf32>
    tpu.vector_store %arg9[%c25, %c0_101], %76 {strides = array<i32>} : memref<27x649xf32, #tpu.memory_space<vmem>>, vector<1x649xf32>,
    %c0_102 = arith.constant 0 : index
    %c2_103 = arith.constant 2 : index
    %c27_104 = arith.constant 27 : index
    %78 = vector.load %arg1[%c0_102, %c2_103, %c27_104] : memref<1x12x676xf32, #tpu.memory_space<vmem>>, vector<1x1x649xf32>
    %79 = vector.shape_cast %78 : vector<1x1x649xf32> to vector<1x649xf32>
    %c26_105 = arith.constant 26 : index
    %c0_106 = arith.constant 0 : index
    %80 = vector.load %arg9[%c26_105, %c0_106] : memref<27x649xf32, #tpu.memory_space<vmem>>, vector<1x649xf32>
    tpu.vector_store %arg9[%c26_105, %c0_106], %79 {strides = array<i32>} : memref<27x649xf32, #tpu.memory_space<vmem>>, vector<1x649xf32>,
    %c0_107 = arith.constant 0 : index
    %c0_108 = arith.constant 0 : index
    %81 = vector.load %arg2[%c0_107, %c0_108] : memref<18x27xf32, #tpu.memory_space<vmem>>, vector<18x27xf32>
    %c0_109 = arith.constant 0 : index
    %c0_110 = arith.constant 0 : index
    %82 = vector.load %arg9[%c0_109, %c0_110] : memref<27x649xf32, #tpu.memory_space<vmem>>, vector<27x649xf32>
    %cst = arith.constant dense<0.000000e+00> : vector<18x649xf32>
    %83 = tpu.matmul %81, %82, %cst {dimension_numbers = #tpu.dot_dimension_numbers<[1], [0], [0], [1], [0, 0, 1, 1], [], []>} : vector<18x27xf32>, vector<27x649xf32>, vector<18x649xf32> -> vector<18x649xf32>
    %c0_111 = arith.constant 0 : index
    %c3_112 = arith.constant 3 : index
    %c0_113 = arith.constant 0 : index
    %84 = vector.load %arg1[%c0_111, %c3_112, %c0_113] : memref<1x12x676xf32, #tpu.memory_space<vmem>>, vector<1x1x649xf32>
    %85 = vector.shape_cast %84 : vector<1x1x649xf32> to vector<1x649xf32>
    %c0_114 = arith.constant 0 : index
    %c0_115 = arith.constant 0 : index
    %86 = vector.load %arg9[%c0_114, %c0_115] : memref<27x649xf32, #tpu.memory_space<vmem>>, vector<1x649xf32>
    tpu.vector_store %arg9[%c0_114, %c0_115], %85 {strides = array<i32>} : memref<27x649xf32, #tpu.memory_space<vmem>>, vector<1x649xf32>,
    %c0_116 = arith.constant 0 : index
    %c0_117 = arith.constant 0 : index
    %c1_118 = arith.constant 1 : index
    %87 = vector.load %arg1[%c0_116, %c0_117, %c1_118] : memref<1x12x676xf32, #tpu.memory_space<vmem>>, vector<1x1x649xf32>
    %88 = vector.shape_cast %87 : vector<1x1x649xf32> to vector<1x649xf32>
    %c1_119 = arith.constant 1 : index
    %c0_120 = arith.constant 0 : index
    %89 = vector.load %arg9[%c1_119, %c0_120] : memref<27x649xf32, #tpu.memory_space<vmem>>, vector<1x649xf32>
    tpu.vector_store %arg9[%c1_119, %c0_120], %88 {strides = array<i32>} : memref<27x649xf32, #tpu.memory_space<vmem>>, vector<1x649xf32>,
    %c0_121 = arith.constant 0 : index
    %c3_122 = arith.constant 3 : index
    %c1_123 = arith.constant 1 : index
    %90 = vector.load %arg1[%c0_121, %c3_122, %c1_123] : memref<1x12x676xf32, #tpu.memory_space<vmem>>, vector<1x1x649xf32>
    %91 = vector.shape_cast %90 : vector<1x1x649xf32> to vector<1x649xf32>
    %c2_124 = arith.constant 2 : index
    %c0_125 = arith.constant 0 : index
    %92 = vector.load %arg9[%c2_124, %c0_125] : memref<27x649xf32, #tpu.memory_space<vmem>>, vector<1x649xf32>
    tpu.vector_store %arg9[%c2_124, %c0_125], %91 {strides = array<i32>} : memref<27x649xf32, #tpu.memory_space<vmem>>, vector<1x649xf32>,
    %c0_126 = arith.constant 0 : index
    %c9_127 = arith.constant 9 : index
    %c0_128 = arith.constant 0 : index
    %93 = vector.load %arg1[%c0_126, %c9_127, %c0_128] : memref<1x12x676xf32, #tpu.memory_space<vmem>>, vector<1x1x649xf32>
    %94 = vector.shape_cast %93 : vector<1x1x649xf32> to vector<1x649xf32>
    %c3_129 = arith.constant 3 : index
    %c0_130 = arith.constant 0 : index
    %95 = vector.load %arg9[%c3_129, %c0_130] : memref<27x649xf32, #tpu.memory_space<vmem>>, vector<1x649xf32>
    tpu.vector_store %arg9[%c3_129, %c0_130], %94 {strides = array<i32>} : memref<27x649xf32, #tpu.memory_space<vmem>>, vector<1x649xf32>,
    %c0_131 = arith.constant 0 : index
    %c6_132 = arith.constant 6 : index
    %c1_133 = arith.constant 1 : index
    %96 = vector.load %arg1[%c0_131, %c6_132, %c1_133] : memref<1x12x676xf32, #tpu.memory_space<vmem>>, vector<1x1x649xf32>
    %97 = vector.shape_cast %96 : vector<1x1x649xf32> to vector<1x649xf32>
    %c4_134 = arith.constant 4 : index
    %c0_135 = arith.constant 0 : index
    %98 = vector.load %arg9[%c4_134, %c0_135] : memref<27x649xf32, #tpu.memory_space<vmem>>, vector<1x649xf32>
    tpu.vector_store %arg9[%c4_134, %c0_135], %97 {strides = array<i32>} : memref<27x649xf32, #tpu.memory_space<vmem>>, vector<1x649xf32>,
    %c0_136 = arith.constant 0 : index
    %c9_137 = arith.constant 9 : index
    %c1_138 = arith.constant 1 : index
    %99 = vector.load %arg1[%c0_136, %c9_137, %c1_138] : memref<1x12x676xf32, #tpu.memory_space<vmem>>, vector<1x1x649xf32>
    %100 = vector.shape_cast %99 : vector<1x1x649xf32> to vector<1x649xf32>
    %c5_139 = arith.constant 5 : index
    %c0_140 = arith.constant 0 : index
    %101 = vector.load %arg9[%c5_139, %c0_140] : memref<27x649xf32, #tpu.memory_space<vmem>>, vector<1x649xf32>
    tpu.vector_store %arg9[%c5_139, %c0_140], %100 {strides = array<i32>} : memref<27x649xf32, #tpu.memory_space<vmem>>, vector<1x649xf32>,
    %c0_141 = arith.constant 0 : index
    %c3_142 = arith.constant 3 : index
    %c26_143 = arith.constant 26 : index
    %102 = vector.load %arg1[%c0_141, %c3_142, %c26_143] : memref<1x12x676xf32, #tpu.memory_space<vmem>>, vector<1x1x649xf32>
    %103 = vector.shape_cast %102 : vector<1x1x649xf32> to vector<1x649xf32>
    %c6_144 = arith.constant 6 : index
    %c0_145 = arith.constant 0 : index
    %104 = vector.load %arg9[%c6_144, %c0_145] : memref<27x649xf32, #tpu.memory_space<vmem>>, vector<1x649xf32>
    tpu.vector_store %arg9[%c6_144, %c0_145], %103 {strides = array<i32>} : memref<27x649xf32, #tpu.memory_space<vmem>>, vector<1x649xf32>,
    %c0_146 = arith.constant 0 : index
    %c0_147 = arith.constant 0 : index
    %c27_148 = arith.constant 27 : index
    %105 = vector.load %arg1[%c0_146, %c0_147, %c27_148] : memref<1x12x676xf32, #tpu.memory_space<vmem>>, vector<1x1x649xf32>
    %106 = vector.shape_cast %105 : vector<1x1x649xf32> to vector<1x649xf32>
    %c7_149 = arith.constant 7 : index
    %c0_150 = arith.constant 0 : index
    %107 = vector.load %arg9[%c7_149, %c0_150] : memref<27x649xf32, #tpu.memory_space<vmem>>, vector<1x649xf32>
    tpu.vector_store %arg9[%c7_149, %c0_150], %106 {strides = array<i32>} : memref<27x649xf32, #tpu.memory_space<vmem>>, vector<1x649xf32>,
    %c0_151 = arith.constant 0 : index
    %c3_152 = arith.constant 3 : index
    %c27_153 = arith.constant 27 : index
    %108 = vector.load %arg1[%c0_151, %c3_152, %c27_153] : memref<1x12x676xf32, #tpu.memory_space<vmem>>, vector<1x1x649xf32>
    %109 = vector.shape_cast %108 : vector<1x1x649xf32> to vector<1x649xf32>
    %c8_154 = arith.constant 8 : index
    %c0_155 = arith.constant 0 : index
    %110 = vector.load %arg9[%c8_154, %c0_155] : memref<27x649xf32, #tpu.memory_space<vmem>>, vector<1x649xf32>
    tpu.vector_store %arg9[%c8_154, %c0_155], %109 {strides = array<i32>} : memref<27x649xf32, #tpu.memory_space<vmem>>, vector<1x649xf32>,
    %c0_156 = arith.constant 0 : index
    %c4_157 = arith.constant 4 : index
    %c0_158 = arith.constant 0 : index
    %111 = vector.load %arg1[%c0_156, %c4_157, %c0_158] : memref<1x12x676xf32, #tpu.memory_space<vmem>>, vector<1x1x649xf32>
    %112 = vector.shape_cast %111 : vector<1x1x649xf32> to vector<1x649xf32>
    %c9_159 = arith.constant 9 : index
    %c0_160 = arith.constant 0 : index
    %113 = vector.load %arg9[%c9_159, %c0_160] : memref<27x649xf32, #tpu.memory_space<vmem>>, vector<1x649xf32>
    tpu.vector_store %arg9[%c9_159, %c0_160], %112 {strides = array<i32>} : memref<27x649xf32, #tpu.memory_space<vmem>>, vector<1x649xf32>,
    %c0_161 = arith.constant 0 : index
    %c1_162 = arith.constant 1 : index
    %c1_163 = arith.constant 1 : index
    %114 = vector.load %arg1[%c0_161, %c1_162, %c1_163] : memref<1x12x676xf32, #tpu.memory_space<vmem>>, vector<1x1x649xf32>
    %115 = vector.shape_cast %114 : vector<1x1x649xf32> to vector<1x649xf32>
    %c10_164 = arith.constant 10 : index
    %c0_165 = arith.constant 0 : index
    %116 = vector.load %arg9[%c10_164, %c0_165] : memref<27x649xf32, #tpu.memory_space<vmem>>, vector<1x649xf32>
    tpu.vector_store %arg9[%c10_164, %c0_165], %115 {strides = array<i32>} : memref<27x649xf32, #tpu.memory_space<vmem>>, vector<1x649xf32>,
    %c0_166 = arith.constant 0 : index
    %c4_167 = arith.constant 4 : index
    %c1_168 = arith.constant 1 : index
    %117 = vector.load %arg1[%c0_166, %c4_167, %c1_168] : memref<1x12x676xf32, #tpu.memory_space<vmem>>, vector<1x1x649xf32>
    %118 = vector.shape_cast %117 : vector<1x1x649xf32> to vector<1x649xf32>
    %c11_169 = arith.constant 11 : index
    %c0_170 = arith.constant 0 : index
    %119 = vector.load %arg9[%c11_169, %c0_170] : memref<27x649xf32, #tpu.memory_space<vmem>>, vector<1x649xf32>
    tpu.vector_store %arg9[%c11_169, %c0_170], %118 {strides = array<i32>} : memref<27x649xf32, #tpu.memory_space<vmem>>, vector<1x649xf32>,
    %c0_171 = arith.constant 0 : index
    %c10_172 = arith.constant 10 : index
    %c0_173 = arith.constant 0 : index
    %120 = vector.load %arg1[%c0_171, %c10_172, %c0_173] : memref<1x12x676xf32, #tpu.memory_space<vmem>>, vector<1x1x649xf32>
    %121 = vector.shape_cast %120 : vector<1x1x649xf32> to vector<1x649xf32>
    %c12_174 = arith.constant 12 : index
    %c0_175 = arith.constant 0 : index
    %122 = vector.load %arg9[%c12_174, %c0_175] : memref<27x649xf32, #tpu.memory_space<vmem>>, vector<1x649xf32>
    tpu.vector_store %arg9[%c12_174, %c0_175], %121 {strides = array<i32>} : memref<27x649xf32, #tpu.memory_space<vmem>>, vector<1x649xf32>,
    %c0_176 = arith.constant 0 : index
    %c7_177 = arith.constant 7 : index
    %c1_178 = arith.constant 1 : index
    %123 = vector.load %arg1[%c0_176, %c7_177, %c1_178] : memref<1x12x676xf32, #tpu.memory_space<vmem>>, vector<1x1x649xf32>
    %124 = vector.shape_cast %123 : vector<1x1x649xf32> to vector<1x649xf32>
    %c13_179 = arith.constant 13 : index
    %c0_180 = arith.constant 0 : index
    %125 = vector.load %arg9[%c13_179, %c0_180] : memref<27x649xf32, #tpu.memory_space<vmem>>, vector<1x649xf32>
    tpu.vector_store %arg9[%c13_179, %c0_180], %124 {strides = array<i32>} : memref<27x649xf32, #tpu.memory_space<vmem>>, vector<1x649xf32>,
    %c0_181 = arith.constant 0 : index
    %c10_182 = arith.constant 10 : index
    %c1_183 = arith.constant 1 : index
    %126 = vector.load %arg1[%c0_181, %c10_182, %c1_183] : memref<1x12x676xf32, #tpu.memory_space<vmem>>, vector<1x1x649xf32>
    %127 = vector.shape_cast %126 : vector<1x1x649xf32> to vector<1x649xf32>
    %c14_184 = arith.constant 14 : index
    %c0_185 = arith.constant 0 : index
    %128 = vector.load %arg9[%c14_184, %c0_185] : memref<27x649xf32, #tpu.memory_space<vmem>>, vector<1x649xf32>
    tpu.vector_store %arg9[%c14_184, %c0_185], %127 {strides = array<i32>} : memref<27x649xf32, #tpu.memory_space<vmem>>, vector<1x649xf32>,
    %c0_186 = arith.constant 0 : index
    %c4_187 = arith.constant 4 : index
    %c26_188 = arith.constant 26 : index
    %129 = vector.load %arg1[%c0_186, %c4_187, %c26_188] : memref<1x12x676xf32, #tpu.memory_space<vmem>>, vector<1x1x649xf32>
    %130 = vector.shape_cast %129 : vector<1x1x649xf32> to vector<1x649xf32>
    %c15_189 = arith.constant 15 : index
    %c0_190 = arith.constant 0 : index
    %131 = vector.load %arg9[%c15_189, %c0_190] : memref<27x649xf32, #tpu.memory_space<vmem>>, vector<1x649xf32>
    tpu.vector_store %arg9[%c15_189, %c0_190], %130 {strides = array<i32>} : memref<27x649xf32, #tpu.memory_space<vmem>>, vector<1x649xf32>,
    %c0_191 = arith.constant 0 : index
    %c1_192 = arith.constant 1 : index
    %c27_193 = arith.constant 27 : index
    %132 = vector.load %arg1[%c0_191, %c1_192, %c27_193] : memref<1x12x676xf32, #tpu.memory_space<vmem>>, vector<1x1x649xf32>
    %133 = vector.shape_cast %132 : vector<1x1x649xf32> to vector<1x649xf32>
    %c16_194 = arith.constant 16 : index
    %c0_195 = arith.constant 0 : index
    %134 = vector.load %arg9[%c16_194, %c0_195] : memref<27x649xf32, #tpu.memory_space<vmem>>, vector<1x649xf32>
    tpu.vector_store %arg9[%c16_194, %c0_195], %133 {strides = array<i32>} : memref<27x649xf32, #tpu.memory_space<vmem>>, vector<1x649xf32>,
    %c0_196 = arith.constant 0 : index
    %c4_197 = arith.constant 4 : index
    %c27_198 = arith.constant 27 : index
    %135 = vector.load %arg1[%c0_196, %c4_197, %c27_198] : memref<1x12x676xf32, #tpu.memory_space<vmem>>, vector<1x1x649xf32>
    %136 = vector.shape_cast %135 : vector<1x1x649xf32> to vector<1x649xf32>
    %c17_199 = arith.constant 17 : index
    %c0_200 = arith.constant 0 : index
    %137 = vector.load %arg9[%c17_199, %c0_200] : memref<27x649xf32, #tpu.memory_space<vmem>>, vector<1x649xf32>
    tpu.vector_store %arg9[%c17_199, %c0_200], %136 {strides = array<i32>} : memref<27x649xf32, #tpu.memory_space<vmem>>, vector<1x649xf32>,
    %c0_201 = arith.constant 0 : index
    %c5_202 = arith.constant 5 : index
    %c0_203 = arith.constant 0 : index
    %138 = vector.load %arg1[%c0_201, %c5_202, %c0_203] : memref<1x12x676xf32, #tpu.memory_space<vmem>>, vector<1x1x649xf32>
    %139 = vector.shape_cast %138 : vector<1x1x649xf32> to vector<1x649xf32>
    %c18_204 = arith.constant 18 : index
    %c0_205 = arith.constant 0 : index
    %140 = vector.load %arg9[%c18_204, %c0_205] : memref<27x649xf32, #tpu.memory_space<vmem>>, vector<1x649xf32>
    tpu.vector_store %arg9[%c18_204, %c0_205], %139 {strides = array<i32>} : memref<27x649xf32, #tpu.memory_space<vmem>>, vector<1x649xf32>,
    %c0_206 = arith.constant 0 : index
    %c2_207 = arith.constant 2 : index
    %c1_208 = arith.constant 1 : index
    %141 = vector.load %arg1[%c0_206, %c2_207, %c1_208] : memref<1x12x676xf32, #tpu.memory_space<vmem>>, vector<1x1x649xf32>
    %142 = vector.shape_cast %141 : vector<1x1x649xf32> to vector<1x649xf32>
    %c19_209 = arith.constant 19 : index
    %c0_210 = arith.constant 0 : index
    %143 = vector.load %arg9[%c19_209, %c0_210] : memref<27x649xf32, #tpu.memory_space<vmem>>, vector<1x649xf32>
    tpu.vector_store %arg9[%c19_209, %c0_210], %142 {strides = array<i32>} : memref<27x649xf32, #tpu.memory_space<vmem>>, vector<1x649xf32>,
    %c0_211 = arith.constant 0 : index
    %c5_212 = arith.constant 5 : index
    %c1_213 = arith.constant 1 : index
    %144 = vector.load %arg1[%c0_211, %c5_212, %c1_213] : memref<1x12x676xf32, #tpu.memory_space<vmem>>, vector<1x1x649xf32>
    %145 = vector.shape_cast %144 : vector<1x1x649xf32> to vector<1x649xf32>
    %c20_214 = arith.constant 20 : index
    %c0_215 = arith.constant 0 : index
    %146 = vector.load %arg9[%c20_214, %c0_215] : memref<27x649xf32, #tpu.memory_space<vmem>>, vector<1x649xf32>
    tpu.vector_store %arg9[%c20_214, %c0_215], %145 {strides = array<i32>} : memref<27x649xf32, #tpu.memory_space<vmem>>, vector<1x649xf32>,
    %c0_216 = arith.constant 0 : index
    %c11_217 = arith.constant 11 : index
    %c0_218 = arith.constant 0 : index
    %147 = vector.load %arg1[%c0_216, %c11_217, %c0_218] : memref<1x12x676xf32, #tpu.memory_space<vmem>>, vector<1x1x649xf32>
    %148 = vector.shape_cast %147 : vector<1x1x649xf32> to vector<1x649xf32>
    %c21_219 = arith.constant 21 : index
    %c0_220 = arith.constant 0 : index
    %149 = vector.load %arg9[%c21_219, %c0_220] : memref<27x649xf32, #tpu.memory_space<vmem>>, vector<1x649xf32>
    tpu.vector_store %arg9[%c21_219, %c0_220], %148 {strides = array<i32>} : memref<27x649xf32, #tpu.memory_space<vmem>>, vector<1x649xf32>,
    %c0_221 = arith.constant 0 : index
    %c8_222 = arith.constant 8 : index
    %c1_223 = arith.constant 1 : index
    %150 = vector.load %arg1[%c0_221, %c8_222, %c1_223] : memref<1x12x676xf32, #tpu.memory_space<vmem>>, vector<1x1x649xf32>
    %151 = vector.shape_cast %150 : vector<1x1x649xf32> to vector<1x649xf32>
    %c22_224 = arith.constant 22 : index
    %c0_225 = arith.constant 0 : index
    %152 = vector.load %arg9[%c22_224, %c0_225] : memref<27x649xf32, #tpu.memory_space<vmem>>, vector<1x649xf32>
    tpu.vector_store %arg9[%c22_224, %c0_225], %151 {strides = array<i32>} : memref<27x649xf32, #tpu.memory_space<vmem>>, vector<1x649xf32>,
    %c0_226 = arith.constant 0 : index
    %c11_227 = arith.constant 11 : index
    %c1_228 = arith.constant 1 : index
    %153 = vector.load %arg1[%c0_226, %c11_227, %c1_228] : memref<1x12x676xf32, #tpu.memory_space<vmem>>, vector<1x1x649xf32>
    %154 = vector.shape_cast %153 : vector<1x1x649xf32> to vector<1x649xf32>
    %c23_229 = arith.constant 23 : index
    %c0_230 = arith.constant 0 : index
    %155 = vector.load %arg9[%c23_229, %c0_230] : memref<27x649xf32, #tpu.memory_space<vmem>>, vector<1x649xf32>
    tpu.vector_store %arg9[%c23_229, %c0_230], %154 {strides = array<i32>} : memref<27x649xf32, #tpu.memory_space<vmem>>, vector<1x649xf32>,
    %c0_231 = arith.constant 0 : index
    %c5_232 = arith.constant 5 : index
    %c26_233 = arith.constant 26 : index
    %156 = vector.load %arg1[%c0_231, %c5_232, %c26_233] : memref<1x12x676xf32, #tpu.memory_space<vmem>>, vector<1x1x649xf32>
    %157 = vector.shape_cast %156 : vector<1x1x649xf32> to vector<1x649xf32>
    %c24_234 = arith.constant 24 : index
    %c0_235 = arith.constant 0 : index
    %158 = vector.load %arg9[%c24_234, %c0_235] : memref<27x649xf32, #tpu.memory_space<vmem>>, vector<1x649xf32>
    tpu.vector_store %arg9[%c24_234, %c0_235], %157 {strides = array<i32>} : memref<27x649xf32, #tpu.memory_space<vmem>>, vector<1x649xf32>,
    %c0_236 = arith.constant 0 : index
    %c2_237 = arith.constant 2 : index
    %c27_238 = arith.constant 27 : index
    %159 = vector.load %arg1[%c0_236, %c2_237, %c27_238] : memref<1x12x676xf32, #tpu.memory_space<vmem>>, vector<1x1x649xf32>
    %160 = vector.shape_cast %159 : vector<1x1x649xf32> to vector<1x649xf32>
    %c25_239 = arith.constant 25 : index
    %c0_240 = arith.constant 0 : index
    %161 = vector.load %arg9[%c25_239, %c0_240] : memref<27x649xf32, #tpu.memory_space<vmem>>, vector<1x649xf32>
    tpu.vector_store %arg9[%c25_239, %c0_240], %160 {strides = array<i32>} : memref<27x649xf32, #tpu.memory_space<vmem>>, vector<1x649xf32>,
    %c0_241 = arith.constant 0 : index
    %c5_242 = arith.constant 5 : index
    %c27_243 = arith.constant 27 : index
    %162 = vector.load %arg1[%c0_241, %c5_242, %c27_243] : memref<1x12x676xf32, #tpu.memory_space<vmem>>, vector<1x1x649xf32>
    %163 = vector.shape_cast %162 : vector<1x1x649xf32> to vector<1x649xf32>
    %c26_244 = arith.constant 26 : index
    %c0_245 = arith.constant 0 : index
    %164 = vector.load %arg9[%c26_244, %c0_245] : memref<27x649xf32, #tpu.memory_space<vmem>>, vector<1x649xf32>
    tpu.vector_store %arg9[%c26_244, %c0_245], %163 {strides = array<i32>} : memref<27x649xf32, #tpu.memory_space<vmem>>, vector<1x649xf32>,
    %c0_246 = arith.constant 0 : index
    %c0_247 = arith.constant 0 : index
    %165 = vector.load %arg2[%c0_246, %c0_247] : memref<18x27xf32, #tpu.memory_space<vmem>>, vector<18x27xf32>
    %c0_248 = arith.constant 0 : index
    %c0_249 = arith.constant 0 : index
    %166 = vector.load %arg9[%c0_248, %c0_249] : memref<27x649xf32, #tpu.memory_space<vmem>>, vector<27x649xf32>
    %cst_250 = arith.constant dense<0.000000e+00> : vector<18x649xf32>
    %167 = tpu.matmul %165, %166, %cst_250 {dimension_numbers = #tpu.dot_dimension_numbers<[1], [0], [0], [1], [0, 0, 1, 1], [], []>} : vector<18x27xf32>, vector<27x649xf32>, vector<18x649xf32> -> vector<18x649xf32>
    %168 = arith.maximumf %83, %167 : vector<18x649xf32>
    %c0_251 = arith.constant 0 : index
    %c6_252 = arith.constant 6 : index
    %c0_253 = arith.constant 0 : index
    %169 = vector.load %arg1[%c0_251, %c6_252, %c0_253] : memref<1x12x676xf32, #tpu.memory_space<vmem>>, vector<1x1x649xf32>
    %170 = vector.shape_cast %169 : vector<1x1x649xf32> to vector<1x649xf32>
    %c0_254 = arith.constant 0 : index
    %c0_255 = arith.constant 0 : index
    %171 = vector.load %arg9[%c0_254, %c0_255] : memref<27x649xf32, #tpu.memory_space<vmem>>, vector<1x649xf32>
    tpu.vector_store %arg9[%c0_254, %c0_255], %170 {strides = array<i32>} : memref<27x649xf32, #tpu.memory_space<vmem>>, vector<1x649xf32>,
    %c0_256 = arith.constant 0 : index
    %c9_257 = arith.constant 9 : index
    %c0_258 = arith.constant 0 : index
    %172 = vector.load %arg1[%c0_256, %c9_257, %c0_258] : memref<1x12x676xf32, #tpu.memory_space<vmem>>, vector<1x1x649xf32>
    %173 = vector.shape_cast %172 : vector<1x1x649xf32> to vector<1x649xf32>
    %c1_259 = arith.constant 1 : index
    %c0_260 = arith.constant 0 : index
    %174 = vector.load %arg9[%c1_259, %c0_260] : memref<27x649xf32, #tpu.memory_space<vmem>>, vector<1x649xf32>
    tpu.vector_store %arg9[%c1_259, %c0_260], %173 {strides = array<i32>} : memref<27x649xf32, #tpu.memory_space<vmem>>, vector<1x649xf32>,
    %c0_261 = arith.constant 0 : index
    %c6_262 = arith.constant 6 : index
    %c1_263 = arith.constant 1 : index
    %175 = vector.load %arg1[%c0_261, %c6_262, %c1_263] : memref<1x12x676xf32, #tpu.memory_space<vmem>>, vector<1x1x649xf32>
    %176 = vector.shape_cast %175 : vector<1x1x649xf32> to vector<1x649xf32>
    %c2_264 = arith.constant 2 : index
    %c0_265 = arith.constant 0 : index
    %177 = vector.load %arg9[%c2_264, %c0_265] : memref<27x649xf32, #tpu.memory_space<vmem>>, vector<1x649xf32>
    tpu.vector_store %arg9[%c2_264, %c0_265], %176 {strides = array<i32>} : memref<27x649xf32, #tpu.memory_space<vmem>>, vector<1x649xf32>,
    %c0_266 = arith.constant 0 : index
    %c0_267 = arith.constant 0 : index
    %c26_268 = arith.constant 26 : index
    %178 = vector.load %arg1[%c0_266, %c0_267, %c26_268] : memref<1x12x676xf32, #tpu.memory_space<vmem>>, vector<1x1x649xf32>
    %179 = vector.shape_cast %178 : vector<1x1x649xf32> to vector<1x649xf32>
    %c3_269 = arith.constant 3 : index
    %c0_270 = arith.constant 0 : index
    %180 = vector.load %arg9[%c3_269, %c0_270] : memref<27x649xf32, #tpu.memory_space<vmem>>, vector<1x649xf32>
    tpu.vector_store %arg9[%c3_269, %c0_270], %179 {strides = array<i32>} : memref<27x649xf32, #tpu.memory_space<vmem>>, vector<1x649xf32>,
    %c0_271 = arith.constant 0 : index
    %c3_272 = arith.constant 3 : index
    %c26_273 = arith.constant 26 : index
    %181 = vector.load %arg1[%c0_271, %c3_272, %c26_273] : memref<1x12x676xf32, #tpu.memory_space<vmem>>, vector<1x1x649xf32>
    %182 = vector.shape_cast %181 : vector<1x1x649xf32> to vector<1x649xf32>
    %c4_274 = arith.constant 4 : index
    %c0_275 = arith.constant 0 : index
    %183 = vector.load %arg9[%c4_274, %c0_275] : memref<27x649xf32, #tpu.memory_space<vmem>>, vector<1x649xf32>
    tpu.vector_store %arg9[%c4_274, %c0_275], %182 {strides = array<i32>} : memref<27x649xf32, #tpu.memory_space<vmem>>, vector<1x649xf32>,
    %c0_276 = arith.constant 0 : index
    %c0_277 = arith.constant 0 : index
    %c27_278 = arith.constant 27 : index
    %184 = vector.load %arg1[%c0_276, %c0_277, %c27_278] : memref<1x12x676xf32, #tpu.memory_space<vmem>>, vector<1x1x649xf32>
    %185 = vector.shape_cast %184 : vector<1x1x649xf32> to vector<1x649xf32>
    %c5_279 = arith.constant 5 : index
    %c0_280 = arith.constant 0 : index
    %186 = vector.load %arg9[%c5_279, %c0_280] : memref<27x649xf32, #tpu.memory_space<vmem>>, vector<1x649xf32>
    tpu.vector_store %arg9[%c5_279, %c0_280], %185 {strides = array<i32>} : memref<27x649xf32, #tpu.memory_space<vmem>>, vector<1x649xf32>,
    %c0_281 = arith.constant 0 : index
    %c6_282 = arith.constant 6 : index
    %c26_283 = arith.constant 26 : index
    %187 = vector.load %arg1[%c0_281, %c6_282, %c26_283] : memref<1x12x676xf32, #tpu.memory_space<vmem>>, vector<1x1x649xf32>
    %188 = vector.shape_cast %187 : vector<1x1x649xf32> to vector<1x649xf32>
    %c6_284 = arith.constant 6 : index
    %c0_285 = arith.constant 0 : index
    %189 = vector.load %arg9[%c6_284, %c0_285] : memref<27x649xf32, #tpu.memory_space<vmem>>, vector<1x649xf32>
    tpu.vector_store %arg9[%c6_284, %c0_285], %188 {strides = array<i32>} : memref<27x649xf32, #tpu.memory_space<vmem>>, vector<1x649xf32>,
    %c0_286 = arith.constant 0 : index
    %c9_287 = arith.constant 9 : index
    %c26_288 = arith.constant 26 : index
    %190 = vector.load %arg1[%c0_286, %c9_287, %c26_288] : memref<1x12x676xf32, #tpu.memory_space<vmem>>, vector<1x1x649xf32>
    %191 = vector.shape_cast %190 : vector<1x1x649xf32> to vector<1x649xf32>
    %c7_289 = arith.constant 7 : index
    %c0_290 = arith.constant 0 : index
    %192 = vector.load %arg9[%c7_289, %c0_290] : memref<27x649xf32, #tpu.memory_space<vmem>>, vector<1x649xf32>
    tpu.vector_store %arg9[%c7_289, %c0_290], %191 {strides = array<i32>} : memref<27x649xf32, #tpu.memory_space<vmem>>, vector<1x649xf32>,
    %c0_291 = arith.constant 0 : index
    %c6_292 = arith.constant 6 : index
    %c27_293 = arith.constant 27 : index
    %193 = vector.load %arg1[%c0_291, %c6_292, %c27_293] : memref<1x12x676xf32, #tpu.memory_space<vmem>>, vector<1x1x649xf32>
    %194 = vector.shape_cast %193 : vector<1x1x649xf32> to vector<1x649xf32>
    %c8_294 = arith.constant 8 : index
    %c0_295 = arith.constant 0 : index
    %195 = vector.load %arg9[%c8_294, %c0_295] : memref<27x649xf32, #tpu.memory_space<vmem>>, vector<1x649xf32>
    tpu.vector_store %arg9[%c8_294, %c0_295], %194 {strides = array<i32>} : memref<27x649xf32, #tpu.memory_space<vmem>>, vector<1x649xf32>,
    %c0_296 = arith.constant 0 : index
    %c7_297 = arith.constant 7 : index
    %c0_298 = arith.constant 0 : index
    %196 = vector.load %arg1[%c0_296, %c7_297, %c0_298] : memref<1x12x676xf32, #tpu.memory_space<vmem>>, vector<1x1x649xf32>
    %197 = vector.shape_cast %196 : vector<1x1x649xf32> to vector<1x649xf32>
    %c9_299 = arith.constant 9 : index
    %c0_300 = arith.constant 0 : index
    %198 = vector.load %arg9[%c9_299, %c0_300] : memref<27x649xf32, #tpu.memory_space<vmem>>, vector<1x649xf32>
    tpu.vector_store %arg9[%c9_299, %c0_300], %197 {strides = array<i32>} : memref<27x649xf32, #tpu.memory_space<vmem>>, vector<1x649xf32>,
    %c0_301 = arith.constant 0 : index
    %c10_302 = arith.constant 10 : index
    %c0_303 = arith.constant 0 : index
    %199 = vector.load %arg1[%c0_301, %c10_302, %c0_303] : memref<1x12x676xf32, #tpu.memory_space<vmem>>, vector<1x1x649xf32>
    %200 = vector.shape_cast %199 : vector<1x1x649xf32> to vector<1x649xf32>
    %c10_304 = arith.constant 10 : index
    %c0_305 = arith.constant 0 : index
    %201 = vector.load %arg9[%c10_304, %c0_305] : memref<27x649xf32, #tpu.memory_space<vmem>>, vector<1x649xf32>
    tpu.vector_store %arg9[%c10_304, %c0_305], %200 {strides = array<i32>} : memref<27x649xf32, #tpu.memory_space<vmem>>, vector<1x649xf32>,
    %c0_306 = arith.constant 0 : index
    %c7_307 = arith.constant 7 : index
    %c1_308 = arith.constant 1 : index
    %202 = vector.load %arg1[%c0_306, %c7_307, %c1_308] : memref<1x12x676xf32, #tpu.memory_space<vmem>>, vector<1x1x649xf32>
    %203 = vector.shape_cast %202 : vector<1x1x649xf32> to vector<1x649xf32>
    %c11_309 = arith.constant 11 : index
    %c0_310 = arith.constant 0 : index
    %204 = vector.load %arg9[%c11_309, %c0_310] : memref<27x649xf32, #tpu.memory_space<vmem>>, vector<1x649xf32>
    tpu.vector_store %arg9[%c11_309, %c0_310], %203 {strides = array<i32>} : memref<27x649xf32, #tpu.memory_space<vmem>>, vector<1x649xf32>,
    %c0_311 = arith.constant 0 : index
    %c1_312 = arith.constant 1 : index
    %c26_313 = arith.constant 26 : index
    %205 = vector.load %arg1[%c0_311, %c1_312, %c26_313] : memref<1x12x676xf32, #tpu.memory_space<vmem>>, vector<1x1x649xf32>
    %206 = vector.shape_cast %205 : vector<1x1x649xf32> to vector<1x649xf32>
    %c12_314 = arith.constant 12 : index
    %c0_315 = arith.constant 0 : index
    %207 = vector.load %arg9[%c12_314, %c0_315] : memref<27x649xf32, #tpu.memory_space<vmem>>, vector<1x649xf32>
    tpu.vector_store %arg9[%c12_314, %c0_315], %206 {strides = array<i32>} : memref<27x649xf32, #tpu.memory_space<vmem>>, vector<1x649xf32>,
    %c0_316 = arith.constant 0 : index
    %c4_317 = arith.constant 4 : index
    %c26_318 = arith.constant 26 : index
    %208 = vector.load %arg1[%c0_316, %c4_317, %c26_318] : memref<1x12x676xf32, #tpu.memory_space<vmem>>, vector<1x1x649xf32>
    %209 = vector.shape_cast %208 : vector<1x1x649xf32> to vector<1x649xf32>
    %c13_319 = arith.constant 13 : index
    %c0_320 = arith.constant 0 : index
    %210 = vector.load %arg9[%c13_319, %c0_320] : memref<27x649xf32, #tpu.memory_space<vmem>>, vector<1x649xf32>
    tpu.vector_store %arg9[%c13_319, %c0_320], %209 {strides = array<i32>} : memref<27x649xf32, #tpu.memory_space<vmem>>, vector<1x649xf32>,
    %c0_321 = arith.constant 0 : index
    %c1_322 = arith.constant 1 : index
    %c27_323 = arith.constant 27 : index
    %211 = vector.load %arg1[%c0_321, %c1_322, %c27_323] : memref<1x12x676xf32, #tpu.memory_space<vmem>>, vector<1x1x649xf32>
    %212 = vector.shape_cast %211 : vector<1x1x649xf32> to vector<1x649xf32>
    %c14_324 = arith.constant 14 : index
    %c0_325 = arith.constant 0 : index
    %213 = vector.load %arg9[%c14_324, %c0_325] : memref<27x649xf32, #tpu.memory_space<vmem>>, vector<1x649xf32>
    tpu.vector_store %arg9[%c14_324, %c0_325], %212 {strides = array<i32>} : memref<27x649xf32, #tpu.memory_space<vmem>>, vector<1x649xf32>,
    %c0_326 = arith.constant 0 : index
    %c7_327 = arith.constant 7 : index
    %c26_328 = arith.constant 26 : index
    %214 = vector.load %arg1[%c0_326, %c7_327, %c26_328] : memref<1x12x676xf32, #tpu.memory_space<vmem>>, vector<1x1x649xf32>
    %215 = vector.shape_cast %214 : vector<1x1x649xf32> to vector<1x649xf32>
    %c15_329 = arith.constant 15 : index
    %c0_330 = arith.constant 0 : index
    %216 = vector.load %arg9[%c15_329, %c0_330] : memref<27x649xf32, #tpu.memory_space<vmem>>, vector<1x649xf32>
    tpu.vector_store %arg9[%c15_329, %c0_330], %215 {strides = array<i32>} : memref<27x649xf32, #tpu.memory_space<vmem>>, vector<1x649xf32>,
    %c0_331 = arith.constant 0 : index
    %c10_332 = arith.constant 10 : index
    %c26_333 = arith.constant 26 : index
    %217 = vector.load %arg1[%c0_331, %c10_332, %c26_333] : memref<1x12x676xf32, #tpu.memory_space<vmem>>, vector<1x1x649xf32>
    %218 = vector.shape_cast %217 : vector<1x1x649xf32> to vector<1x649xf32>
    %c16_334 = arith.constant 16 : index
    %c0_335 = arith.constant 0 : index
    %219 = vector.load %arg9[%c16_334, %c0_335] : memref<27x649xf32, #tpu.memory_space<vmem>>, vector<1x649xf32>
    tpu.vector_store %arg9[%c16_334, %c0_335], %218 {strides = array<i32>} : memref<27x649xf32, #tpu.memory_space<vmem>>, vector<1x649xf32>,
    %c0_336 = arith.constant 0 : index
    %c7_337 = arith.constant 7 : index
    %c27_338 = arith.constant 27 : index
    %220 = vector.load %arg1[%c0_336, %c7_337, %c27_338] : memref<1x12x676xf32, #tpu.memory_space<vmem>>, vector<1x1x649xf32>
    %221 = vector.shape_cast %220 : vector<1x1x649xf32> to vector<1x649xf32>
    %c17_339 = arith.constant 17 : index
    %c0_340 = arith.constant 0 : index
    %222 = vector.load %arg9[%c17_339, %c0_340] : memref<27x649xf32, #tpu.memory_space<vmem>>, vector<1x649xf32>
    tpu.vector_store %arg9[%c17_339, %c0_340], %221 {strides = array<i32>} : memref<27x649xf32, #tpu.memory_space<vmem>>, vector<1x649xf32>,
    %c0_341 = arith.constant 0 : index
    %c8_342 = arith.constant 8 : index
    %c0_343 = arith.constant 0 : index
    %223 = vector.load %arg1[%c0_341, %c8_342, %c0_343] : memref<1x12x676xf32, #tpu.memory_space<vmem>>, vector<1x1x649xf32>
    %224 = vector.shape_cast %223 : vector<1x1x649xf32> to vector<1x649xf32>
    %c18_344 = arith.constant 18 : index
    %c0_345 = arith.constant 0 : index
    %225 = vector.load %arg9[%c18_344, %c0_345] : memref<27x649xf32, #tpu.memory_space<vmem>>, vector<1x649xf32>
    tpu.vector_store %arg9[%c18_344, %c0_345], %224 {strides = array<i32>} : memref<27x649xf32, #tpu.memory_space<vmem>>, vector<1x649xf32>,
    %c0_346 = arith.constant 0 : index
    %c11_347 = arith.constant 11 : index
    %c0_348 = arith.constant 0 : index
    %226 = vector.load %arg1[%c0_346, %c11_347, %c0_348] : memref<1x12x676xf32, #tpu.memory_space<vmem>>, vector<1x1x649xf32>
    %227 = vector.shape_cast %226 : vector<1x1x649xf32> to vector<1x649xf32>
    %c19_349 = arith.constant 19 : index
    %c0_350 = arith.constant 0 : index
    %228 = vector.load %arg9[%c19_349, %c0_350] : memref<27x649xf32, #tpu.memory_space<vmem>>, vector<1x649xf32>
    tpu.vector_store %arg9[%c19_349, %c0_350], %227 {strides = array<i32>} : memref<27x649xf32, #tpu.memory_space<vmem>>, vector<1x649xf32>,
    %c0_351 = arith.constant 0 : index
    %c8_352 = arith.constant 8 : index
    %c1_353 = arith.constant 1 : index
    %229 = vector.load %arg1[%c0_351, %c8_352, %c1_353] : memref<1x12x676xf32, #tpu.memory_space<vmem>>, vector<1x1x649xf32>
    %230 = vector.shape_cast %229 : vector<1x1x649xf32> to vector<1x649xf32>
    %c20_354 = arith.constant 20 : index
    %c0_355 = arith.constant 0 : index
    %231 = vector.load %arg9[%c20_354, %c0_355] : memref<27x649xf32, #tpu.memory_space<vmem>>, vector<1x649xf32>
    tpu.vector_store %arg9[%c20_354, %c0_355], %230 {strides = array<i32>} : memref<27x649xf32, #tpu.memory_space<vmem>>, vector<1x649xf32>,
    %c0_356 = arith.constant 0 : index
    %c2_357 = arith.constant 2 : index
    %c26_358 = arith.constant 26 : index
    %232 = vector.load %arg1[%c0_356, %c2_357, %c26_358] : memref<1x12x676xf32, #tpu.memory_space<vmem>>, vector<1x1x649xf32>
    %233 = vector.shape_cast %232 : vector<1x1x649xf32> to vector<1x649xf32>
    %c21_359 = arith.constant 21 : index
    %c0_360 = arith.constant 0 : index
    %234 = vector.load %arg9[%c21_359, %c0_360] : memref<27x649xf32, #tpu.memory_space<vmem>>, vector<1x649xf32>
    tpu.vector_store %arg9[%c21_359, %c0_360], %233 {strides = array<i32>} : memref<27x649xf32, #tpu.memory_space<vmem>>, vector<1x649xf32>,
    %c0_361 = arith.constant 0 : index
    %c5_362 = arith.constant 5 : index
    %c26_363 = arith.constant 26 : index
    %235 = vector.load %arg1[%c0_361, %c5_362, %c26_363] : memref<1x12x676xf32, #tpu.memory_space<vmem>>, vector<1x1x649xf32>
    %236 = vector.shape_cast %235 : vector<1x1x649xf32> to vector<1x649xf32>
    %c22_364 = arith.constant 22 : index
    %c0_365 = arith.constant 0 : index
    %237 = vector.load %arg9[%c22_364, %c0_365] : memref<27x649xf32, #tpu.memory_space<vmem>>, vector<1x649xf32>
    tpu.vector_store %arg9[%c22_364, %c0_365], %236 {strides = array<i32>} : memref<27x649xf32, #tpu.memory_space<vmem>>, vector<1x649xf32>,
    %c0_366 = arith.constant 0 : index
    %c2_367 = arith.constant 2 : index
    %c27_368 = arith.constant 27 : index
    %238 = vector.load %arg1[%c0_366, %c2_367, %c27_368] : memref<1x12x676xf32, #tpu.memory_space<vmem>>, vector<1x1x649xf32>
    %239 = vector.shape_cast %238 : vector<1x1x649xf32> to vector<1x649xf32>
    %c23_369 = arith.constant 23 : index
    %c0_370 = arith.constant 0 : index
    %240 = vector.load %arg9[%c23_369, %c0_370] : memref<27x649xf32, #tpu.memory_space<vmem>>, vector<1x649xf32>
    tpu.vector_store %arg9[%c23_369, %c0_370], %239 {strides = array<i32>} : memref<27x649xf32, #tpu.memory_space<vmem>>, vector<1x649xf32>,
    %c0_371 = arith.constant 0 : index
    %c8_372 = arith.constant 8 : index
    %c26_373 = arith.constant 26 : index
    %241 = vector.load %arg1[%c0_371, %c8_372, %c26_373] : memref<1x12x676xf32, #tpu.memory_space<vmem>>, vector<1x1x649xf32>
    %242 = vector.shape_cast %241 : vector<1x1x649xf32> to vector<1x649xf32>
    %c24_374 = arith.constant 24 : index
    %c0_375 = arith.constant 0 : index
    %243 = vector.load %arg9[%c24_374, %c0_375] : memref<27x649xf32, #tpu.memory_space<vmem>>, vector<1x649xf32>
    tpu.vector_store %arg9[%c24_374, %c0_375], %242 {strides = array<i32>} : memref<27x649xf32, #tpu.memory_space<vmem>>, vector<1x649xf32>,
    %c0_376 = arith.constant 0 : index
    %c11_377 = arith.constant 11 : index
    %c26_378 = arith.constant 26 : index
    %244 = vector.load %arg1[%c0_376, %c11_377, %c26_378] : memref<1x12x676xf32, #tpu.memory_space<vmem>>, vector<1x1x649xf32>
    %245 = vector.shape_cast %244 : vector<1x1x649xf32> to vector<1x649xf32>
    %c25_379 = arith.constant 25 : index
    %c0_380 = arith.constant 0 : index
    %246 = vector.load %arg9[%c25_379, %c0_380] : memref<27x649xf32, #tpu.memory_space<vmem>>, vector<1x649xf32>
    tpu.vector_store %arg9[%c25_379, %c0_380], %245 {strides = array<i32>} : memref<27x649xf32, #tpu.memory_space<vmem>>, vector<1x649xf32>,
    %c0_381 = arith.constant 0 : index
    %c8_382 = arith.constant 8 : index
    %c27_383 = arith.constant 27 : index
    %247 = vector.load %arg1[%c0_381, %c8_382, %c27_383] : memref<1x12x676xf32, #tpu.memory_space<vmem>>, vector<1x1x649xf32>
    %248 = vector.shape_cast %247 : vector<1x1x649xf32> to vector<1x649xf32>
    %c26_384 = arith.constant 26 : index
    %c0_385 = arith.constant 0 : index
    %249 = vector.load %arg9[%c26_384, %c0_385] : memref<27x649xf32, #tpu.memory_space<vmem>>, vector<1x649xf32>
    tpu.vector_store %arg9[%c26_384, %c0_385], %248 {strides = array<i32>} : memref<27x649xf32, #tpu.memory_space<vmem>>, vector<1x649xf32>,
    %c0_386 = arith.constant 0 : index
    %c0_387 = arith.constant 0 : index
    %250 = vector.load %arg2[%c0_386, %c0_387] : memref<18x27xf32, #tpu.memory_space<vmem>>, vector<18x27xf32>
    %c0_388 = arith.constant 0 : index
    %c0_389 = arith.constant 0 : index
    %251 = vector.load %arg9[%c0_388, %c0_389] : memref<27x649xf32, #tpu.memory_space<vmem>>, vector<27x649xf32>
    %cst_390 = arith.constant dense<0.000000e+00> : vector<18x649xf32>
    %252 = tpu.matmul %250, %251, %cst_390 {dimension_numbers = #tpu.dot_dimension_numbers<[1], [0], [0], [1], [0, 0, 1, 1], [], []>} : vector<18x27xf32>, vector<27x649xf32>, vector<18x649xf32> -> vector<18x649xf32>
    %253 = arith.maximumf %168, %252 : vector<18x649xf32>
    %c0_391 = arith.constant 0 : index
    %c9_392 = arith.constant 9 : index
    %c0_393 = arith.constant 0 : index
    %254 = vector.load %arg1[%c0_391, %c9_392, %c0_393] : memref<1x12x676xf32, #tpu.memory_space<vmem>>, vector<1x1x649xf32>
    %255 = vector.shape_cast %254 : vector<1x1x649xf32> to vector<1x649xf32>
    %c0_394 = arith.constant 0 : index
    %c0_395 = arith.constant 0 : index
    %256 = vector.load %arg9[%c0_394, %c0_395] : memref<27x649xf32, #tpu.memory_space<vmem>>, vector<1x649xf32>
    tpu.vector_store %arg9[%c0_394, %c0_395], %255 {strides = array<i32>} : memref<27x649xf32, #tpu.memory_space<vmem>>, vector<1x649xf32>,
    %c0_396 = arith.constant 0 : index
    %c6_397 = arith.constant 6 : index
    %c1_398 = arith.constant 1 : index
    %257 = vector.load %arg1[%c0_396, %c6_397, %c1_398] : memref<1x12x676xf32, #tpu.memory_space<vmem>>, vector<1x1x649xf32>
    %258 = vector.shape_cast %257 : vector<1x1x649xf32> to vector<1x649xf32>
    %c1_399 = arith.constant 1 : index
    %c0_400 = arith.constant 0 : index
    %259 = vector.load %arg9[%c1_399, %c0_400] : memref<27x649xf32, #tpu.memory_space<vmem>>, vector<1x649xf32>
    tpu.vector_store %arg9[%c1_399, %c0_400], %258 {strides = array<i32>} : memref<27x649xf32, #tpu.memory_space<vmem>>, vector<1x649xf32>,
    %c0_401 = arith.constant 0 : index
    %c9_402 = arith.constant 9 : index
    %c1_403 = arith.constant 1 : index
    %260 = vector.load %arg1[%c0_401, %c9_402, %c1_403] : memref<1x12x676xf32, #tpu.memory_space<vmem>>, vector<1x1x649xf32>
    %261 = vector.shape_cast %260 : vector<1x1x649xf32> to vector<1x649xf32>
    %c2_404 = arith.constant 2 : index
    %c0_405 = arith.constant 0 : index
    %262 = vector.load %arg9[%c2_404, %c0_405] : memref<27x649xf32, #tpu.memory_space<vmem>>, vector<1x649xf32>
    tpu.vector_store %arg9[%c2_404, %c0_405], %261 {strides = array<i32>} : memref<27x649xf32, #tpu.memory_space<vmem>>, vector<1x649xf32>,
    %c0_406 = arith.constant 0 : index
    %c3_407 = arith.constant 3 : index
    %c26_408 = arith.constant 26 : index
    %263 = vector.load %arg1[%c0_406, %c3_407, %c26_408] : memref<1x12x676xf32, #tpu.memory_space<vmem>>, vector<1x1x649xf32>
    %264 = vector.shape_cast %263 : vector<1x1x649xf32> to vector<1x649xf32>
    %c3_409 = arith.constant 3 : index
    %c0_410 = arith.constant 0 : index
    %265 = vector.load %arg9[%c3_409, %c0_410] : memref<27x649xf32, #tpu.memory_space<vmem>>, vector<1x649xf32>
    tpu.vector_store %arg9[%c3_409, %c0_410], %264 {strides = array<i32>} : memref<27x649xf32, #tpu.memory_space<vmem>>, vector<1x649xf32>,
    %c0_411 = arith.constant 0 : index
    %c0_412 = arith.constant 0 : index
    %c27_413 = arith.constant 27 : index
    %266 = vector.load %arg1[%c0_411, %c0_412, %c27_413] : memref<1x12x676xf32, #tpu.memory_space<vmem>>, vector<1x1x649xf32>
    %267 = vector.shape_cast %266 : vector<1x1x649xf32> to vector<1x649xf32>
    %c4_414 = arith.constant 4 : index
    %c0_415 = arith.constant 0 : index
    %268 = vector.load %arg9[%c4_414, %c0_415] : memref<27x649xf32, #tpu.memory_space<vmem>>, vector<1x649xf32>
    tpu.vector_store %arg9[%c4_414, %c0_415], %267 {strides = array<i32>} : memref<27x649xf32, #tpu.memory_space<vmem>>, vector<1x649xf32>,
    %c0_416 = arith.constant 0 : index
    %c3_417 = arith.constant 3 : index
    %c27_418 = arith.constant 27 : index
    %269 = vector.load %arg1[%c0_416, %c3_417, %c27_418] : memref<1x12x676xf32, #tpu.memory_space<vmem>>, vector<1x1x649xf32>
    %270 = vector.shape_cast %269 : vector<1x1x649xf32> to vector<1x649xf32>
    %c5_419 = arith.constant 5 : index
    %c0_420 = arith.constant 0 : index
    %271 = vector.load %arg9[%c5_419, %c0_420] : memref<27x649xf32, #tpu.memory_space<vmem>>, vector<1x649xf32>
    tpu.vector_store %arg9[%c5_419, %c0_420], %270 {strides = array<i32>} : memref<27x649xf32, #tpu.memory_space<vmem>>, vector<1x649xf32>,
    %c0_421 = arith.constant 0 : index
    %c9_422 = arith.constant 9 : index
    %c26_423 = arith.constant 26 : index
    %272 = vector.load %arg1[%c0_421, %c9_422, %c26_423] : memref<1x12x676xf32, #tpu.memory_space<vmem>>, vector<1x1x649xf32>
    %273 = vector.shape_cast %272 : vector<1x1x649xf32> to vector<1x649xf32>
    %c6_424 = arith.constant 6 : index
    %c0_425 = arith.constant 0 : index
    %274 = vector.load %arg9[%c6_424, %c0_425] : memref<27x649xf32, #tpu.memory_space<vmem>>, vector<1x649xf32>
    tpu.vector_store %arg9[%c6_424, %c0_425], %273 {strides = array<i32>} : memref<27x649xf32, #tpu.memory_space<vmem>>, vector<1x649xf32>,
    %c0_426 = arith.constant 0 : index
    %c6_427 = arith.constant 6 : index
    %c27_428 = arith.constant 27 : index
    %275 = vector.load %arg1[%c0_426, %c6_427, %c27_428] : memref<1x12x676xf32, #tpu.memory_space<vmem>>, vector<1x1x649xf32>
    %276 = vector.shape_cast %275 : vector<1x1x649xf32> to vector<1x649xf32>
    %c7_429 = arith.constant 7 : index
    %c0_430 = arith.constant 0 : index
    %277 = vector.load %arg9[%c7_429, %c0_430] : memref<27x649xf32, #tpu.memory_space<vmem>>, vector<1x649xf32>
    tpu.vector_store %arg9[%c7_429, %c0_430], %276 {strides = array<i32>} : memref<27x649xf32, #tpu.memory_space<vmem>>, vector<1x649xf32>,
    %c0_431 = arith.constant 0 : index
    %c9_432 = arith.constant 9 : index
    %c27_433 = arith.constant 27 : index
    %278 = vector.load %arg1[%c0_431, %c9_432, %c27_433] : memref<1x12x676xf32, #tpu.memory_space<vmem>>, vector<1x1x649xf32>
    %279 = vector.shape_cast %278 : vector<1x1x649xf32> to vector<1x649xf32>
    %c8_434 = arith.constant 8 : index
    %c0_435 = arith.constant 0 : index
    %280 = vector.load %arg9[%c8_434, %c0_435] : memref<27x649xf32, #tpu.memory_space<vmem>>, vector<1x649xf32>
    tpu.vector_store %arg9[%c8_434, %c0_435], %279 {strides = array<i32>} : memref<27x649xf32, #tpu.memory_space<vmem>>, vector<1x649xf32>,
    %c0_436 = arith.constant 0 : index
    %c10_437 = arith.constant 10 : index
    %c0_438 = arith.constant 0 : index
    %281 = vector.load %arg1[%c0_436, %c10_437, %c0_438] : memref<1x12x676xf32, #tpu.memory_space<vmem>>, vector<1x1x649xf32>
    %282 = vector.shape_cast %281 : vector<1x1x649xf32> to vector<1x649xf32>
    %c9_439 = arith.constant 9 : index
    %c0_440 = arith.constant 0 : index
    %283 = vector.load %arg9[%c9_439, %c0_440] : memref<27x649xf32, #tpu.memory_space<vmem>>, vector<1x649xf32>
    tpu.vector_store %arg9[%c9_439, %c0_440], %282 {strides = array<i32>} : memref<27x649xf32, #tpu.memory_space<vmem>>, vector<1x649xf32>,
    %c0_441 = arith.constant 0 : index
    %c7_442 = arith.constant 7 : index
    %c1_443 = arith.constant 1 : index
    %284 = vector.load %arg1[%c0_441, %c7_442, %c1_443] : memref<1x12x676xf32, #tpu.memory_space<vmem>>, vector<1x1x649xf32>
    %285 = vector.shape_cast %284 : vector<1x1x649xf32> to vector<1x649xf32>
    %c10_444 = arith.constant 10 : index
    %c0_445 = arith.constant 0 : index
    %286 = vector.load %arg9[%c10_444, %c0_445] : memref<27x649xf32, #tpu.memory_space<vmem>>, vector<1x649xf32>
    tpu.vector_store %arg9[%c10_444, %c0_445], %285 {strides = array<i32>} : memref<27x649xf32, #tpu.memory_space<vmem>>, vector<1x649xf32>,
    %c0_446 = arith.constant 0 : index
    %c10_447 = arith.constant 10 : index
    %c1_448 = arith.constant 1 : index
    %287 = vector.load %arg1[%c0_446, %c10_447, %c1_448] : memref<1x12x676xf32, #tpu.memory_space<vmem>>, vector<1x1x649xf32>
    %288 = vector.shape_cast %287 : vector<1x1x649xf32> to vector<1x649xf32>
    %c11_449 = arith.constant 11 : index
    %c0_450 = arith.constant 0 : index
    %289 = vector.load %arg9[%c11_449, %c0_450] : memref<27x649xf32, #tpu.memory_space<vmem>>, vector<1x649xf32>
    tpu.vector_store %arg9[%c11_449, %c0_450], %288 {strides = array<i32>} : memref<27x649xf32, #tpu.memory_space<vmem>>, vector<1x649xf32>,
    %c0_451 = arith.constant 0 : index
    %c4_452 = arith.constant 4 : index
    %c26_453 = arith.constant 26 : index
    %290 = vector.load %arg1[%c0_451, %c4_452, %c26_453] : memref<1x12x676xf32, #tpu.memory_space<vmem>>, vector<1x1x649xf32>
    %291 = vector.shape_cast %290 : vector<1x1x649xf32> to vector<1x649xf32>
    %c12_454 = arith.constant 12 : index
    %c0_455 = arith.constant 0 : index
    %292 = vector.load %arg9[%c12_454, %c0_455] : memref<27x649xf32, #tpu.memory_space<vmem>>, vector<1x649xf32>
    tpu.vector_store %arg9[%c12_454, %c0_455], %291 {strides = array<i32>} : memref<27x649xf32, #tpu.memory_space<vmem>>, vector<1x649xf32>,
    %c0_456 = arith.constant 0 : index
    %c1_457 = arith.constant 1 : index
    %c27_458 = arith.constant 27 : index
    %293 = vector.load %arg1[%c0_456, %c1_457, %c27_458] : memref<1x12x676xf32, #tpu.memory_space<vmem>>, vector<1x1x649xf32>
    %294 = vector.shape_cast %293 : vector<1x1x649xf32> to vector<1x649xf32>
    %c13_459 = arith.constant 13 : index
    %c0_460 = arith.constant 0 : index
    %295 = vector.load %arg9[%c13_459, %c0_460] : memref<27x649xf32, #tpu.memory_space<vmem>>, vector<1x649xf32>
    tpu.vector_store %arg9[%c13_459, %c0_460], %294 {strides = array<i32>} : memref<27x649xf32, #tpu.memory_space<vmem>>, vector<1x649xf32>,
    %c0_461 = arith.constant 0 : index
    %c4_462 = arith.constant 4 : index
    %c27_463 = arith.constant 27 : index
    %296 = vector.load %arg1[%c0_461, %c4_462, %c27_463] : memref<1x12x676xf32, #tpu.memory_space<vmem>>, vector<1x1x649xf32>
    %297 = vector.shape_cast %296 : vector<1x1x649xf32> to vector<1x649xf32>
    %c14_464 = arith.constant 14 : index
    %c0_465 = arith.constant 0 : index
    %298 = vector.load %arg9[%c14_464, %c0_465] : memref<27x649xf32, #tpu.memory_space<vmem>>, vector<1x649xf32>
    tpu.vector_store %arg9[%c14_464, %c0_465], %297 {strides = array<i32>} : memref<27x649xf32, #tpu.memory_space<vmem>>, vector<1x649xf32>,
    %c0_466 = arith.constant 0 : index
    %c10_467 = arith.constant 10 : index
    %c26_468 = arith.constant 26 : index
    %299 = vector.load %arg1[%c0_466, %c10_467, %c26_468] : memref<1x12x676xf32, #tpu.memory_space<vmem>>, vector<1x1x649xf32>
    %300 = vector.shape_cast %299 : vector<1x1x649xf32> to vector<1x649xf32>
    %c15_469 = arith.constant 15 : index
    %c0_470 = arith.constant 0 : index
    %301 = vector.load %arg9[%c15_469, %c0_470] : memref<27x649xf32, #tpu.memory_space<vmem>>, vector<1x649xf32>
    tpu.vector_store %arg9[%c15_469, %c0_470], %300 {strides = array<i32>} : memref<27x649xf32, #tpu.memory_space<vmem>>, vector<1x649xf32>,
    %c0_471 = arith.constant 0 : index
    %c7_472 = arith.constant 7 : index
    %c27_473 = arith.constant 27 : index
    %302 = vector.load %arg1[%c0_471, %c7_472, %c27_473] : memref<1x12x676xf32, #tpu.memory_space<vmem>>, vector<1x1x649xf32>
    %303 = vector.shape_cast %302 : vector<1x1x649xf32> to vector<1x649xf32>
    %c16_474 = arith.constant 16 : index
    %c0_475 = arith.constant 0 : index
    %304 = vector.load %arg9[%c16_474, %c0_475] : memref<27x649xf32, #tpu.memory_space<vmem>>, vector<1x649xf32>
    tpu.vector_store %arg9[%c16_474, %c0_475], %303 {strides = array<i32>} : memref<27x649xf32, #tpu.memory_space<vmem>>, vector<1x649xf32>,
    %c0_476 = arith.constant 0 : index
    %c10_477 = arith.constant 10 : index
    %c27_478 = arith.constant 27 : index
    %305 = vector.load %arg1[%c0_476, %c10_477, %c27_478] : memref<1x12x676xf32, #tpu.memory_space<vmem>>, vector<1x1x649xf32>
    %306 = vector.shape_cast %305 : vector<1x1x649xf32> to vector<1x649xf32>
    %c17_479 = arith.constant 17 : index
    %c0_480 = arith.constant 0 : index
    %307 = vector.load %arg9[%c17_479, %c0_480] : memref<27x649xf32, #tpu.memory_space<vmem>>, vector<1x649xf32>
    tpu.vector_store %arg9[%c17_479, %c0_480], %306 {strides = array<i32>} : memref<27x649xf32, #tpu.memory_space<vmem>>, vector<1x649xf32>,
    %c0_481 = arith.constant 0 : index
    %c11_482 = arith.constant 11 : index
    %c0_483 = arith.constant 0 : index
    %308 = vector.load %arg1[%c0_481, %c11_482, %c0_483] : memref<1x12x676xf32, #tpu.memory_space<vmem>>, vector<1x1x649xf32>
    %309 = vector.shape_cast %308 : vector<1x1x649xf32> to vector<1x649xf32>
    %c18_484 = arith.constant 18 : index
    %c0_485 = arith.constant 0 : index
    %310 = vector.load %arg9[%c18_484, %c0_485] : memref<27x649xf32, #tpu.memory_space<vmem>>, vector<1x649xf32>
    tpu.vector_store %arg9[%c18_484, %c0_485], %309 {strides = array<i32>} : memref<27x649xf32, #tpu.memory_space<vmem>>, vector<1x649xf32>,
    %c0_486 = arith.constant 0 : index
    %c8_487 = arith.constant 8 : index
    %c1_488 = arith.constant 1 : index
    %311 = vector.load %arg1[%c0_486, %c8_487, %c1_488] : memref<1x12x676xf32, #tpu.memory_space<vmem>>, vector<1x1x649xf32>
    %312 = vector.shape_cast %311 : vector<1x1x649xf32> to vector<1x649xf32>
    %c19_489 = arith.constant 19 : index
    %c0_490 = arith.constant 0 : index
    %313 = vector.load %arg9[%c19_489, %c0_490] : memref<27x649xf32, #tpu.memory_space<vmem>>, vector<1x649xf32>
    tpu.vector_store %arg9[%c19_489, %c0_490], %312 {strides = array<i32>} : memref<27x649xf32, #tpu.memory_space<vmem>>, vector<1x649xf32>,
    %c0_491 = arith.constant 0 : index
    %c11_492 = arith.constant 11 : index
    %c1_493 = arith.constant 1 : index
    %314 = vector.load %arg1[%c0_491, %c11_492, %c1_493] : memref<1x12x676xf32, #tpu.memory_space<vmem>>, vector<1x1x649xf32>
    %315 = vector.shape_cast %314 : vector<1x1x649xf32> to vector<1x649xf32>
    %c20_494 = arith.constant 20 : index
    %c0_495 = arith.constant 0 : index
    %316 = vector.load %arg9[%c20_494, %c0_495] : memref<27x649xf32, #tpu.memory_space<vmem>>, vector<1x649xf32>
    tpu.vector_store %arg9[%c20_494, %c0_495], %315 {strides = array<i32>} : memref<27x649xf32, #tpu.memory_space<vmem>>, vector<1x649xf32>,
    %c0_496 = arith.constant 0 : index
    %c5_497 = arith.constant 5 : index
    %c26_498 = arith.constant 26 : index
    %317 = vector.load %arg1[%c0_496, %c5_497, %c26_498] : memref<1x12x676xf32, #tpu.memory_space<vmem>>, vector<1x1x649xf32>
    %318 = vector.shape_cast %317 : vector<1x1x649xf32> to vector<1x649xf32>
    %c21_499 = arith.constant 21 : index
    %c0_500 = arith.constant 0 : index
    %319 = vector.load %arg9[%c21_499, %c0_500] : memref<27x649xf32, #tpu.memory_space<vmem>>, vector<1x649xf32>
    tpu.vector_store %arg9[%c21_499, %c0_500], %318 {strides = array<i32>} : memref<27x649xf32, #tpu.memory_space<vmem>>, vector<1x649xf32>,
    %c0_501 = arith.constant 0 : index
    %c2_502 = arith.constant 2 : index
    %c27_503 = arith.constant 27 : index
    %320 = vector.load %arg1[%c0_501, %c2_502, %c27_503] : memref<1x12x676xf32, #tpu.memory_space<vmem>>, vector<1x1x649xf32>
    %321 = vector.shape_cast %320 : vector<1x1x649xf32> to vector<1x649xf32>
    %c22_504 = arith.constant 22 : index
    %c0_505 = arith.constant 0 : index
    %322 = vector.load %arg9[%c22_504, %c0_505] : memref<27x649xf32, #tpu.memory_space<vmem>>, vector<1x649xf32>
    tpu.vector_store %arg9[%c22_504, %c0_505], %321 {strides = array<i32>} : memref<27x649xf32, #tpu.memory_space<vmem>>, vector<1x649xf32>,
    %c0_506 = arith.constant 0 : index
    %c5_507 = arith.constant 5 : index
    %c27_508 = arith.constant 27 : index
    %323 = vector.load %arg1[%c0_506, %c5_507, %c27_508] : memref<1x12x676xf32, #tpu.memory_space<vmem>>, vector<1x1x649xf32>
    %324 = vector.shape_cast %323 : vector<1x1x649xf32> to vector<1x649xf32>
    %c23_509 = arith.constant 23 : index
    %c0_510 = arith.constant 0 : index
    %325 = vector.load %arg9[%c23_509, %c0_510] : memref<27x649xf32, #tpu.memory_space<vmem>>, vector<1x649xf32>
    tpu.vector_store %arg9[%c23_509, %c0_510], %324 {strides = array<i32>} : memref<27x649xf32, #tpu.memory_space<vmem>>, vector<1x649xf32>,
    %c0_511 = arith.constant 0 : index
    %c11_512 = arith.constant 11 : index
    %c26_513 = arith.constant 26 : index
    %326 = vector.load %arg1[%c0_511, %c11_512, %c26_513] : memref<1x12x676xf32, #tpu.memory_space<vmem>>, vector<1x1x649xf32>
    %327 = vector.shape_cast %326 : vector<1x1x649xf32> to vector<1x649xf32>
    %c24_514 = arith.constant 24 : index
    %c0_515 = arith.constant 0 : index
    %328 = vector.load %arg9[%c24_514, %c0_515] : memref<27x649xf32, #tpu.memory_space<vmem>>, vector<1x649xf32>
    tpu.vector_store %arg9[%c24_514, %c0_515], %327 {strides = array<i32>} : memref<27x649xf32, #tpu.memory_space<vmem>>, vector<1x649xf32>,
    %c0_516 = arith.constant 0 : index
    %c8_517 = arith.constant 8 : index
    %c27_518 = arith.constant 27 : index
    %329 = vector.load %arg1[%c0_516, %c8_517, %c27_518] : memref<1x12x676xf32, #tpu.memory_space<vmem>>, vector<1x1x649xf32>
    %330 = vector.shape_cast %329 : vector<1x1x649xf32> to vector<1x649xf32>
    %c25_519 = arith.constant 25 : index
    %c0_520 = arith.constant 0 : index
    %331 = vector.load %arg9[%c25_519, %c0_520] : memref<27x649xf32, #tpu.memory_space<vmem>>, vector<1x649xf32>
    tpu.vector_store %arg9[%c25_519, %c0_520], %330 {strides = array<i32>} : memref<27x649xf32, #tpu.memory_space<vmem>>, vector<1x649xf32>,
    %c0_521 = arith.constant 0 : index
    %c11_522 = arith.constant 11 : index
    %c27_523 = arith.constant 27 : index
    %332 = vector.load %arg1[%c0_521, %c11_522, %c27_523] : memref<1x12x676xf32, #tpu.memory_space<vmem>>, vector<1x1x649xf32>
    %333 = vector.shape_cast %332 : vector<1x1x649xf32> to vector<1x649xf32>
    %c26_524 = arith.constant 26 : index
    %c0_525 = arith.constant 0 : index
    %334 = vector.load %arg9[%c26_524, %c0_525] : memref<27x649xf32, #tpu.memory_space<vmem>>, vector<1x649xf32>
    tpu.vector_store %arg9[%c26_524, %c0_525], %333 {strides = array<i32>} : memref<27x649xf32, #tpu.memory_space<vmem>>, vector<1x649xf32>,
    %c0_526 = arith.constant 0 : index
    %c0_527 = arith.constant 0 : index
    %335 = vector.load %arg2[%c0_526, %c0_527] : memref<18x27xf32, #tpu.memory_space<vmem>>, vector<18x27xf32>
    %c0_528 = arith.constant 0 : index
    %c0_529 = arith.constant 0 : index
    %336 = vector.load %arg9[%c0_528, %c0_529] : memref<27x649xf32, #tpu.memory_space<vmem>>, vector<27x649xf32>
    %cst_530 = arith.constant dense<0.000000e+00> : vector<18x649xf32>
    %337 = tpu.matmul %335, %336, %cst_530 {dimension_numbers = #tpu.dot_dimension_numbers<[1], [0], [0], [1], [0, 0, 1, 1], [], []>} : vector<18x27xf32>, vector<27x649xf32>, vector<18x649xf32> -> vector<18x649xf32>
    %338 = arith.maximumf %253, %337 : vector<18x649xf32>
    %c0_531 = arith.constant 0 : index
    %c0_532 = arith.constant 0 : index
    %339 = vector.load %arg3[%c0_531, %c0_532] : memref<18x1xf32, #tpu.memory_space<vmem>>, vector<18x1xf32>
    %340 = vector.broadcast %339 : vector<18x1xf32> to vector<18x649xf32>
    %341 = arith.addf %338, %340 : vector<18x649xf32>
    %cst_533 = arith.constant 0.000000e+00 : f32
    %342 = vector.broadcast %cst_533 : f32 to vector<18x649xf32>
    %343 = arith.maximumf %341, %342 : vector<18x649xf32>
    %c0_534 = arith.constant 0 : index
    %c0_535 = arith.constant 0 : index
    %344 = vector.load %arg4[%c0_534, %c0_535] : memref<649x1152xf32, #tpu.memory_space<vmem>>, vector<649x1152xf32>
    %cst_536 = arith.constant dense<0.000000e+00> : vector<18x1152xf32>
    %345 = tpu.matmul %343, %344, %cst_536 {dimension_numbers = #tpu.dot_dimension_numbers<[1], [0], [0], [1], [0, 0, 1, 1], [], []>} : vector<18x649xf32>, vector<649x1152xf32>, vector<18x1152xf32> -> vector<18x1152xf32>
    %c0_537 = arith.constant 0 : index
    %c0_538 = arith.constant 0 : index
    %346 = vector.load %arg5[%c0_537, %c0_538] : memref<1x64xf32, #tpu.memory_space<vmem>>, vector<1x64xf32>
    %347 = vector.extract_strided_slice %345 {offsets = [0, 0], sizes = [1, 64], strides = [1, 1]} : vector<18x1152xf32> to vector<1x64xf32>
    %348 = arith.addf %346, %347 : vector<1x64xf32>
    %349 = vector.extract_strided_slice %345 {offsets = [1, 64], sizes = [1, 64], strides = [1, 1]} : vector<18x1152xf32> to vector<1x64xf32>
    %350 = arith.addf %348, %349 : vector<1x64xf32>
    %351 = vector.extract_strided_slice %345 {offsets = [2, 128], sizes = [1, 64], strides = [1, 1]} : vector<18x1152xf32> to vector<1x64xf32>
    %352 = arith.addf %350, %351 : vector<1x64xf32>
    %353 = vector.extract_strided_slice %345 {offsets = [3, 192], sizes = [1, 64], strides = [1, 1]} : vector<18x1152xf32> to vector<1x64xf32>
    %354 = arith.addf %352, %353 : vector<1x64xf32>
    %355 = vector.extract_strided_slice %345 {offsets = [4, 256], sizes = [1, 64], strides = [1, 1]} : vector<18x1152xf32> to vector<1x64xf32>
    %356 = arith.addf %354, %355 : vector<1x64xf32>
    %357 = vector.extract_strided_slice %345 {offsets = [5, 320], sizes = [1, 64], strides = [1, 1]} : vector<18x1152xf32> to vector<1x64xf32>
    %358 = arith.addf %356, %357 : vector<1x64xf32>
    %359 = vector.extract_strided_slice %345 {offsets = [6, 384], sizes = [1, 64], strides = [1, 1]} : vector<18x1152xf32> to vector<1x64xf32>
    %360 = arith.addf %358, %359 : vector<1x64xf32>
    %361 = vector.extract_strided_slice %345 {offsets = [7, 448], sizes = [1, 64], strides = [1, 1]} : vector<18x1152xf32> to vector<1x64xf32>
    %362 = arith.addf %360, %361 : vector<1x64xf32>
    %363 = vector.extract_strided_slice %345 {offsets = [8, 512], sizes = [1, 64], strides = [1, 1]} : vector<18x1152xf32> to vector<1x64xf32>
    %364 = arith.addf %362, %363 : vector<1x64xf32>
    %365 = vector.extract_strided_slice %345 {offsets = [9, 576], sizes = [1, 64], strides = [1, 1]} : vector<18x1152xf32> to vector<1x64xf32>
    %366 = arith.addf %364, %365 : vector<1x64xf32>
    %367 = vector.extract_strided_slice %345 {offsets = [10, 640], sizes = [1, 64], strides = [1, 1]} : vector<18x1152xf32> to vector<1x64xf32>
    %368 = arith.addf %366, %367 : vector<1x64xf32>
    %369 = vector.extract_strided_slice %345 {offsets = [11, 704], sizes = [1, 64], strides = [1, 1]} : vector<18x1152xf32> to vector<1x64xf32>
    %370 = arith.addf %368, %369 : vector<1x64xf32>
    %371 = vector.extract_strided_slice %345 {offsets = [12, 768], sizes = [1, 64], strides = [1, 1]} : vector<18x1152xf32> to vector<1x64xf32>
    %372 = arith.addf %370, %371 : vector<1x64xf32>
    %373 = vector.extract_strided_slice %345 {offsets = [13, 832], sizes = [1, 64], strides = [1, 1]} : vector<18x1152xf32> to vector<1x64xf32>
    %374 = arith.addf %372, %373 : vector<1x64xf32>
    %375 = vector.extract_strided_slice %345 {offsets = [14, 896], sizes = [1, 64], strides = [1, 1]} : vector<18x1152xf32> to vector<1x64xf32>
    %376 = arith.addf %374, %375 : vector<1x64xf32>
    %377 = vector.extract_strided_slice %345 {offsets = [15, 960], sizes = [1, 64], strides = [1, 1]} : vector<18x1152xf32> to vector<1x64xf32>
    %378 = arith.addf %376, %377 : vector<1x64xf32>
    %379 = vector.extract_strided_slice %345 {offsets = [16, 1024], sizes = [1, 64], strides = [1, 1]} : vector<18x1152xf32> to vector<1x64xf32>
    %380 = arith.addf %378, %379 : vector<1x64xf32>
    %381 = vector.extract_strided_slice %345 {offsets = [17, 1088], sizes = [1, 64], strides = [1, 1]} : vector<18x1152xf32> to vector<1x64xf32>
    %382 = arith.addf %380, %381 : vector<1x64xf32>
    %cst_539 = arith.constant 0.000000e+00 : f32
    %383 = vector.broadcast %cst_539 : f32 to vector<1x64xf32>
    %384 = arith.maximumf %382, %383 : vector<1x64xf32>
    %c0_540 = arith.constant 0 : index
    %c0_541 = arith.constant 0 : index
    %385 = vector.load %arg6[%c0_540, %c0_541] : memref<64x2xf32, #tpu.memory_space<vmem>>, vector<64x2xf32>
    %cst_542 = arith.constant dense<0.000000e+00> : vector<1x2xf32>
    %386 = tpu.matmul %384, %385, %cst_542 {dimension_numbers = #tpu.dot_dimension_numbers<[1], [0], [0], [1], [0, 0, 1, 1], [], []>} : vector<1x64xf32>, vector<64x2xf32>, vector<1x2xf32> -> vector<1x2xf32>
    %c0_543 = arith.constant 0 : index
    %c0_544 = arith.constant 0 : index
    %387 = vector.load %arg7[%c0_543, %c0_544] : memref<1x2xf32, #tpu.memory_space<vmem>>, vector<1x2xf32>
    %388 = arith.addf %386, %387 : vector<1x2xf32>
    %c0_545 = arith.constant 0 : index
    %c0_546 = arith.constant 0 : index
    %c0_547 = arith.constant 0 : index
    %389 = vector.load %arg8[%c0_545, %c0_546, %c0_547] : memref<1x1x2xf32, #tpu.memory_space<vmem>>, vector<1x1x2xf32>
    %390 = vector.shape_cast %389 : vector<1x1x2xf32> to vector<1x2xf32>
    %391 = vector.shape_cast %388 : vector<1x2xf32> to vector<1x1x2xf32>
    tpu.vector_store %arg8[%c0_545, %c0_546, %c0_547], %391 {strides = array<i32>} : memref<1x1x2xf32, #tpu.memory_space<vmem>>, vector<1x1x2xf32>,
    return
  }
  func.func @transform_0(%arg0: i32) -> (i32, i32, i32) {
    %c0_i32 = arith.constant 0 : i32
    %c0_i32_0 = arith.constant 0 : i32
    %c0_i32_1 = arith.constant 0 : i32
    return %arg0, %c0_i32, %c0_i32_0 : i32, i32, i32
  }
  func.func @transform_1(%arg0: i32) -> (i32, i32) {
    %c0_i32 = arith.constant 0 : i32
    %c0_i32_0 = arith.constant 0 : i32
    %c0_i32_1 = arith.constant 0 : i32
    return %c0_i32, %c0_i32_0 : i32, i32
  }
  func.func @transform_2(%arg0: i32) -> (i32, i32) {
    %c0_i32 = arith.constant 0 : i32
    %c0_i32_0 = arith.constant 0 : i32
    %c0_i32_1 = arith.constant 0 : i32
    return %c0_i32, %c0_i32_0 : i32, i32
  }
  func.func @transform_3(%arg0: i32) -> (i32, i32) {
    %c0_i32 = arith.constant 0 : i32
    %c0_i32_0 = arith.constant 0 : i32
    %c0_i32_1 = arith.constant 0 : i32
    return %c0_i32, %c0_i32_0 : i32, i32
  }
  func.func @transform_4(%arg0: i32) -> (i32, i32) {
    %c0_i32 = arith.constant 0 : i32
    %c0_i32_0 = arith.constant 0 : i32
    %c0_i32_1 = arith.constant 0 : i32
    return %c0_i32, %c0_i32_0 : i32, i32
  }
  func.func @transform_5(%arg0: i32) -> (i32, i32) {
    %c0_i32 = arith.constant 0 : i32
    %c0_i32_0 = arith.constant 0 : i32
    %c0_i32_1 = arith.constant 0 : i32
    return %c0_i32, %c0_i32_0 : i32, i32
  }
  func.func @transform_6(%arg0: i32) -> (i32, i32) {
    %c0_i32 = arith.constant 0 : i32
    %c0_i32_0 = arith.constant 0 : i32
    %c0_i32_1 = arith.constant 0 : i32
    return %c0_i32, %c0_i32_0 : i32, i32
  }
  func.func @transform_7(%arg0: i32) -> (i32, i32, i32) {
    %c0_i32 = arith.constant 0 : i32
    %c0_i32_0 = arith.constant 0 : i32
    %c0_i32_1 = arith.constant 0 : i32
    return %arg0, %c0_i32, %c0_i32_0 : i32, i32, i32
  }
}

</mosaic_0001>

<llo_original>
// kernel: simple_cnn_forward.1
$region0: #{simple_cnn_forward.1}
  #allocation0 [shape = 'u32[]', space=smem, size = 0x4, offset = 0x4, fixed_abs, tag = 'smem constant byte address 0x4 - core index']
  #allocation1 [shape = 'u32[72,128]{1,0:T(1,128)}', space=vmem, size = 0x9000, scoped, tag = 'internal scratch']
  #allocation2 [shape = 'f32[27,649]{1,0:T(8,128)}', space=vmem, size = 0x18000, scoped, tag = 'scratch operand']
  %s0 = inlined_call_operand.vmem [shape: f32[2,12,676], index: 0, kind: input, shape index: {}]
  %s1 = inlined_call_operand.vmem [shape: f32[18,27], index: 1, kind: input, shape index: {}]
  %s2 = inlined_call_operand.vmem [shape: f32[18,1], index: 2, kind: input, shape index: {}]
  %s3 = inlined_call_operand.vmem [shape: f32[649,1152], index: 3, kind: input, shape index: {}]
  %s4 = inlined_call_operand.vmem [shape: f32[1,64], index: 4, kind: input, shape index: {}]
  %s5 = inlined_call_operand.vmem [shape: f32[64,2], index: 5, kind: input, shape index: {}]
  %s6 = inlined_call_operand.vmem [shape: f32[1,2], index: 6, kind: input, shape index: {}]
  %s7 = inlined_call_operand.hbm [shape: f32[2,1,2], index: 7, kind: output, shape index: {}]
  %s8 = sld [smem:[#allocation0]]
  $region61: #{simple_cnn_forward.1} parent=0
    _
  %s10 = ssub.s32 1, %s8
  %s11 = scalar_select 0, %s10, %s8
  $region1: #{simple_cnn_forward.1} parent=0
    #allocation3 [shape = 'u8[1024]{0}', space=vmem, size = 0x400, scoped, tag = 'output window, operand 0']
    #allocation4 [shape = 's32[2]{0}', space=sflag, size = 0x8, scoped, tag = 'scoped memory for simple_cnn_forward.1']
    %12 = vsyncpa [#allocation4], 0
    %s13 = scalar_lea.sflag [#allocation4], 1
    %14 = vsyncpa %s13, 0
    loop: start=0, step=1, limit=4
    $region2: #{simple_cnn_forward.1} parent=1 // loop_pre_header
      _
    $region3: #{simple_cnn_forward.1} parent=1 // loop_header
      %s16 = sphi 0, %s20
      %p17 = scmp.ge.s32.totalorder %s16, 4
      %s26 = sphi 0, %s28
      %s29 = sphi 0, %s26
      %s30 = sphi 0, %s29
      %s46 = sphi 0, %s30
      %s50 = sphi 0, %s50
      %s52 = sphi 0, %s50
      %s53 = sphi 0, %s52
      %s67 = sphi 0, %s53
      %s71 = sphi 0, %s71
      %s73 = sphi 0, %s71
      %s74 = sphi 0, %s73
      %s88 = sphi 0, %s74
      %s92 = sphi 0, %s92
      %s94 = sphi 0, %s92
      %s95 = sphi 0, %s94
      %s109 = sphi 0, %s95
      %s113 = sphi 0, %s113
      %s115 = sphi 0, %s113
      %s116 = sphi 0, %s115
      %s130 = sphi 0, %s116
      %s134 = sphi 0, %s134
      %s136 = sphi 0, %s134
      %s137 = sphi 0, %s136
      %s151 = sphi 0, %s137
      %s155 = sphi 0, %s155
      %s157 = sphi 0, %s155
      %s158 = sphi 0, %s157
      %s172 = sphi 0, %s158
      %s178 = sphi 0, %s180
      %s181 = sphi 0, %s178
      %s182 = sphi 0, %s181
      %s198 = sphi 0, %s182
    $region4: #{simple_cnn_forward.1} parent=1 // loop_header_branch
      %19 = sbr.rel (%p17) target = $region8
    $region5: #{simple_cnn_forward.1} parent=1 // loop_body
      %s21 = ssub.s32 %s16, 1
      %s22 = ssub.s32 %s16, 2
      %s23 = sadd.s32 %s16, 1
      %s24 = ssub.s32 %s16, %s23
      %p25 = scmp.eq.s32.totalorder %s24, 0
      %s27 = sadd.s32 %s26, 1
      %s28 = scalar_select %p25, %s26, %s27
      %p31 = pneg %p25
      %p32 = scmp.eq.s32.totalorder %s16, 1
      %p33 = por %p31, %p32
      %p34 = scmp.ne.s32.totalorder %s26, %s29
      %p35 = scmp.eq.s32.totalorder %s16, 0
      %p36 = por %p34, %p35
      %p37 = scmp.ne.s32.totalorder %s26, %s29
      %p38 = scmp.eq.s32.totalorder %s21, 1
      %p39 = por %p37, %p38
      %p40 = scmp.ne.s32.totalorder %s29, %s30
      %p41 = scmp.eq.s32.totalorder %s21, 0
      %p42 = por %p40, %p41
      %p43 = scmp.ne.s32.totalorder %s29, %s30
      %p44 = scmp.eq.s32.totalorder %s22, 1
      %p45 = por %p43, %p44
      %p47 = scmp.ne.s32.totalorder %s30, %s46
      %p48 = scmp.eq.s32.totalorder %s22, 0
      %p49 = por %p47, %p48
      %s51 = sadd.s32 %s50, 1
      %p54 = scmp.eq.s32.totalorder %s16, 1
      %p55 = scmp.ne.s32.totalorder %s50, %s52
      %p56 = scmp.eq.s32.totalorder %s16, 0
      %p57 = por %p55, %p56
      %p58 = scmp.ne.s32.totalorder %s50, %s52
      %p59 = scmp.eq.s32.totalorder %s21, 1
      %p60 = por %p58, %p59
      %p61 = scmp.ne.s32.totalorder %s52, %s53
      %p62 = scmp.eq.s32.totalorder %s21, 0
      %p63 = por %p61, %p62
      %p64 = scmp.ne.s32.totalorder %s52, %s53
      %p65 = scmp.eq.s32.totalorder %s22, 1
      %p66 = por %p64, %p65
      %p68 = scmp.ne.s32.totalorder %s53, %s67
      %p69 = scmp.eq.s32.totalorder %s22, 0
      %p70 = por %p68, %p69
      %s72 = sadd.s32 %s71, 1
      %p75 = scmp.eq.s32.totalorder %s16, 1
      %p76 = scmp.ne.s32.totalorder %s71, %s73
      %p77 = scmp.eq.s32.totalorder %s16, 0
      %p78 = por %p76, %p77
      %p79 = scmp.ne.s32.totalorder %s71, %s73
      %p80 = scmp.eq.s32.totalorder %s21, 1
      %p81 = por %p79, %p80
      %p82 = scmp.ne.s32.totalorder %s73, %s74
      %p83 = scmp.eq.s32.totalorder %s21, 0
      %p84 = por %p82, %p83
      %p85 = scmp.ne.s32.totalorder %s73, %s74
      %p86 = scmp.eq.s32.totalorder %s22, 1
      %p87 = por %p85, %p86
      %p89 = scmp.ne.s32.totalorder %s74, %s88
      %p90 = scmp.eq.s32.totalorder %s22, 0
      %p91 = por %p89, %p90
      %s93 = sadd.s32 %s92, 1
      %p96 = scmp.eq.s32.totalorder %s16, 1
      %p97 = scmp.ne.s32.totalorder %s92, %s94
      %p98 = scmp.eq.s32.totalorder %s16, 0
      %p99 = por %p97, %p98
      %p100 = scmp.ne.s32.totalorder %s92, %s94
      %p101 = scmp.eq.s32.totalorder %s21, 1
      %p102 = por %p100, %p101
      %p103 = scmp.ne.s32.totalorder %s94, %s95
      %p104 = scmp.eq.s32.totalorder %s21, 0
      %p105 = por %p103, %p104
      %p106 = scmp.ne.s32.totalorder %s94, %s95
      %p107 = scmp.eq.s32.totalorder %s22, 1
      %p108 = por %p106, %p107
      %p110 = scmp.ne.s32.totalorder %s95, %s109
      %p111 = scmp.eq.s32.totalorder %s22, 0
      %p112 = por %p110, %p111
      %s114 = sadd.s32 %s113, 1
      %p117 = scmp.eq.s32.totalorder %s16, 1
      %p118 = scmp.ne.s32.totalorder %s113, %s115
      %p119 = scmp.eq.s32.totalorder %s16, 0
      %p120 = por %p118, %p119
      %p121 = scmp.ne.s32.totalorder %s113, %s115
      %p122 = scmp.eq.s32.totalorder %s21, 1
      %p123 = por %p121, %p122
      %p124 = scmp.ne.s32.totalorder %s115, %s116
      %p125 = scmp.eq.s32.totalorder %s21, 0
      %p126 = por %p124, %p125
      %p127 = scmp.ne.s32.totalorder %s115, %s116
      %p128 = scmp.eq.s32.totalorder %s22, 1
      %p129 = por %p127, %p128
      %p131 = scmp.ne.s32.totalorder %s116, %s130
      %p132 = scmp.eq.s32.totalorder %s22, 0
      %p133 = por %p131, %p132
      %s135 = sadd.s32 %s134, 1
      %p138 = scmp.eq.s32.totalorder %s16, 1
      %p139 = scmp.ne.s32.totalorder %s134, %s136
      %p140 = scmp.eq.s32.totalorder %s16, 0
      %p141 = por %p139, %p140
      %p142 = scmp.ne.s32.totalorder %s134, %s136
      %p143 = scmp.eq.s32.totalorder %s21, 1
      %p144 = por %p142, %p143
      %p145 = scmp.ne.s32.totalorder %s136, %s137
      %p146 = scmp.eq.s32.totalorder %s21, 0
      %p147 = por %p145, %p146
      %p148 = scmp.ne.s32.totalorder %s136, %s137
      %p149 = scmp.eq.s32.totalorder %s22, 1
      %p150 = por %p148, %p149
      %p152 = scmp.ne.s32.totalorder %s137, %s151
      %p153 = scmp.eq.s32.totalorder %s22, 0
      %p154 = por %p152, %p153
      %s156 = sadd.s32 %s155, 1
      %p159 = scmp.eq.s32.totalorder %s16, 1
      %p160 = scmp.ne.s32.totalorder %s155, %s157
      %p161 = scmp.eq.s32.totalorder %s16, 0
      %p162 = por %p160, %p161
      %p163 = scmp.ne.s32.totalorder %s155, %s157
      %p164 = scmp.eq.s32.totalorder %s21, 1
      %p165 = por %p163, %p164
      %p166 = scmp.ne.s32.totalorder %s157, %s158
      %p167 = scmp.eq.s32.totalorder %s21, 0
      %p168 = por %p166, %p167
      %p169 = scmp.ne.s32.totalorder %s157, %s158
      %p170 = scmp.eq.s32.totalorder %s22, 1
      %p171 = por %p169, %p170
      %p173 = scmp.ne.s32.totalorder %s158, %s172
      %p174 = scmp.eq.s32.totalorder %s22, 0
      %p175 = por %p173, %p174
      %s176 = ssub.s32 %s16, %s23
      %p177 = scmp.eq.s32.totalorder %s176, 0
      %s179 = sadd.s32 %s178, 1
      %s180 = scalar_select %p177, %s178, %s179
      %p183 = pneg %p177
      %p184 = scmp.eq.s32.totalorder %s16, 1
      %p185 = por %p183, %p184
      %p186 = scmp.ne.s32.totalorder %s178, %s181
      %p187 = scmp.eq.s32.totalorder %s16, 0
      %p188 = por %p186, %p187
      %p189 = scmp.ne.s32.totalorder %s178, %s181
      %p190 = scmp.eq.s32.totalorder %s21, 1
      %p191 = por %p189, %p190
      %p192 = scmp.ne.s32.totalorder %s181, %s182
      %p193 = scmp.eq.s32.totalorder %s21, 0
      %p194 = por %p192, %p193
      %p195 = scmp.ne.s32.totalorder %s181, %s182
      %p196 = scmp.eq.s32.totalorder %s22, 1
      %p197 = por %p195, %p196
      %p199 = scmp.ne.s32.totalorder %s182, %s198
      %p200 = scmp.eq.s32.totalorder %s22, 0
      %p201 = por %p199, %p200
      %p202 = scmp.le.s32.totalorder 1, %s16
      %p203 = scmp.lt.s32.totalorder %s16, 3
      %p204 = pnand %p202, %p203
      %p205 = pneg %p204
      // Predicated region
      $region9: #{simple_cnn_forward.1} parent=5 // pred_check
        _
      $region10: #{simple_cnn_forward.1} parent=5 // pred_check_branch
        %207 = sbr.rel (%p204) target = $region12
      $region11: #{simple_cnn_forward.1} parent=5 // pred_region
        %s208 = ssub.s32 %s16, 1
        // Predicated region
        $region13: #{simple_cnn_forward.1} parent=11 // pred_check
          %p209 = pneg %p63
        $region14: #{simple_cnn_forward.1} parent=11 // pred_check_branch
          %211 = sbr.rel (%p209) target = $region16
        $region15: #{simple_cnn_forward.1} parent=11 // pred_region
          _
        $region16: #{simple_cnn_forward.1} parent=11 // pred_fallthru
          _
        // Predicated region
        $region17: #{simple_cnn_forward.1} parent=11 // pred_check
          %p212 = pneg %p84
        $region18: #{simple_cnn_forward.1} parent=11 // pred_check_branch
          %214 = sbr.rel (%p212) target = $region20
        $region19: #{simple_cnn_forward.1} parent=11 // pred_region
          _
        $region20: #{simple_cnn_forward.1} parent=11 // pred_fallthru
          _
        // Predicated region
        $region21: #{simple_cnn_forward.1} parent=11 // pred_check
          %p215 = pneg %p105
        $region22: #{simple_cnn_forward.1} parent=11 // pred_check_branch
          %217 = sbr.rel (%p215) target = $region24
        $region23: #{simple_cnn_forward.1} parent=11 // pred_region
          _
        $region24: #{simple_cnn_forward.1} parent=11 // pred_fallthru
          _
        // Predicated region
        $region25: #{simple_cnn_forward.1} parent=11 // pred_check
          %p218 = pneg %p126
        $region26: #{simple_cnn_forward.1} parent=11 // pred_check_branch
          %220 = sbr.rel (%p218) target = $region28
        $region27: #{simple_cnn_forward.1} parent=11 // pred_region
          _
        $region28: #{simple_cnn_forward.1} parent=11 // pred_fallthru
          _
        // Predicated region
        $region29: #{simple_cnn_forward.1} parent=11 // pred_check
          %p221 = pneg %p147
        $region30: #{simple_cnn_forward.1} parent=11 // pred_check_branch
          %223 = sbr.rel (%p221) target = $region32
        $region31: #{simple_cnn_forward.1} parent=11 // pred_region
          _
        $region32: #{simple_cnn_forward.1} parent=11 // pred_fallthru
          _
        // Predicated region
        $region33: #{simple_cnn_forward.1} parent=11 // pred_check
          %p224 = pneg %p168
        $region34: #{simple_cnn_forward.1} parent=11 // pred_check_branch
          %226 = sbr.rel (%p224) target = $region36
        $region35: #{simple_cnn_forward.1} parent=11 // pred_region
          _
        $region36: #{simple_cnn_forward.1} parent=11 // pred_fallthru
          _
      $region12: #{simple_cnn_forward.1} parent=5 // pred_fallthru
        _
      %p227 = scmp.lt.s32.totalorder %s16, 2
      // Predicated region
      $region37: #{simple_cnn_forward.1} parent=5 // pred_check
        %p228 = pneg %p227
      $region38: #{simple_cnn_forward.1} parent=5 // pred_check_branch
        %230 = sbr.rel (%p228) target = $region40
      $region39: #{simple_cnn_forward.1} parent=5 // pred_region
        // Predicated region
        $region41: #{simple_cnn_forward.1} parent=39 // pred_check
          %p231 = pneg %p36
        $region42: #{simple_cnn_forward.1} parent=39 // pred_check_branch
          %233 = sbr.rel (%p231) target = $region44
        $region43: #{simple_cnn_forward.1} parent=39 // pred_region
          %p234 = scmp.lt.s32.totalorder %s16, 1
          %s235 = scalar_select %p234, %s16, 1
          %s236 = smul.addr %s235, 12
          %s237 = smul.addr %s236, 8
          %s238 = scalar_lea.vmem %s0, %s237
        $region44: #{simple_cnn_forward.1} parent=39 // pred_fallthru
          _
      $region40: #{simple_cnn_forward.1} parent=5 // pred_fallthru
        _
      %p239 = scmp.le.s32.totalorder 1, %s16
      %p240 = scmp.lt.s32.totalorder %s16, 3
      %p241 = pnand %p239, %p240
      %p242 = pneg %p241
      // Predicated region
      $region45: #{simple_cnn_forward.1} parent=5 // pred_check
        _
      $region46: #{simple_cnn_forward.1} parent=5 // pred_check_branch
        %244 = sbr.rel (%p241) target = $region48
      $region47: #{simple_cnn_forward.1} parent=5 // pred_region
        %s245 = ssub.s32 %s16, 1
        %p246 = scmp.lt.s32.totalorder %s21, 1
        %s247 = scalar_select %p246, %s21, 1
        %s248 = smul.addr %s247, 12
        %s249 = smul.addr %s248, 8
        %s250 = scalar_lea.vmem %s0, %s249
        %p251 = pneg %p42
        %p252 = pneg %p39
        %p253 = pneg %p63
        %p254 = pneg %p60
        %p255 = pneg %p84
        %p256 = pneg %p81
        %p257 = pneg %p105
        %p258 = pneg %p102
        %p259 = pneg %p126
        %p260 = pneg %p123
        %p261 = pneg %p147
        %p262 = pneg %p144
        %p263 = pneg %p168
        %p264 = pneg %p165
        %p265 = pneg %p194
        %p266 = pneg %p191
        %s267 = sand.u32 %s181, 1
        %s268 = scalar_lea.sflag [#allocation4], %s267
        %s269 = sand.u32 %s181, 1
        %s270 = scalar_lea.vmem [#allocation3], %s269
        %p271 = scmp.lt.s32.totalorder %s21, 1
        %s272 = scalar_select %p271, %s21, 1
        %s273 = smul.addr %s272, 12
        %s274 = smul.addr %s273, 8
        %s275 = scalar_lea.vmem %s0, %s274
        %v276 = vld [vmem:[%s275] ss:$8 sm:$0xf]
        %v277 = vld [vmem:[%s275] ss:$8 sm:$0x30]
        %v278 = vor.u32 %v276, %v277
        %v279 = vlaneseq
        %vm280 = vcmp.ge.s32.totalorder %v279, 0
        %vm281 = vcmp.lt.s32.totalorder %v279, 649
        %vm282 = vmand %vm280, %vm281
        %283 = vst.msk [vmem:[#allocation2] ss:$8 sm:$0xf] %vm282, %v278
        %284 = vst.msk [vmem:[#allocation2] ss:$8 sm:$0x30] %vm282, %v278
        %s285 = scalar_lea.vmem %s275, 3
        %v286 = vld [vmem:[%s285] ss:$8 sm:$0xf]
        %v287 = vld [vmem:[%s285] ss:$8 sm:$0x30]
        %v288 = vor.u32 %v286, %v287
        %s289 = scalar_lea.vmem [#allocation2], 1
        %290 = vst.msk [vmem:[%s289] ss:$8 sm:$0xf] %vm282, %v288
        %291 = vst.msk [vmem:[%s289] ss:$8 sm:$0x30] %vm282, %v288
        %v292 = vld [vmem:[%s275] ss:$8 sm:$0xf]
        %v293 = vld [vmem:[%s275] ss:$8 sm:$0x30]
        %v294 = vor.u32 %v292, %v293
        %296 = vrot.lane.b32.xlu0 %v294, 127
        %v297 = vpop.permute.xlu0 %296
        %v298 = vrot.slane %v297, 1
        %vm299 = vcmask 1039360
        %v300 = vsel %vm299, %v297, %v298
        %s302 = scalar_lea.vmem [#allocation2], 2
        %303 = vst.msk [vmem:[%s302] ss:$8 sm:$0xf] %vm282, %v300
        %304 = vst.msk [vmem:[%s302] ss:$8 sm:$0x30] %vm282, %v300
        %s305 = scalar_lea.vmem %s275, 6
        %v306 = vld [vmem:[%s305] ss:$8 sm:$0xf]
        %v307 = vld [vmem:[%s305] ss:$8 sm:$0x30]
        %v308 = vor.u32 %v306, %v307
        %s309 = scalar_lea.vmem [#allocation2], 3
        %310 = vst.msk [vmem:[%s309] ss:$8 sm:$0xf] %vm282, %v308
        %311 = vst.msk [vmem:[%s309] ss:$8 sm:$0x30] %vm282, %v308
        %s312 = scalar_lea.vmem %s275, 49
        %v313 = vld [vmem:[%s312] ss:$8 sm:$0xf]
        %v314 = vld [vmem:[%s312] ss:$8 sm:$0x30]
        %v315 = vor.u32 %v313, %v314
        %s316 = scalar_lea.vmem [#allocation2], 4
        %317 = vst.msk [vmem:[%s316] ss:$8 sm:$0xf] %vm282, %v315
        %318 = vst.msk [vmem:[%s316] ss:$8 sm:$0x30] %vm282, %v315
        %v319 = vld [vmem:[%s305] ss:$8 sm:$0xf]
        %v320 = vld [vmem:[%s305] ss:$8 sm:$0x30]
        %v321 = vor.u32 %v319, %v320
        %323 = vrot.lane.b32.xlu0 %v321, 127
        %v324 = vpop.permute.xlu0 %323
        %v325 = vrot.slane %v324, 1
        %v326 = vsel %vm299, %v324, %v325
        %s328 = scalar_lea.vmem [#allocation2], 5
        %329 = vst.msk [vmem:[%s328] ss:$8 sm:$0xf] %vm282, %v326
        %330 = vst.msk [vmem:[%s328] ss:$8 sm:$0x30] %vm282, %v326
        %v331 = vld [vmem:[%s275] ss:$8 sm:$0xf]
        %v332 = vld [vmem:[%s275] ss:$8 sm:$0x30]
        %v333 = vor.u32 %v331, %v332
        %335 = vrot.lane.b32.xlu0 %v333, 102
        %v336 = vpop.permute.xlu0 %335
        %v337 = vrot.slane %v336, 1
        %vm338 = vcmask 834560
        %v339 = vsel %vm338, %v336, %v337
        %s341 = scalar_lea.vmem [#allocation2], 6
        %342 = vst.msk [vmem:[%s341] ss:$8 sm:$0xf] %vm282, %v339
        %343 = vst.msk [vmem:[%s341] ss:$8 sm:$0x30] %vm282, %v339
        %v344 = vld [vmem:[%s285] ss:$8 sm:$0xf]
        %v345 = vld [vmem:[%s285] ss:$8 sm:$0x30]
        %v346 = vor.u32 %v344, %v345
        %348 = vrot.lane.b32.xlu0 %v346, 102
        %v349 = vpop.permute.xlu0 %348
        %v350 = vrot.slane %v349, 1
        %v351 = vsel %vm338, %v349, %v350
        %s353 = scalar_lea.vmem [#allocation2], 7
        %354 = vst.msk [vmem:[%s353] ss:$8 sm:$0xf] %vm282, %v351
        %355 = vst.msk [vmem:[%s353] ss:$8 sm:$0x30] %vm282, %v351
        %v356 = vld [vmem:[%s275] ss:$8 sm:$0xf]
        %v357 = vld [vmem:[%s275] ss:$8 sm:$0x30]
        %v358 = vor.u32 %v356, %v357
        %360 = vrot.lane.b32.xlu0 %v358, 101
        %v361 = vpop.permute.xlu0 %360
        %v362 = vrot.slane %v361, 1
        %vm363 = vcmask 826368
        %v364 = vsel %vm363, %v361, %v362
        %s366 = scalar_lea.vmem [#allocation2], 48
        %367 = vst.msk [vmem:[%s366] ss:$8 sm:$0xf] %vm282, %v364
        %368 = vst.msk [vmem:[%s366] ss:$8 sm:$0x30] %vm282, %v364
        %s369 = scalar_lea.vmem %s275, 1
        %v370 = vld [vmem:[%s369] ss:$8 sm:$0xf]
        %v371 = vld [vmem:[%s369] ss:$8 sm:$0x30]
        %v372 = vor.u32 %v370, %v371
        %s373 = scalar_lea.vmem [#allocation2], 49
        %374 = vst.msk [vmem:[%s373] ss:$8 sm:$0xf] %vm282, %v372
        %375 = vst.msk [vmem:[%s373] ss:$8 sm:$0x30] %vm282, %v372
        %s376 = scalar_lea.vmem %s275, 4
        %v377 = vld [vmem:[%s376] ss:$8 sm:$0xf]
        %v378 = vld [vmem:[%s376] ss:$8 sm:$0x30]
        %v379 = vor.u32 %v377, %v378
        %s380 = scalar_lea.vmem [#allocation2], 50
        %381 = vst.msk [vmem:[%s380] ss:$8 sm:$0xf] %vm282, %v379
        %382 = vst.msk [vmem:[%s380] ss:$8 sm:$0x30] %vm282, %v379
        %v383 = vld [vmem:[%s369] ss:$8 sm:$0xf]
        %v384 = vld [vmem:[%s369] ss:$8 sm:$0x30]
        %v385 = vor.u32 %v383, %v384
        %387 = vrot.lane.b32.xlu0 %v385, 127
        %v388 = vpop.permute.xlu0 %387
        %v389 = vrot.slane %v388, 1
        %v390 = vsel %vm299, %v388, %v389
        %s392 = scalar_lea.vmem [#allocation2], 51
        %393 = vst.msk [vmem:[%s392] ss:$8 sm:$0xf] %vm282, %v390
        %394 = vst.msk [vmem:[%s392] ss:$8 sm:$0x30] %vm282, %v390
        %s395 = scalar_lea.vmem %s275, 7
        %v396 = vld [vmem:[%s395] ss:$8 sm:$0xf]
        %v397 = vld [vmem:[%s395] ss:$8 sm:$0x30]
        %v398 = vor.u32 %v396, %v397
        %s399 = scalar_lea.vmem [#allocation2], 52
        %400 = vst.msk [vmem:[%s399] ss:$8 sm:$0xf] %vm282, %v398
        %401 = vst.msk [vmem:[%s399] ss:$8 sm:$0x30] %vm282, %v398
        %s402 = scalar_lea.vmem %s275, 50
        %v403 = vld [vmem:[%s402] ss:$8 sm:$0xf]
        %v404 = vld [vmem:[%s402] ss:$8 sm:$0x30]
        %v405 = vor.u32 %v403, %v404
        %s406 = scalar_lea.vmem [#allocation2], 53
        %407 = vst.msk [vmem:[%s406] ss:$8 sm:$0xf] %vm282, %v405
        %408 = vst.msk [vmem:[%s406] ss:$8 sm:$0x30] %vm282, %v405
        %v409 = vld [vmem:[%s395] ss:$8 sm:$0xf]
        %v410 = vld [vmem:[%s395] ss:$8 sm:$0x30]
        %v411 = vor.u32 %v409, %v410
        %413 = vrot.lane.b32.xlu0 %v411, 127
        %v414 = vpop.permute.xlu0 %413
        %v415 = vrot.slane %v414, 1
        %v416 = vsel %vm299, %v414, %v415
        %s418 = scalar_lea.vmem [#allocation2], 54
        %419 = vst.msk [vmem:[%s418] ss:$8 sm:$0xf] %vm282, %v416
        %420 = vst.msk [vmem:[%s418] ss:$8 sm:$0x30] %vm282, %v416
        %v421 = vld [vmem:[%s369] ss:$8 sm:$0xf]
        %v422 = vld [vmem:[%s369] ss:$8 sm:$0x30]
        %v423 = vor.u32 %v421, %v422
        %425 = vrot.lane.b32.xlu0 %v423, 102
        %v426 = vpop.permute.xlu0 %425
        %v427 = vrot.slane %v426, 1
        %v428 = vsel %vm338, %v426, %v427
        %s430 = scalar_lea.vmem [#allocation2], 55
        %431 = vst.msk [vmem:[%s430] ss:$8 sm:$0xf] %vm282, %v428
        %432 = vst.msk [vmem:[%s430] ss:$8 sm:$0x30] %vm282, %v428
        %v433 = vld [vmem:[%s376] ss:$8 sm:$0xf]
        %v434 = vld [vmem:[%s376] ss:$8 sm:$0x30]
        %v435 = vor.u32 %v433, %v434
        %437 = vrot.lane.b32.xlu0 %v435, 102
        %v438 = vpop.permute.xlu0 %437
        %v439 = vrot.slane %v438, 1
        %v440 = vsel %vm338, %v438, %v439
        %s442 = scalar_lea.vmem [#allocation2], 96
        %443 = vst.msk [vmem:[%s442] ss:$8 sm:$0xf] %vm282, %v440
        %444 = vst.msk [vmem:[%s442] ss:$8 sm:$0x30] %vm282, %v440
        %v445 = vld [vmem:[%s369] ss:$8 sm:$0xf]
        %v446 = vld [vmem:[%s369] ss:$8 sm:$0x30]
        %v447 = vor.u32 %v445, %v446
        %449 = vrot.lane.b32.xlu0 %v447, 101
        %v450 = vpop.permute.xlu0 %449
        %v451 = vrot.slane %v450, 1
        %v452 = vsel %vm363, %v450, %v451
        %s454 = scalar_lea.vmem [#allocation2], 97
        %455 = vst.msk [vmem:[%s454] ss:$8 sm:$0xf] %vm282, %v452
        %456 = vst.msk [vmem:[%s454] ss:$8 sm:$0x30] %vm282, %v452
        %s457 = scalar_lea.vmem %s275, 2
        %v458 = vld [vmem:[%s457] ss:$8 sm:$0xf]
        %v459 = vld [vmem:[%s457] ss:$8 sm:$0x30]
        %v460 = vor.u32 %v458, %v459
        %s461 = scalar_lea.vmem [#allocation2], 98
        %462 = vst.msk [vmem:[%s461] ss:$8 sm:$0xf] %vm282, %v460
        %463 = vst.msk [vmem:[%s461] ss:$8 sm:$0x30] %vm282, %v460
        %s464 = scalar_lea.vmem %s275, 5
        %v465 = vld [vmem:[%s464] ss:$8 sm:$0xf]
        %v466 = vld [vmem:[%s464] ss:$8 sm:$0x30]
        %v467 = vor.u32 %v465, %v466
        %s468 = scalar_lea.vmem [#allocation2], 99
        %469 = vst.msk [vmem:[%s468] ss:$8 sm:$0xf] %vm282, %v467
        %470 = vst.msk [vmem:[%s468] ss:$8 sm:$0x30] %vm282, %v467
        %v471 = vld [vmem:[%s457] ss:$8 sm:$0xf]
        %v472 = vld [vmem:[%s457] ss:$8 sm:$0x30]
        %v473 = vor.u32 %v471, %v472
        %475 = vrot.lane.b32.xlu0 %v473, 127
        %v476 = vpop.permute.xlu0 %475
        %v477 = vrot.slane %v476, 1
        %v478 = vsel %vm299, %v476, %v477
        %s480 = scalar_lea.vmem [#allocation2], 100
        %481 = vst.msk [vmem:[%s480] ss:$8 sm:$0xf] %vm282, %v478
        %482 = vst.msk [vmem:[%s480] ss:$8 sm:$0x30] %vm282, %v478
        %s483 = scalar_lea.vmem %s275, 48
        %v484 = vld [vmem:[%s483] ss:$8 sm:$0xf]
        %v485 = vld [vmem:[%s483] ss:$8 sm:$0x30]
        %v486 = vor.u32 %v484, %v485
        %s487 = scalar_lea.vmem [#allocation2], 101
        %488 = vst.msk [vmem:[%s487] ss:$8 sm:$0xf] %vm282, %v486
        %489 = vst.msk [vmem:[%s487] ss:$8 sm:$0x30] %vm282, %v486
        %s490 = scalar_lea.vmem %s275, 51
        %v491 = vld [vmem:[%s490] ss:$8 sm:$0xf]
        %v492 = vld [vmem:[%s490] ss:$8 sm:$0x30]
        %v493 = vor.u32 %v491, %v492
        %s494 = scalar_lea.vmem [#allocation2], 102
        %495 = vst.msk [vmem:[%s494] ss:$8 sm:$0xf] %vm282, %v493
        %496 = vst.msk [vmem:[%s494] ss:$8 sm:$0x30] %vm282, %v493
        %v497 = vld [vmem:[%s483] ss:$8 sm:$0xf]
        %v498 = vld [vmem:[%s483] ss:$8 sm:$0x30]
        %v499 = vor.u32 %v497, %v498
        %501 = vrot.lane.b32.xlu0 %v499, 127
        %v502 = vpop.permute.xlu0 %501
        %v503 = vrot.slane %v502, 1
        %v504 = vsel %vm299, %v502, %v503
        %s506 = scalar_lea.vmem [#allocation2], 103
        %507 = vst.msk [vmem:[%s506] ss:$8 sm:$0xf] %vm282, %v504
        %508 = vst.msk [vmem:[%s506] ss:$8 sm:$0x30] %vm282, %v504
        %v509 = vld [vmem:[%s457] ss:$8 sm:$0xf]
        %v510 = vld [vmem:[%s457] ss:$8 sm:$0x30]
        %v511 = vor.u32 %v509, %v510
        %513 = vrot.lane.b32.xlu0 %v511, 102
        %v514 = vpop.permute.xlu0 %513
        %v515 = vrot.slane %v514, 1
        %v516 = vsel %vm338, %v514, %v515
        %s518 = scalar_lea.vmem [#allocation2], 144
        %519 = vst.msk [vmem:[%s518] ss:$8 sm:$0xf] %vm282, %v516
        %520 = vst.msk [vmem:[%s518] ss:$8 sm:$0x30] %vm282, %v516
        %v521 = vld [vmem:[%s464] ss:$8 sm:$0xf]
        %v522 = vld [vmem:[%s464] ss:$8 sm:$0x30]
        %v523 = vor.u32 %v521, %v522
        %525 = vrot.lane.b32.xlu0 %v523, 102
        %v526 = vpop.permute.xlu0 %525
        %v527 = vrot.slane %v526, 1
        %v528 = vsel %vm338, %v526, %v527
        %s530 = scalar_lea.vmem [#allocation2], 145
        %531 = vst.msk [vmem:[%s530] ss:$8 sm:$0xf] %vm282, %v528
        %532 = vst.msk [vmem:[%s530] ss:$8 sm:$0x30] %vm282, %v528
        %v533 = vld [vmem:[%s457] ss:$8 sm:$0xf]
        %v534 = vld [vmem:[%s457] ss:$8 sm:$0x30]
        %v535 = vor.u32 %v533, %v534
        %537 = vrot.lane.b32.xlu0 %v535, 101
        %v538 = vpop.permute.xlu0 %537
        %v539 = vrot.slane %v538, 1
        %v540 = vsel %vm363, %v538, %v539
        %s542 = scalar_lea.vmem [#allocation2], 146
        %543 = vst.msk [vmem:[%s542] ss:$8 sm:$0xf] %vm282, %v540
        %544 = vst.msk [vmem:[%s542] ss:$8 sm:$0x30] %vm282, %v540
        %v545 = vld [vmem:[%s1] sm:$0xff]
        %v546 = vld [vmem:[%s1 + $0x8] sm:$0xff]
        %v547 = vld [vmem:[%s1 + $0x10] sm:$0x3]
        %v548 = vld [vmem:[#allocation2] sm:$0xff]
        %v549 = vld [vmem:[#allocation2 + $0x8] sm:$0xff]
        %v550 = vld [vmem:[#allocation2 + $0x10] sm:$0xff]
        %v551 = vld [vmem:[#allocation2 + $0x18] sm:$0xff]
        %v552 = vld [vmem:[#allocation2 + $0x20] sm:$0xff]
        %v553 = vld [vmem:[#allocation2 + $0x28] sm:$0xff]
        %v554 = vld [vmem:[#allocation2 + $0x30] sm:$0xff]
        %v555 = vld [vmem:[#allocation2 + $0x38] sm:$0xff]
        %v556 = vld [vmem:[#allocation2 + $0x40] sm:$0xff]
        %v557 = vld [vmem:[#allocation2 + $0x48] sm:$0xff]
        %v558 = vld [vmem:[#allocation2 + $0x50] sm:$0xff]
        %v559 = vld [vmem:[#allocation2 + $0x58] sm:$0xff]
        %v560 = vld [vmem:[#allocation2 + $0x60] sm:$0xff]
        %v561 = vld [vmem:[#allocation2 + $0x68] sm:$0xff]
        %v562 = vld [vmem:[#allocation2 + $0x70] sm:$0xff]
        %v563 = vld [vmem:[#allocation2 + $0x78] sm:$0xff]
        %v564 = vld [vmem:[#allocation2 + $0x80] sm:$0xff]
        %v565 = vld [vmem:[#allocation2 + $0x88] sm:$0xff]
        %v566 = vld [vmem:[#allocation2 + $0x90] sm:$0x7]
        %v567 = vld [vmem:[#allocation2 + $0x98] sm:$0x7]
        %v568 = vld [vmem:[#allocation2 + $0xa0] sm:$0x7]
        %v569 = vld [vmem:[#allocation2 + $0xa8] sm:$0x7]
        %v570 = vld [vmem:[#allocation2 + $0xb0] sm:$0x7]
        %v571 = vld [vmem:[#allocation2 + $0xb8] sm:$0x7]
        %vm572 = vcmask 220160
        %v574 = vsel %vm572, %v545, 0
        %v577 = vsel %vm572, %v546, 0
        %v580 = vsel %vm572, %v547, 0
        %vm582 = vcmask 1042432
        %v584 = vsel %vm582, %v566, 0
        %v587 = vsel %vm582, %v567, 0
        %v590 = vsel %vm582, %v568, 0
        %v593 = vsel %vm582, %v569, 0
        %v596 = vsel %vm582, %v570, 0
        %v599 = vsel %vm582, %v571, 0
        %601 = vmatpush.msra.mxu0 0.0
        %602 = vmatpush.msra.mxu0 0.0
        %603 = vmatpush.msra.mxu0 0.0
        %604 = vmatpush.msra.mxu0 0.0
        %605 = vmatpush.msra.mxu0 0.0
        %606 = vmatpush.msra.mxu0 0.0
        %607 = vmatpush.msra.mxu0 0.0
        %608 = vmatpush.msra.mxu0 0.0
        %609 = vmatpush.msra.mxu0 0.0
        %610 = vmatpush.msra.mxu0 0.0
        %611 = vmatpush.msra.mxu0 0.0
        %612 = vmatpush.msra.mxu0 0.0
        %613 = vmatpush.msra.mxu0 %v584
        %614 = vmatpush.msra.mxu0 %v560
        %615 = vmatpush.msra.mxu0 %v554
        %616 = vmatpush.msra.mxu0 %v548
        %617 = vmatmul.f32.gmra.mxu0 %v574
        %v618 = vpop.f32.mrf.mxu0
        %v619 = vadd.f32 0.0, %v618
        %620 = vmatmul.f32.gmra.mxu0 %v577
        %v621 = vpop.f32.mrf.mxu0
        %v622 = vadd.f32 0.0, %v621
        %623 = vmatmul.f32.gmra.mxu0 %v580
        %v624 = vpop.f32.mrf.mxu0
        %v625 = vadd.f32 0.0, %v624
        %626 = vdwg.mxu0
        %627 = vmatpush.msra.mxu0 0.0
        %628 = vmatpush.msra.mxu0 0.0
        %629 = vmatpush.msra.mxu0 0.0
        %630 = vmatpush.msra.mxu0 0.0
        %631 = vmatpush.msra.mxu0 0.0
        %632 = vmatpush.msra.mxu0 0.0
        %633 = vmatpush.msra.mxu0 0.0
        %634 = vmatpush.msra.mxu0 0.0
        %635 = vmatpush.msra.mxu0 0.0
        %636 = vmatpush.msra.mxu0 0.0
        %637 = vmatpush.msra.mxu0 0.0
        %638 = vmatpush.msra.mxu0 0.0
        %639 = vmatpush.msra.mxu0 %v587
        %640 = vmatpush.msra.mxu0 %v561
        %641 = vmatpush.msra.mxu0 %v555
        %642 = vmatpush.msra.mxu0 %v549
        %643 = vmatmul.f32.gmra.mxu0 %v574
        %v644 = vpop.f32.mrf.mxu0
        %v645 = vadd.f32 0.0, %v644
        %646 = vmatmul.f32.gmra.mxu0 %v577
        %v647 = vpop.f32.mrf.mxu0
        %v648 = vadd.f32 0.0, %v647
        %649 = vmatmul.f32.gmra.mxu0 %v580
        %v650 = vpop.f32.mrf.mxu0
        %v651 = vadd.f32 0.0, %v650
        %652 = vdwg.mxu0
        %653 = vmatpush.msra.mxu0 0.0
        %654 = vmatpush.msra.mxu0 0.0
        %655 = vmatpush.msra.mxu0 0.0
        %656 = vmatpush.msra.mxu0 0.0
        %657 = vmatpush.msra.mxu0 0.0
        %658 = vmatpush.msra.mxu0 0.0
        %659 = vmatpush.msra.mxu0 0.0
        %660 = vmatpush.msra.mxu0 0.0
        %661 = vmatpush.msra.mxu0 0.0
        %662 = vmatpush.msra.mxu0 0.0
        %663 = vmatpush.msra.mxu0 0.0
        %664 = vmatpush.msra.mxu0 0.0
        %665 = vmatpush.msra.mxu0 %v590
        %666 = vmatpush.msra.mxu0 %v562
        %667 = vmatpush.msra.mxu0 %v556
        %668 = vmatpush.msra.mxu0 %v550
        %669 = vmatmul.f32.gmra.mxu0 %v574
        %v670 = vpop.f32.mrf.mxu0
        %v671 = vadd.f32 0.0, %v670
        %672 = vmatmul.f32.gmra.mxu0 %v577
        %v673 = vpop.f32.mrf.mxu0
        %v674 = vadd.f32 0.0, %v673
        %675 = vmatmul.f32.gmra.mxu0 %v580
        %v676 = vpop.f32.mrf.mxu0
        %v677 = vadd.f32 0.0, %v676
        %678 = vdwg.mxu0
        %679 = vmatpush.msra.mxu0 0.0
        %680 = vmatpush.msra.mxu0 0.0
        %681 = vmatpush.msra.mxu0 0.0
        %682 = vmatpush.msra.mxu0 0.0
        %683 = vmatpush.msra.mxu0 0.0
        %684 = vmatpush.msra.mxu0 0.0
        %685 = vmatpush.msra.mxu0 0.0
        %686 = vmatpush.msra.mxu0 0.0
        %687 = vmatpush.msra.mxu0 0.0
        %688 = vmatpush.msra.mxu0 0.0
        %689 = vmatpush.msra.mxu0 0.0
        %690 = vmatpush.msra.mxu0 0.0
        %691 = vmatpush.msra.mxu0 %v593
        %692 = vmatpush.msra.mxu0 %v563
        %693 = vmatpush.msra.mxu0 %v557
        %694 = vmatpush.msra.mxu0 %v551
        %695 = vmatmul.f32.gmra.mxu0 %v574
        %v696 = vpop.f32.mrf.mxu0
        %v697 = vadd.f32 0.0, %v696
        %698 = vmatmul.f32.gmra.mxu0 %v577
        %v699 = vpop.f32.mrf.mxu0
        %v700 = vadd.f32 0.0, %v699
        %701 = vmatmul.f32.gmra.mxu0 %v580
        %v702 = vpop.f32.mrf.mxu0
        %v703 = vadd.f32 0.0, %v702
        %704 = vdwg.mxu0
        %705 = vmatpush.msra.mxu0 0.0
        %706 = vmatpush.msra.mxu0 0.0
        %707 = vmatpush.msra.mxu0 0.0
        %708 = vmatpush.msra.mxu0 0.0
        %709 = vmatpush.msra.mxu0 0.0
        %710 = vmatpush.msra.mxu0 0.0
        %711 = vmatpush.msra.mxu0 0.0
        %712 = vmatpush.msra.mxu0 0.0
        %713 = vmatpush.msra.mxu0 0.0
        %714 = vmatpush.msra.mxu0 0.0
        %715 = vmatpush.msra.mxu0 0.0
        %716 = vmatpush.msra.mxu0 0.0
        %717 = vmatpush.msra.mxu0 %v596
        %718 = vmatpush.msra.mxu0 %v564
        %719 = vmatpush.msra.mxu0 %v558
        %720 = vmatpush.msra.mxu0 %v552
        %721 = vmatmul.f32.gmra.mxu0 %v574
        %v722 = vpop.f32.mrf.mxu0
        %v723 = vadd.f32 0.0, %v722
        %724 = vmatmul.f32.gmra.mxu0 %v577
        %v725 = vpop.f32.mrf.mxu0
        %v726 = vadd.f32 0.0, %v725
        %727 = vmatmul.f32.gmra.mxu0 %v580
        %v728 = vpop.f32.mrf.mxu0
        %v729 = vadd.f32 0.0, %v728
        %730 = vdwg.mxu0
        %731 = vmatpush.msra.mxu0 0.0
        %732 = vmatpush.msra.mxu0 0.0
        %733 = vmatpush.msra.mxu0 0.0
        %734 = vmatpush.msra.mxu0 0.0
        %735 = vmatpush.msra.mxu0 0.0
        %736 = vmatpush.msra.mxu0 0.0
        %737 = vmatpush.msra.mxu0 0.0
        %738 = vmatpush.msra.mxu0 0.0
        %739 = vmatpush.msra.mxu0 0.0
        %740 = vmatpush.msra.mxu0 0.0
        %741 = vmatpush.msra.mxu0 0.0
        %742 = vmatpush.msra.mxu0 0.0
        %743 = vmatpush.msra.mxu0 %v599
        %744 = vmatpush.msra.mxu0 %v565
        %745 = vmatpush.msra.mxu0 %v559
        %746 = vmatpush.msra.mxu0 %v553
        %747 = vmatmul.f32.gmra.mxu0 %v574
        %v748 = vpop.f32.mrf.mxu0
        %v749 = vadd.f32 0.0, %v748
        %750 = vmatmul.f32.gmra.mxu0 %v577
        %v751 = vpop.f32.mrf.mxu0
        %v752 = vadd.f32 0.0, %v751
        %753 = vmatmul.f32.gmra.mxu0 %v580
        %v754 = vpop.f32.mrf.mxu0
        %v755 = vadd.f32 0.0, %v754
        %756 = vdwg.mxu0
        %v757 = vld [vmem:[%s285] ss:$8 sm:$0xf]
        %v758 = vld [vmem:[%s285] ss:$8 sm:$0x30]
        %v759 = vor.u32 %v757, %v758
        %760 = vst.msk [vmem:[#allocation2] ss:$8 sm:$0xf] %vm282, %v759
        %761 = vst.msk [vmem:[#allocation2] ss:$8 sm:$0x30] %vm282, %v759
        %v762 = vld [vmem:[%s275] ss:$8 sm:$0xf]
        %v763 = vld [vmem:[%s275] ss:$8 sm:$0x30]
        %v764 = vor.u32 %v762, %v763
        %766 = vrot.lane.b32.xlu0 %v764, 127
        %v767 = vpop.permute.xlu0 %766
        %v768 = vrot.slane %v767, 1
        %v769 = vsel %vm299, %v767, %v768
        %771 = vst.msk [vmem:[%s289] ss:$8 sm:$0xf] %vm282, %v769
        %772 = vst.msk [vmem:[%s289] ss:$8 sm:$0x30] %vm282, %v769
        %v773 = vld [vmem:[%s285] ss:$8 sm:$0xf]
        %v774 = vld [vmem:[%s285] ss:$8 sm:$0x30]
        %v775 = vor.u32 %v773, %v774
        %777 = vrot.lane.b32.xlu0 %v775, 127
        %v778 = vpop.permute.xlu0 %777
        %v779 = vrot.slane %v778, 1
        %v780 = vsel %vm299, %v778, %v779
        %782 = vst.msk [vmem:[%s302] ss:$8 sm:$0xf] %vm282, %v780
        %783 = vst.msk [vmem:[%s302] ss:$8 sm:$0x30] %vm282, %v780
        %v784 = vld [vmem:[%s312] ss:$8 sm:$0xf]
        %v785 = vld [vmem:[%s312] ss:$8 sm:$0x30]
        %v786 = vor.u32 %v784, %v785
        %787 = vst.msk [vmem:[%s309] ss:$8 sm:$0xf] %vm282, %v786
        %788 = vst.msk [vmem:[%s309] ss:$8 sm:$0x30] %vm282, %v786
        %v789 = vld [vmem:[%s305] ss:$8 sm:$0xf]
        %v790 = vld [vmem:[%s305] ss:$8 sm:$0x30]
        %v791 = vor.u32 %v789, %v790
        %793 = vrot.lane.b32.xlu0 %v791, 127
        %v794 = vpop.permute.xlu0 %793
        %v795 = vrot.slane %v794, 1
        %v796 = vsel %vm299, %v794, %v795
        %798 = vst.msk [vmem:[%s316] ss:$8 sm:$0xf] %vm282, %v796
        %799 = vst.msk [vmem:[%s316] ss:$8 sm:$0x30] %vm282, %v796
        %v800 = vld [vmem:[%s312] ss:$8 sm:$0xf]
        %v801 = vld [vmem:[%s312] ss:$8 sm:$0x30]
        %v802 = vor.u32 %v800, %v801
        %804 = vrot.lane.b32.xlu0 %v802, 127
        %v805 = vpop.permute.xlu0 %804
        %v806 = vrot.slane %v805, 1
        %v807 = vsel %vm299, %v805, %v806
        %809 = vst.msk [vmem:[%s328] ss:$8 sm:$0xf] %vm282, %v807
        %810 = vst.msk [vmem:[%s328] ss:$8 sm:$0x30] %vm282, %v807
        %v811 = vld [vmem:[%s285] ss:$8 sm:$0xf]
        %v812 = vld [vmem:[%s285] ss:$8 sm:$0x30]
        %v813 = vor.u32 %v811, %v812
        %815 = vrot.lane.b32.xlu0 %v813, 102
        %v816 = vpop.permute.xlu0 %815
        %v817 = vrot.slane %v816, 1
        %v818 = vsel %vm338, %v816, %v817
        %820 = vst.msk [vmem:[%s341] ss:$8 sm:$0xf] %vm282, %v818
        %821 = vst.msk [vmem:[%s341] ss:$8 sm:$0x30] %vm282, %v818
        %v822 = vld [vmem:[%s275] ss:$8 sm:$0xf]
        %v823 = vld [vmem:[%s275] ss:$8 sm:$0x30]
        %v824 = vor.u32 %v822, %v823
        %826 = vrot.lane.b32.xlu0 %v824, 101
        %v827 = vpop.permute.xlu0 %826
        %v828 = vrot.slane %v827, 1
        %v829 = vsel %vm363, %v827, %v828
        %831 = vst.msk [vmem:[%s353] ss:$8 sm:$0xf] %vm282, %v829
        %832 = vst.msk [vmem:[%s353] ss:$8 sm:$0x30] %vm282, %v829
        %v833 = vld [vmem:[%s285] ss:$8 sm:$0xf]
        %v834 = vld [vmem:[%s285] ss:$8 sm:$0x30]
        %v835 = vor.u32 %v833, %v834
        %837 = vrot.lane.b32.xlu0 %v835, 101
        %v838 = vpop.permute.xlu0 %837
        %v839 = vrot.slane %v838, 1
        %v840 = vsel %vm363, %v838, %v839
        %842 = vst.msk [vmem:[%s366] ss:$8 sm:$0xf] %vm282, %v840
        %843 = vst.msk [vmem:[%s366] ss:$8 sm:$0x30] %vm282, %v840
        %v844 = vld [vmem:[%s376] ss:$8 sm:$0xf]
        %v845 = vld [vmem:[%s376] ss:$8 sm:$0x30]
        %v846 = vor.u32 %v844, %v845
        %847 = vst.msk [vmem:[%s373] ss:$8 sm:$0xf] %vm282, %v846
        %848 = vst.msk [vmem:[%s373] ss:$8 sm:$0x30] %vm282, %v846
        %v849 = vld [vmem:[%s369] ss:$8 sm:$0xf]
        %v850 = vld [vmem:[%s369] ss:$8 sm:$0x30]
        %v851 = vor.u32 %v849, %v850
        %853 = vrot.lane.b32.xlu0 %v851, 127
        %v854 = vpop.permute.xlu0 %853
        %v855 = vrot.slane %v854, 1
        %v856 = vsel %vm299, %v854, %v855
        %858 = vst.msk [vmem:[%s380] ss:$8 sm:$0xf] %vm282, %v856
        %859 = vst.msk [vmem:[%s380] ss:$8 sm:$0x30] %vm282, %v856
        %v860 = vld [vmem:[%s376] ss:$8 sm:$0xf]
        %v861 = vld [vmem:[%s376] ss:$8 sm:$0x30]
        %v862 = vor.u32 %v860, %v861
        %864 = vrot.lane.b32.xlu0 %v862, 127
        %v865 = vpop.permute.xlu0 %864
        %v866 = vrot.slane %v865, 1
        %v867 = vsel %vm299, %v865, %v866
        %869 = vst.msk [vmem:[%s392] ss:$8 sm:$0xf] %vm282, %v867
        %870 = vst.msk [vmem:[%s392] ss:$8 sm:$0x30] %vm282, %v867
        %v871 = vld [vmem:[%s402] ss:$8 sm:$0xf]
        %v872 = vld [vmem:[%s402] ss:$8 sm:$0x30]
        %v873 = vor.u32 %v871, %v872
        %874 = vst.msk [vmem:[%s399] ss:$8 sm:$0xf] %vm282, %v873
        %875 = vst.msk [vmem:[%s399] ss:$8 sm:$0x30] %vm282, %v873
        %v876 = vld [vmem:[%s395] ss:$8 sm:$0xf]
        %v877 = vld [vmem:[%s395] ss:$8 sm:$0x30]
        %v878 = vor.u32 %v876, %v877
        %880 = vrot.lane.b32.xlu0 %v878, 127
        %v881 = vpop.permute.xlu0 %880
        %v882 = vrot.slane %v881, 1
        %v883 = vsel %vm299, %v881, %v882
        %885 = vst.msk [vmem:[%s406] ss:$8 sm:$0xf] %vm282, %v883
        %886 = vst.msk [vmem:[%s406] ss:$8 sm:$0x30] %vm282, %v883
        %v887 = vld [vmem:[%s402] ss:$8 sm:$0xf]
        %v888 = vld [vmem:[%s402] ss:$8 sm:$0x30]
        %v889 = vor.u32 %v887, %v888
        %891 = vrot.lane.b32.xlu0 %v889, 127
        %v892 = vpop.permute.xlu0 %891
        %v893 = vrot.slane %v892, 1
        %v894 = vsel %vm299, %v892, %v893
        %896 = vst.msk [vmem:[%s418] ss:$8 sm:$0xf] %vm282, %v894
        %897 = vst.msk [vmem:[%s418] ss:$8 sm:$0x30] %vm282, %v894
        %v898 = vld [vmem:[%s376] ss:$8 sm:$0xf]
        %v899 = vld [vmem:[%s376] ss:$8 sm:$0x30]
        %v900 = vor.u32 %v898, %v899
        %902 = vrot.lane.b32.xlu0 %v900, 102
        %v903 = vpop.permute.xlu0 %902
        %v904 = vrot.slane %v903, 1
        %v905 = vsel %vm338, %v903, %v904
        %907 = vst.msk [vmem:[%s430] ss:$8 sm:$0xf] %vm282, %v905
        %908 = vst.msk [vmem:[%s430] ss:$8 sm:$0x30] %vm282, %v905
        %v909 = vld [vmem:[%s369] ss:$8 sm:$0xf]
        %v910 = vld [vmem:[%s369] ss:$8 sm:$0x30]
        %v911 = vor.u32 %v909, %v910
        %913 = vrot.lane.b32.xlu0 %v911, 101
        %v914 = vpop.permute.xlu0 %913
        %v915 = vrot.slane %v914, 1
        %v916 = vsel %vm363, %v914, %v915
        %918 = vst.msk [vmem:[%s442] ss:$8 sm:$0xf] %vm282, %v916
        %919 = vst.msk [vmem:[%s442] ss:$8 sm:$0x30] %vm282, %v916
        %v920 = vld [vmem:[%s376] ss:$8 sm:$0xf]
        %v921 = vld [vmem:[%s376] ss:$8 sm:$0x30]
        %v922 = vor.u32 %v920, %v921
        %924 = vrot.lane.b32.xlu0 %v922, 101
        %v925 = vpop.permute.xlu0 %924
        %v926 = vrot.slane %v925, 1
        %v927 = vsel %vm363, %v925, %v926
        %929 = vst.msk [vmem:[%s454] ss:$8 sm:$0xf] %vm282, %v927
        %930 = vst.msk [vmem:[%s454] ss:$8 sm:$0x30] %vm282, %v927
        %v931 = vld [vmem:[%s464] ss:$8 sm:$0xf]
        %v932 = vld [vmem:[%s464] ss:$8 sm:$0x30]
        %v933 = vor.u32 %v931, %v932
        %934 = vst.msk [vmem:[%s461] ss:$8 sm:$0xf] %vm282, %v933
        %935 = vst.msk [vmem:[%s461] ss:$8 sm:$0x30] %vm282, %v933
        %v936 = vld [vmem:[%s457] ss:$8 sm:$0xf]
        %v937 = vld [vmem:[%s457] ss:$8 sm:$0x30]
        %v938 = vor.u32 %v936, %v937
        %940 = vrot.lane.b32.xlu0 %v938, 127
        %v941 = vpop.permute.xlu0 %940
        %v942 = vrot.slane %v941, 1
        %v943 = vsel %vm299, %v941, %v942
        %945 = vst.msk [vmem:[%s468] ss:$8 sm:$0xf] %vm282, %v943
        %946 = vst.msk [vmem:[%s468] ss:$8 sm:$0x30] %vm282, %v943
        %v947 = vld [vmem:[%s464] ss:$8 sm:$0xf]
        %v948 = vld [vmem:[%s464] ss:$8 sm:$0x30]
        %v949 = vor.u32 %v947, %v948
        %951 = vrot.lane.b32.xlu0 %v949, 127
        %v952 = vpop.permute.xlu0 %951
        %v953 = vrot.slane %v952, 1
        %v954 = vsel %vm299, %v952, %v953
        %956 = vst.msk [vmem:[%s480] ss:$8 sm:$0xf] %vm282, %v954
        %957 = vst.msk [vmem:[%s480] ss:$8 sm:$0x30] %vm282, %v954
        %v958 = vld [vmem:[%s490] ss:$8 sm:$0xf]
        %v959 = vld [vmem:[%s490] ss:$8 sm:$0x30]
        %v960 = vor.u32 %v958, %v959
        %961 = vst.msk [vmem:[%s487] ss:$8 sm:$0xf] %vm282, %v960
        %962 = vst.msk [vmem:[%s487] ss:$8 sm:$0x30] %vm282, %v960
        %v963 = vld [vmem:[%s483] ss:$8 sm:$0xf]
        %v964 = vld [vmem:[%s483] ss:$8 sm:$0x30]
        %v965 = vor.u32 %v963, %v964
        %967 = vrot.lane.b32.xlu0 %v965, 127
        %v968 = vpop.permute.xlu0 %967
        %v969 = vrot.slane %v968, 1
        %v970 = vsel %vm299, %v968, %v969
        %972 = vst.msk [vmem:[%s494] ss:$8 sm:$0xf] %vm282, %v970
        %973 = vst.msk [vmem:[%s494] ss:$8 sm:$0x30] %vm282, %v970
        %v974 = vld [vmem:[%s490] ss:$8 sm:$0xf]
        %v975 = vld [vmem:[%s490] ss:$8 sm:$0x30]
        %v976 = vor.u32 %v974, %v975
        %978 = vrot.lane.b32.xlu0 %v976, 127
        %v979 = vpop.permute.xlu0 %978
        %v980 = vrot.slane %v979, 1
        %v981 = vsel %vm299, %v979, %v980
        %983 = vst.msk [vmem:[%s506] ss:$8 sm:$0xf] %vm282, %v981
        %984 = vst.msk [vmem:[%s506] ss:$8 sm:$0x30] %vm282, %v981
        %v985 = vld [vmem:[%s464] ss:$8 sm:$0xf]
        %v986 = vld [vmem:[%s464] ss:$8 sm:$0x30]
        %v987 = vor.u32 %v985, %v986
        %989 = vrot.lane.b32.xlu0 %v987, 102
        %v990 = vpop.permute.xlu0 %989
        %v991 = vrot.slane %v990, 1
        %v992 = vsel %vm338, %v990, %v991
        %994 = vst.msk [vmem:[%s518] ss:$8 sm:$0xf] %vm282, %v992
        %995 = vst.msk [vmem:[%s518] ss:$8 sm:$0x30] %vm282, %v992
        %v996 = vld [vmem:[%s457] ss:$8 sm:$0xf]
        %v997 = vld [vmem:[%s457] ss:$8 sm:$0x30]
        %v998 = vor.u32 %v996, %v997
        %1000 = vrot.lane.b32.xlu0 %v998, 101
        %v1001 = vpop.permute.xlu0 %1000
        %v1002 = vrot.slane %v1001, 1
        %v1003 = vsel %vm363, %v1001, %v1002
        %1005 = vst.msk [vmem:[%s530] ss:$8 sm:$0xf] %vm282, %v1003
        %1006 = vst.msk [vmem:[%s530] ss:$8 sm:$0x30] %vm282, %v1003
        %v1007 = vld [vmem:[%s464] ss:$8 sm:$0xf]
        %v1008 = vld [vmem:[%s464] ss:$8 sm:$0x30]
        %v1009 = vor.u32 %v1007, %v1008
        %1011 = vrot.lane.b32.xlu0 %v1009, 101
        %v1012 = vpop.permute.xlu0 %1011
        %v1013 = vrot.slane %v1012, 1
        %v1014 = vsel %vm363, %v1012, %v1013
        %1016 = vst.msk [vmem:[%s542] ss:$8 sm:$0xf] %vm282, %v1014
        %1017 = vst.msk [vmem:[%s542] ss:$8 sm:$0x30] %vm282, %v1014
        %v1018 = vld [vmem:[%s1] sm:$0xff]
        %v1019 = vld [vmem:[%s1 + $0x8] sm:$0xff]
        %v1020 = vld [vmem:[%s1 + $0x10] sm:$0x3]
        %v1021 = vld [vmem:[#allocation2] sm:$0xff]
        %v1022 = vld [vmem:[#allocation2 + $0x8] sm:$0xff]
        %v1023 = vld [vmem:[#allocation2 + $0x10] sm:$0xff]
        %v1024 = vld [vmem:[#allocation2 + $0x18] sm:$0xff]
        %v1025 = vld [vmem:[#allocation2 + $0x20] sm:$0xff]
        %v1026 = vld [vmem:[#allocation2 + $0x28] sm:$0xff]
        %v1027 = vld [vmem:[#allocation2 + $0x30] sm:$0xff]
        %v1028 = vld [vmem:[#allocation2 + $0x38] sm:$0xff]
        %v1029 = vld [vmem:[#allocation2 + $0x40] sm:$0xff]
        %v1030 = vld [vmem:[#allocation2 + $0x48] sm:$0xff]
        %v1031 = vld [vmem:[#allocation2 + $0x50] sm:$0xff]
        %v1032 = vld [vmem:[#allocation2 + $0x58] sm:$0xff]
        %v1033 = vld [vmem:[#allocation2 + $0x60] sm:$0xff]
        %v1034 = vld [vmem:[#allocation2 + $0x68] sm:$0xff]
        %v1035 = vld [vmem:[#allocation2 + $0x70] sm:$0xff]
        %v1036 = vld [vmem:[#allocation2 + $0x78] sm:$0xff]
        %v1037 = vld [vmem:[#allocation2 + $0x80] sm:$0xff]
        %v1038 = vld [vmem:[#allocation2 + $0x88] sm:$0xff]
        %v1039 = vld [vmem:[#allocation2 + $0x90] sm:$0x7]
        %v1040 = vld [vmem:[#allocation2 + $0x98] sm:$0x7]
        %v1041 = vld [vmem:[#allocation2 + $0xa0] sm:$0x7]
        %v1042 = vld [vmem:[#allocation2 + $0xa8] sm:$0x7]
        %v1043 = vld [vmem:[#allocation2 + $0xb0] sm:$0x7]
        %v1044 = vld [vmem:[#allocation2 + $0xb8] sm:$0x7]
        %v1046 = vsel %vm572, %v1018, 0
        %v1049 = vsel %vm572, %v1019, 0
        %v1052 = vsel %vm572, %v1020, 0
        %v1055 = vsel %vm582, %v1039, 0
        %v1058 = vsel %vm582, %v1040, 0
        %v1061 = vsel %vm582, %v1041, 0
        %v1064 = vsel %vm582, %v1042, 0
        %v1067 = vsel %vm582, %v1043, 0
        %v1070 = vsel %vm582, %v1044, 0
        %1072 = vmatpush.msra.mxu0 0.0
        %1073 = vmatpush.msra.mxu0 0.0
        %1074 = vmatpush.msra.mxu0 0.0
        %1075 = vmatpush.msra.mxu0 0.0
        %1076 = vmatpush.msra.mxu0 0.0
        %1077 = vmatpush.msra.mxu0 0.0
        %1078 = vmatpush.msra.mxu0 0.0
        %1079 = vmatpush.msra.mxu0 0.0
        %1080 = vmatpush.msra.mxu0 0.0
        %1081 = vmatpush.msra.mxu0 0.0
        %1082 = vmatpush.msra.mxu0 0.0
        %1083 = vmatpush.msra.mxu0 0.0
        %1084 = vmatpush.msra.mxu0 %v1055
        %1085 = vmatpush.msra.mxu0 %v1033
        %1086 = vmatpush.msra.mxu0 %v1027
        %1087 = vmatpush.msra.mxu0 %v1021
        %1088 = vmatmul.f32.gmra.mxu0 %v1046
        %v1089 = vpop.f32.mrf.mxu0
        %v1090 = vadd.f32 0.0, %v1089
        %1091 = vmatmul.f32.gmra.mxu0 %v1049
        %v1092 = vpop.f32.mrf.mxu0
        %v1093 = vadd.f32 0.0, %v1092
        %1094 = vmatmul.f32.gmra.mxu0 %v1052
        %v1095 = vpop.f32.mrf.mxu0
        %v1096 = vadd.f32 0.0, %v1095
        %1097 = vdwg.mxu0
        %1098 = vmatpush.msra.mxu0 0.0
        %1099 = vmatpush.msra.mxu0 0.0
        %1100 = vmatpush.msra.mxu0 0.0
        %1101 = vmatpush.msra.mxu0 0.0
        %1102 = vmatpush.msra.mxu0 0.0
        %1103 = vmatpush.msra.mxu0 0.0
        %1104 = vmatpush.msra.mxu0 0.0
        %1105 = vmatpush.msra.mxu0 0.0
        %1106 = vmatpush.msra.mxu0 0.0
        %1107 = vmatpush.msra.mxu0 0.0
        %1108 = vmatpush.msra.mxu0 0.0
        %1109 = vmatpush.msra.mxu0 0.0
        %1110 = vmatpush.msra.mxu0 %v1058
        %1111 = vmatpush.msra.mxu0 %v1034
        %1112 = vmatpush.msra.mxu0 %v1028
        %1113 = vmatpush.msra.mxu0 %v1022
        %1114 = vmatmul.f32.gmra.mxu0 %v1046
        %v1115 = vpop.f32.mrf.mxu0
        %v1116 = vadd.f32 0.0, %v1115
        %1117 = vmatmul.f32.gmra.mxu0 %v1049
        %v1118 = vpop.f32.mrf.mxu0
        %v1119 = vadd.f32 0.0, %v1118
        %1120 = vmatmul.f32.gmra.mxu0 %v1052
        %v1121 = vpop.f32.mrf.mxu0
        %v1122 = vadd.f32 0.0, %v1121
        %1123 = vdwg.mxu0
        %1124 = vmatpush.msra.mxu0 0.0
        %1125 = vmatpush.msra.mxu0 0.0
        %1126 = vmatpush.msra.mxu0 0.0
        %1127 = vmatpush.msra.mxu0 0.0
        %1128 = vmatpush.msra.mxu0 0.0
        %1129 = vmatpush.msra.mxu0 0.0
        %1130 = vmatpush.msra.mxu0 0.0
        %1131 = vmatpush.msra.mxu0 0.0
        %1132 = vmatpush.msra.mxu0 0.0
        %1133 = vmatpush.msra.mxu0 0.0
        %1134 = vmatpush.msra.mxu0 0.0
        %1135 = vmatpush.msra.mxu0 0.0
        %1136 = vmatpush.msra.mxu0 %v1061
        %1137 = vmatpush.msra.mxu0 %v1035
        %1138 = vmatpush.msra.mxu0 %v1029
        %1139 = vmatpush.msra.mxu0 %v1023
        %1140 = vmatmul.f32.gmra.mxu0 %v1046
        %v1141 = vpop.f32.mrf.mxu0
        %v1142 = vadd.f32 0.0, %v1141
        %1143 = vmatmul.f32.gmra.mxu0 %v1049
        %v1144 = vpop.f32.mrf.mxu0
        %v1145 = vadd.f32 0.0, %v1144
        %1146 = vmatmul.f32.gmra.mxu0 %v1052
        %v1147 = vpop.f32.mrf.mxu0
        %v1148 = vadd.f32 0.0, %v1147
        %1149 = vdwg.mxu0
        %1150 = vmatpush.msra.mxu0 0.0
        %1151 = vmatpush.msra.mxu0 0.0
        %1152 = vmatpush.msra.mxu0 0.0
        %1153 = vmatpush.msra.mxu0 0.0
        %1154 = vmatpush.msra.mxu0 0.0
        %1155 = vmatpush.msra.mxu0 0.0
        %1156 = vmatpush.msra.mxu0 0.0
        %1157 = vmatpush.msra.mxu0 0.0
        %1158 = vmatpush.msra.mxu0 0.0
        %1159 = vmatpush.msra.mxu0 0.0
        %1160 = vmatpush.msra.mxu0 0.0
        %1161 = vmatpush.msra.mxu0 0.0
        %1162 = vmatpush.msra.mxu0 %v1064
        %1163 = vmatpush.msra.mxu0 %v1036
        %1164 = vmatpush.msra.mxu0 %v1030
        %1165 = vmatpush.msra.mxu0 %v1024
        %1166 = vmatmul.f32.gmra.mxu0 %v1046
        %v1167 = vpop.f32.mrf.mxu0
        %v1168 = vadd.f32 0.0, %v1167
        %1169 = vmatmul.f32.gmra.mxu0 %v1049
        %v1170 = vpop.f32.mrf.mxu0
        %v1171 = vadd.f32 0.0, %v1170
        %1172 = vmatmul.f32.gmra.mxu0 %v1052
        %v1173 = vpop.f32.mrf.mxu0
        %v1174 = vadd.f32 0.0, %v1173
        %1175 = vdwg.mxu0
        %1176 = vmatpush.msra.mxu0 0.0
        %1177 = vmatpush.msra.mxu0 0.0
        %1178 = vmatpush.msra.mxu0 0.0
        %1179 = vmatpush.msra.mxu0 0.0
        %1180 = vmatpush.msra.mxu0 0.0
        %1181 = vmatpush.msra.mxu0 0.0
        %1182 = vmatpush.msra.mxu0 0.0
        %1183 = vmatpush.msra.mxu0 0.0
        %1184 = vmatpush.msra.mxu0 0.0
        %1185 = vmatpush.msra.mxu0 0.0
        %1186 = vmatpush.msra.mxu0 0.0
        %1187 = vmatpush.msra.mxu0 0.0
        %1188 = vmatpush.msra.mxu0 %v1067
        %1189 = vmatpush.msra.mxu0 %v1037
        %1190 = vmatpush.msra.mxu0 %v1031
        %1191 = vmatpush.msra.mxu0 %v1025
        %1192 = vmatmul.f32.gmra.mxu0 %v1046
        %v1193 = vpop.f32.mrf.mxu0
        %v1194 = vadd.f32 0.0, %v1193
        %1195 = vmatmul.f32.gmra.mxu0 %v1049
        %v1196 = vpop.f32.mrf.mxu0
        %v1197 = vadd.f32 0.0, %v1196
        %1198 = vmatmul.f32.gmra.mxu0 %v1052
        %v1199 = vpop.f32.mrf.mxu0
        %v1200 = vadd.f32 0.0, %v1199
        %1201 = vdwg.mxu0
        %1202 = vmatpush.msra.mxu0 0.0
        %1203 = vmatpush.msra.mxu0 0.0
        %1204 = vmatpush.msra.mxu0 0.0
        %1205 = vmatpush.msra.mxu0 0.0
        %1206 = vmatpush.msra.mxu0 0.0
        %1207 = vmatpush.msra.mxu0 0.0
        %1208 = vmatpush.msra.mxu0 0.0
        %1209 = vmatpush.msra.mxu0 0.0
        %1210 = vmatpush.msra.mxu0 0.0
        %1211 = vmatpush.msra.mxu0 0.0
        %1212 = vmatpush.msra.mxu0 0.0
        %1213 = vmatpush.msra.mxu0 0.0
        %1214 = vmatpush.msra.mxu0 %v1070
        %1215 = vmatpush.msra.mxu0 %v1038
        %1216 = vmatpush.msra.mxu0 %v1032
        %1217 = vmatpush.msra.mxu0 %v1026
        %1218 = vmatmul.f32.gmra.mxu0 %v1046
        %v1219 = vpop.f32.mrf.mxu0
        %v1220 = vadd.f32 0.0, %v1219
        %1221 = vmatmul.f32.gmra.mxu0 %v1049
        %v1222 = vpop.f32.mrf.mxu0
        %v1223 = vadd.f32 0.0, %v1222
        %1224 = vmatmul.f32.gmra.mxu0 %v1052
        %v1225 = vpop.f32.mrf.mxu0
        %v1226 = vadd.f32 0.0, %v1225
        %1227 = vdwg.mxu0
        %v1228 = vmax.f32 %v619, %v1090
        %v1229 = vmax.f32 %v645, %v1116
        %v1230 = vmax.f32 %v671, %v1142
        %v1231 = vmax.f32 %v697, %v1168
        %v1232 = vmax.f32 %v723, %v1194
        %v1233 = vmax.f32 %v749, %v1220
        %v1234 = vmax.f32 %v622, %v1093
        %v1235 = vmax.f32 %v648, %v1119
        %v1236 = vmax.f32 %v674, %v1145
        %v1237 = vmax.f32 %v700, %v1171
        %v1238 = vmax.f32 %v726, %v1197
        %v1239 = vmax.f32 %v752, %v1223
        %v1240 = vmax.f32 %v625, %v1096
        %v1241 = vmax.f32 %v651, %v1122
        %v1242 = vmax.f32 %v677, %v1148
        %v1243 = vmax.f32 %v703, %v1174
        %v1244 = vmax.f32 %v729, %v1200
        %v1245 = vmax.f32 %v755, %v1226
        %v1246 = vld [vmem:[%s305] ss:$8 sm:$0xf]
        %v1247 = vld [vmem:[%s305] ss:$8 sm:$0x30]
        %v1248 = vor.u32 %v1246, %v1247
        %1249 = vst.msk [vmem:[#allocation2] ss:$8 sm:$0xf] %vm282, %v1248
        %1250 = vst.msk [vmem:[#allocation2] ss:$8 sm:$0x30] %vm282, %v1248
        %v1251 = vld [vmem:[%s312] ss:$8 sm:$0xf]
        %v1252 = vld [vmem:[%s312] ss:$8 sm:$0x30]
        %v1253 = vor.u32 %v1251, %v1252
        %1254 = vst.msk [vmem:[%s289] ss:$8 sm:$0xf] %vm282, %v1253
        %1255 = vst.msk [vmem:[%s289] ss:$8 sm:$0x30] %vm282, %v1253
        %v1256 = vld [vmem:[%s305] ss:$8 sm:$0xf]
        %v1257 = vld [vmem:[%s305] ss:$8 sm:$0x30]
        %v1258 = vor.u32 %v1256, %v1257
        %1260 = vrot.lane.b32.xlu0 %v1258, 127
        %v1261 = vpop.permute.xlu0 %1260
        %v1262 = vrot.slane %v1261, 1
        %v1263 = vsel %vm299, %v1261, %v1262
        %1265 = vst.msk [vmem:[%s302] ss:$8 sm:$0xf] %vm282, %v1263
        %1266 = vst.msk [vmem:[%s302] ss:$8 sm:$0x30] %vm282, %v1263
        %v1267 = vld [vmem:[%s275] ss:$8 sm:$0xf]
        %v1268 = vld [vmem:[%s275] ss:$8 sm:$0x30]
        %v1269 = vor.u32 %v1267, %v1268
        %1271 = vrot.lane.b32.xlu0 %v1269, 102
        %v1272 = vpop.permute.xlu0 %1271
        %v1273 = vrot.slane %v1272, 1
        %v1274 = vsel %vm338, %v1272, %v1273
        %1276 = vst.msk [vmem:[%s309] ss:$8 sm:$0xf] %vm282, %v1274
        %1277 = vst.msk [vmem:[%s309] ss:$8 sm:$0x30] %vm282, %v1274
        %v1278 = vld [vmem:[%s285] ss:$8 sm:$0xf]
        %v1279 = vld [vmem:[%s285] ss:$8 sm:$0x30]
        %v1280 = vor.u32 %v1278, %v1279
        %1282 = vrot.lane.b32.xlu0 %v1280, 102
        %v1283 = vpop.permute.xlu0 %1282
        %v1284 = vrot.slane %v1283, 1
        %v1285 = vsel %vm338, %v1283, %v1284
        %1287 = vst.msk [vmem:[%s316] ss:$8 sm:$0xf] %vm282, %v1285
        %1288 = vst.msk [vmem:[%s316] ss:$8 sm:$0x30] %vm282, %v1285
        %v1289 = vld [vmem:[%s275] ss:$8 sm:$0xf]
        %v1290 = vld [vmem:[%s275] ss:$8 sm:$0x30]
        %v1291 = vor.u32 %v1289, %v1290
        %1293 = vrot.lane.b32.xlu0 %v1291, 101
        %v1294 = vpop.permute.xlu0 %1293
        %v1295 = vrot.slane %v1294, 1
        %v1296 = vsel %vm363, %v1294, %v1295
        %1298 = vst.msk [vmem:[%s328] ss:$8 sm:$0xf] %vm282, %v1296
        %1299 = vst.msk [vmem:[%s328] ss:$8 sm:$0x30] %vm282, %v1296
        %v1300 = vld [vmem:[%s305] ss:$8 sm:$0xf]
        %v1301 = vld [vmem:[%s305] ss:$8 sm:$0x30]
        %v1302 = vor.u32 %v1300, %v1301
        %1304 = vrot.lane.b32.xlu0 %v1302, 102
        %v1305 = vpop.permute.xlu0 %1304
        %v1306 = vrot.slane %v1305, 1
        %v1307 = vsel %vm338, %v1305, %v1306
        %1309 = vst.msk [vmem:[%s341] ss:$8 sm:$0xf] %vm282, %v1307
        %1310 = vst.msk [vmem:[%s341] ss:$8 sm:$0x30] %vm282, %v1307
        %v1311 = vld [vmem:[%s312] ss:$8 sm:$0xf]
        %v1312 = vld [vmem:[%s312] ss:$8 sm:$0x30]
        %v1313 = vor.u32 %v1311, %v1312
        %1315 = vrot.lane.b32.xlu0 %v1313, 102
        %v1316 = vpop.permute.xlu0 %1315
        %v1317 = vrot.slane %v1316, 1
        %v1318 = vsel %vm338, %v1316, %v1317
        %1320 = vst.msk [vmem:[%s353] ss:$8 sm:$0xf] %vm282, %v1318
        %1321 = vst.msk [vmem:[%s353] ss:$8 sm:$0x30] %vm282, %v1318
        %v1322 = vld [vmem:[%s305] ss:$8 sm:$0xf]
        %v1323 = vld [vmem:[%s305] ss:$8 sm:$0x30]
        %v1324 = vor.u32 %v1322, %v1323
        %1326 = vrot.lane.b32.xlu0 %v1324, 101
        %v1327 = vpop.permute.xlu0 %1326
        %v1328 = vrot.slane %v1327, 1
        %v1329 = vsel %vm363, %v1327, %v1328
        %1331 = vst.msk [vmem:[%s366] ss:$8 sm:$0xf] %vm282, %v1329
        %1332 = vst.msk [vmem:[%s366] ss:$8 sm:$0x30] %vm282, %v1329
        %v1333 = vld [vmem:[%s395] ss:$8 sm:$0xf]
        %v1334 = vld [vmem:[%s395] ss:$8 sm:$0x30]
        %v1335 = vor.u32 %v1333, %v1334
        %1336 = vst.msk [vmem:[%s373] ss:$8 sm:$0xf] %vm282, %v1335
        %1337 = vst.msk [vmem:[%s373] ss:$8 sm:$0x30] %vm282, %v1335
        %v1338 = vld [vmem:[%s402] ss:$8 sm:$0xf]
        %v1339 = vld [vmem:[%s402] ss:$8 sm:$0x30]
        %v1340 = vor.u32 %v1338, %v1339
        %1341 = vst.msk [vmem:[%s380] ss:$8 sm:$0xf] %vm282, %v1340
        %1342 = vst.msk [vmem:[%s380] ss:$8 sm:$0x30] %vm282, %v1340
        %v1343 = vld [vmem:[%s395] ss:$8 sm:$0xf]
        %v1344 = vld [vmem:[%s395] ss:$8 sm:$0x30]
        %v1345 = vor.u32 %v1343, %v1344
        %1347 = vrot.lane.b32.xlu0 %v1345, 127
        %v1348 = vpop.permute.xlu0 %1347
        %v1349 = vrot.slane %v1348, 1
        %v1350 = vsel %vm299, %v1348, %v1349
        %1352 = vst.msk [vmem:[%s392] ss:$8 sm:$0xf] %vm282, %v1350
        %1353 = vst.msk [vmem:[%s392] ss:$8 sm:$0x30] %vm282, %v1350
        %v1354 = vld [vmem:[%s369] ss:$8 sm:$0xf]
        %v1355 = vld [vmem:[%s369] ss:$8 sm:$0x30]
        %v1356 = vor.u32 %v1354, %v1355
        %1358 = vrot.lane.b32.xlu0 %v1356, 102
        %v1359 = vpop.permute.xlu0 %1358
        %v1360 = vrot.slane %v1359, 1
        %v1361 = vsel %vm338, %v1359, %v1360
        %1363 = vst.msk [vmem:[%s399] ss:$8 sm:$0xf] %vm282, %v1361
        %1364 = vst.msk [vmem:[%s399] ss:$8 sm:$0x30] %vm282, %v1361
        %v1365 = vld [vmem:[%s376] ss:$8 sm:$0xf]
        %v1366 = vld [vmem:[%s376] ss:$8 sm:$0x30]
        %v1367 = vor.u32 %v1365, %v1366
        %1369 = vrot.lane.b32.xlu0 %v1367, 102
        %v1370 = vpop.permute.xlu0 %1369
        %v1371 = vrot.slane %v1370, 1
        %v1372 = vsel %vm338, %v1370, %v1371
        %1374 = vst.msk [vmem:[%s406] ss:$8 sm:$0xf] %vm282, %v1372
        %1375 = vst.msk [vmem:[%s406] ss:$8 sm:$0x30] %vm282, %v1372
        %v1376 = vld [vmem:[%s369] ss:$8 sm:$0xf]
        %v1377 = vld [vmem:[%s369] ss:$8 sm:$0x30]
        %v1378 = vor.u32 %v1376, %v1377
        %1380 = vrot.lane.b32.xlu0 %v1378, 101
        %v1381 = vpop.permute.xlu0 %1380
        %v1382 = vrot.slane %v1381, 1
        %v1383 = vsel %vm363, %v1381, %v1382
        %1385 = vst.msk [vmem:[%s418] ss:$8 sm:$0xf] %vm282, %v1383
        %1386 = vst.msk [vmem:[%s418] ss:$8 sm:$0x30] %vm282, %v1383
        %v1387 = vld [vmem:[%s395] ss:$8 sm:$0xf]
        %v1388 = vld [vmem:[%s395] ss:$8 sm:$0x30]
        %v1389 = vor.u32 %v1387, %v1388
        %1391 = vrot.lane.b32.xlu0 %v1389, 102
        %v1392 = vpop.permute.xlu0 %1391
        %v1393 = vrot.slane %v1392, 1
        %v1394 = vsel %vm338, %v1392, %v1393
        %1396 = vst.msk [vmem:[%s430] ss:$8 sm:$0xf] %vm282, %v1394
        %1397 = vst.msk [vmem:[%s430] ss:$8 sm:$0x30] %vm282, %v1394
        %v1398 = vld [vmem:[%s402] ss:$8 sm:$0xf]
        %v1399 = vld [vmem:[%s402] ss:$8 sm:$0x30]
        %v1400 = vor.u32 %v1398, %v1399
        %1402 = vrot.lane.b32.xlu0 %v1400, 102
        %v1403 = vpop.permute.xlu0 %1402
        %v1404 = vrot.slane %v1403, 1
        %v1405 = vsel %vm338, %v1403, %v1404
        %1407 = vst.msk [vmem:[%s442] ss:$8 sm:$0xf] %vm282, %v1405
        %1408 = vst.msk [vmem:[%s442] ss:$8 sm:$0x30] %vm282, %v1405
        %v1409 = vld [vmem:[%s395] ss:$8 sm:$0xf]
        %v1410 = vld [vmem:[%s395] ss:$8 sm:$0x30]
        %v1411 = vor.u32 %v1409, %v1410
        %1413 = vrot.lane.b32.xlu0 %v1411, 101
        %v1414 = vpop.permute.xlu0 %1413
        %v1415 = vrot.slane %v1414, 1
        %v1416 = vsel %vm363, %v1414, %v1415
        %1418 = vst.msk [vmem:[%s454] ss:$8 sm:$0xf] %vm282, %v1416
        %1419 = vst.msk [vmem:[%s454] ss:$8 sm:$0x30] %vm282, %v1416
        %v1420 = vld [vmem:[%s483] ss:$8 sm:$0xf]
        %v1421 = vld [vmem:[%s483] ss:$8 sm:$0x30]
        %v1422 = vor.u32 %v1420, %v1421
        %1423 = vst.msk [vmem:[%s461] ss:$8 sm:$0xf] %vm282, %v1422
        %1424 = vst.msk [vmem:[%s461] ss:$8 sm:$0x30] %vm282, %v1422
        %v1425 = vld [vmem:[%s490] ss:$8 sm:$0xf]
        %v1426 = vld [vmem:[%s490] ss:$8 sm:$0x30]
        %v1427 = vor.u32 %v1425, %v1426
        %1428 = vst.msk [vmem:[%s468] ss:$8 sm:$0xf] %vm282, %v1427
        %1429 = vst.msk [vmem:[%s468] ss:$8 sm:$0x30] %vm282, %v1427
        %v1430 = vld [vmem:[%s483] ss:$8 sm:$0xf]
        %v1431 = vld [vmem:[%s483] ss:$8 sm:$0x30]
        %v1432 = vor.u32 %v1430, %v1431
        %1434 = vrot.lane.b32.xlu0 %v1432, 127
        %v1435 = vpop.permute.xlu0 %1434
        %v1436 = vrot.slane %v1435, 1
        %v1437 = vsel %vm299, %v1435, %v1436
        %1439 = vst.msk [vmem:[%s480] ss:$8 sm:$0xf] %vm282, %v1437
        %1440 = vst.msk [vmem:[%s480] ss:$8 sm:$0x30] %vm282, %v1437
        %v1441 = vld [vmem:[%s457] ss:$8 sm:$0xf]
        %v1442 = vld [vmem:[%s457] ss:$8 sm:$0x30]
        %v1443 = vor.u32 %v1441, %v1442
        %1445 = vrot.lane.b32.xlu0 %v1443, 102
        %v1446 = vpop.permute.xlu0 %1445
        %v1447 = vrot.slane %v1446, 1
        %v1448 = vsel %vm338, %v1446, %v1447
        %1450 = vst.msk [vmem:[%s487] ss:$8 sm:$0xf] %vm282, %v1448
        %1451 = vst.msk [vmem:[%s487] ss:$8 sm:$0x30] %vm282, %v1448
        %v1452 = vld [vmem:[%s464] ss:$8 sm:$0xf]
        %v1453 = vld [vmem:[%s464] ss:$8 sm:$0x30]
        %v1454 = vor.u32 %v1452, %v1453
        %1456 = vrot.lane.b32.xlu0 %v1454, 102
        %v1457 = vpop.permute.xlu0 %1456
        %v1458 = vrot.slane %v1457, 1
        %v1459 = vsel %vm338, %v1457, %v1458
        %1461 = vst.msk [vmem:[%s494] ss:$8 sm:$0xf] %vm282, %v1459
        %1462 = vst.msk [vmem:[%s494] ss:$8 sm:$0x30] %vm282, %v1459
        %v1463 = vld [vmem:[%s457] ss:$8 sm:$0xf]
        %v1464 = vld [vmem:[%s457] ss:$8 sm:$0x30]
        %v1465 = vor.u32 %v1463, %v1464
        %1467 = vrot.lane.b32.xlu0 %v1465, 101
        %v1468 = vpop.permute.xlu0 %1467
        %v1469 = vrot.slane %v1468, 1
        %v1470 = vsel %vm363, %v1468, %v1469
        %1472 = vst.msk [vmem:[%s506] ss:$8 sm:$0xf] %vm282, %v1470
        %1473 = vst.msk [vmem:[%s506] ss:$8 sm:$0x30] %vm282, %v1470
        %v1474 = vld [vmem:[%s483] ss:$8 sm:$0xf]
        %v1475 = vld [vmem:[%s483] ss:$8 sm:$0x30]
        %v1476 = vor.u32 %v1474, %v1475
        %1478 = vrot.lane.b32.xlu0 %v1476, 102
        %v1479 = vpop.permute.xlu0 %1478
        %v1480 = vrot.slane %v1479, 1
        %v1481 = vsel %vm338, %v1479, %v1480
        %1483 = vst.msk [vmem:[%s518] ss:$8 sm:$0xf] %vm282, %v1481
        %1484 = vst.msk [vmem:[%s518] ss:$8 sm:$0x30] %vm282, %v1481
        %v1485 = vld [vmem:[%s490] ss:$8 sm:$0xf]
        %v1486 = vld [vmem:[%s490] ss:$8 sm:$0x30]
        %v1487 = vor.u32 %v1485, %v1486
        %1489 = vrot.lane.b32.xlu0 %v1487, 102
        %v1490 = vpop.permute.xlu0 %1489
        %v1491 = vrot.slane %v1490, 1
        %v1492 = vsel %vm338, %v1490, %v1491
        %1494 = vst.msk [vmem:[%s530] ss:$8 sm:$0xf] %vm282, %v1492
        %1495 = vst.msk [vmem:[%s530] ss:$8 sm:$0x30] %vm282, %v1492
        %v1496 = vld [vmem:[%s483] ss:$8 sm:$0xf]
        %v1497 = vld [vmem:[%s483] ss:$8 sm:$0x30]
        %v1498 = vor.u32 %v1496, %v1497
        %1500 = vrot.lane.b32.xlu0 %v1498, 101
        %v1501 = vpop.permute.xlu0 %1500
        %v1502 = vrot.slane %v1501, 1
        %v1503 = vsel %vm363, %v1501, %v1502
        %1505 = vst.msk [vmem:[%s542] ss:$8 sm:$0xf] %vm282, %v1503
        %1506 = vst.msk [vmem:[%s542] ss:$8 sm:$0x30] %vm282, %v1503
        %v1507 = vld [vmem:[%s1] sm:$0xff]
        %v1508 = vld [vmem:[%s1 + $0x8] sm:$0xff]
        %v1509 = vld [vmem:[%s1 + $0x10] sm:$0x3]
        %v1510 = vld [vmem:[#allocation2] sm:$0xff]
        %v1511 = vld [vmem:[#allocation2 + $0x8] sm:$0xff]
        %v1512 = vld [vmem:[#allocation2 + $0x10] sm:$0xff]
        %v1513 = vld [vmem:[#allocation2 + $0x18] sm:$0xff]
        %v1514 = vld [vmem:[#allocation2 + $0x20] sm:$0xff]
        %v1515 = vld [vmem:[#allocation2 + $0x28] sm:$0xff]
        %v1516 = vld [vmem:[#allocation2 + $0x30] sm:$0xff]
        %v1517 = vld [vmem:[#allocation2 + $0x38] sm:$0xff]
        %v1518 = vld [vmem:[#allocation2 + $0x40] sm:$0xff]
        %v1519 = vld [vmem:[#allocation2 + $0x48] sm:$0xff]
        %v1520 = vld [vmem:[#allocation2 + $0x50] sm:$0xff]
        %v1521 = vld [vmem:[#allocation2 + $0x58] sm:$0xff]
        %v1522 = vld [vmem:[#allocation2 + $0x60] sm:$0xff]
        %v1523 = vld [vmem:[#allocation2 + $0x68] sm:$0xff]
        %v1524 = vld [vmem:[#allocation2 + $0x70] sm:$0xff]
        %v1525 = vld [vmem:[#allocation2 + $0x78] sm:$0xff]
        %v1526 = vld [vmem:[#allocation2 + $0x80] sm:$0xff]
        %v1527 = vld [vmem:[#allocation2 + $0x88] sm:$0xff]
        %v1528 = vld [vmem:[#allocation2 + $0x90] sm:$0x7]
        %v1529 = vld [vmem:[#allocation2 + $0x98] sm:$0x7]
        %v1530 = vld [vmem:[#allocation2 + $0xa0] sm:$0x7]
        %v1531 = vld [vmem:[#allocation2 + $0xa8] sm:$0x7]
        %v1532 = vld [vmem:[#allocation2 + $0xb0] sm:$0x7]
        %v1533 = vld [vmem:[#allocation2 + $0xb8] sm:$0x7]
        %v1535 = vsel %vm572, %v1507, 0
        %v1538 = vsel %vm572, %v1508, 0
        %v1541 = vsel %vm572, %v1509, 0
        %v1544 = vsel %vm582, %v1528, 0
        %v1547 = vsel %vm582, %v1529, 0
        %v1550 = vsel %vm582, %v1530, 0
        %v1553 = vsel %vm582, %v1531, 0
        %v1556 = vsel %vm582, %v1532, 0
        %v1559 = vsel %vm582, %v1533, 0
        %1561 = vmatpush.msra.mxu0 0.0
        %1562 = vmatpush.msra.mxu0 0.0
        %1563 = vmatpush.msra.mxu0 0.0
        %1564 = vmatpush.msra.mxu0 0.0
        %1565 = vmatpush.msra.mxu0 0.0
        %1566 = vmatpush.msra.mxu0 0.0
        %1567 = vmatpush.msra.mxu0 0.0
        %1568 = vmatpush.msra.mxu0 0.0
        %1569 = vmatpush.msra.mxu0 0.0
        %1570 = vmatpush.msra.mxu0 0.0
        %1571 = vmatpush.msra.mxu0 0.0
        %1572 = vmatpush.msra.mxu0 0.0
        %1573 = vmatpush.msra.mxu0 %v1544
        %1574 = vmatpush.msra.mxu0 %v1522
        %1575 = vmatpush.msra.mxu0 %v1516
        %1576 = vmatpush.msra.mxu0 %v1510
        %1577 = vmatmul.f32.gmra.mxu0 %v1535
        %v1578 = vpop.f32.mrf.mxu0
        %v1579 = vadd.f32 0.0, %v1578
        %1580 = vmatmul.f32.gmra.mxu0 %v1538
        %v1581 = vpop.f32.mrf.mxu0
        %v1582 = vadd.f32 0.0, %v1581
        %1583 = vmatmul.f32.gmra.mxu0 %v1541
        %v1584 = vpop.f32.mrf.mxu0
        %v1585 = vadd.f32 0.0, %v1584
        %1586 = vdwg.mxu0
        %1587 = vmatpush.msra.mxu0 0.0
        %1588 = vmatpush.msra.mxu0 0.0
        %1589 = vmatpush.msra.mxu0 0.0
        %1590 = vmatpush.msra.mxu0 0.0
        %1591 = vmatpush.msra.mxu0 0.0
        %1592 = vmatpush.msra.mxu0 0.0
        %1593 = vmatpush.msra.mxu0 0.0
        %1594 = vmatpush.msra.mxu0 0.0
        %1595 = vmatpush.msra.mxu0 0.0
        %1596 = vmatpush.msra.mxu0 0.0
        %1597 = vmatpush.msra.mxu0 0.0
        %1598 = vmatpush.msra.mxu0 0.0
        %1599 = vmatpush.msra.mxu0 %v1547
        %1600 = vmatpush.msra.mxu0 %v1523
        %1601 = vmatpush.msra.mxu0 %v1517
        %1602 = vmatpush.msra.mxu0 %v1511
        %1603 = vmatmul.f32.gmra.mxu0 %v1535
        %v1604 = vpop.f32.mrf.mxu0
        %v1605 = vadd.f32 0.0, %v1604
        %1606 = vmatmul.f32.gmra.mxu0 %v1538
        %v1607 = vpop.f32.mrf.mxu0
        %v1608 = vadd.f32 0.0, %v1607
        %1609 = vmatmul.f32.gmra.mxu0 %v1541
        %v1610 = vpop.f32.mrf.mxu0
        %v1611 = vadd.f32 0.0, %v1610
        %1612 = vdwg.mxu0
        %1613 = vmatpush.msra.mxu0 0.0
        %1614 = vmatpush.msra.mxu0 0.0
        %1615 = vmatpush.msra.mxu0 0.0
        %1616 = vmatpush.msra.mxu0 0.0
        %1617 = vmatpush.msra.mxu0 0.0
        %1618 = vmatpush.msra.mxu0 0.0
        %1619 = vmatpush.msra.mxu0 0.0
        %1620 = vmatpush.msra.mxu0 0.0
        %1621 = vmatpush.msra.mxu0 0.0
        %1622 = vmatpush.msra.mxu0 0.0
        %1623 = vmatpush.msra.mxu0 0.0
        %1624 = vmatpush.msra.mxu0 0.0
        %1625 = vmatpush.msra.mxu0 %v1550
        %1626 = vmatpush.msra.mxu0 %v1524
        %1627 = vmatpush.msra.mxu0 %v1518
        %1628 = vmatpush.msra.mxu0 %v1512
        %1629 = vmatmul.f32.gmra.mxu0 %v1535
        %v1630 = vpop.f32.mrf.mxu0
        %v1631 = vadd.f32 0.0, %v1630
        %1632 = vmatmul.f32.gmra.mxu0 %v1538
        %v1633 = vpop.f32.mrf.mxu0
        %v1634 = vadd.f32 0.0, %v1633
        %1635 = vmatmul.f32.gmra.mxu0 %v1541
        %v1636 = vpop.f32.mrf.mxu0
        %v1637 = vadd.f32 0.0, %v1636
        %1638 = vdwg.mxu0
        %1639 = vmatpush.msra.mxu0 0.0
        %1640 = vmatpush.msra.mxu0 0.0
        %1641 = vmatpush.msra.mxu0 0.0
        %1642 = vmatpush.msra.mxu0 0.0
        %1643 = vmatpush.msra.mxu0 0.0
        %1644 = vmatpush.msra.mxu0 0.0
        %1645 = vmatpush.msra.mxu0 0.0
        %1646 = vmatpush.msra.mxu0 0.0
        %1647 = vmatpush.msra.mxu0 0.0
        %1648 = vmatpush.msra.mxu0 0.0
        %1649 = vmatpush.msra.mxu0 0.0
        %1650 = vmatpush.msra.mxu0 0.0
        %1651 = vmatpush.msra.mxu0 %v1553
        %1652 = vmatpush.msra.mxu0 %v1525
        %1653 = vmatpush.msra.mxu0 %v1519
        %1654 = vmatpush.msra.mxu0 %v1513
        %1655 = vmatmul.f32.gmra.mxu0 %v1535
        %v1656 = vpop.f32.mrf.mxu0
        %v1657 = vadd.f32 0.0, %v1656
        %1658 = vmatmul.f32.gmra.mxu0 %v1538
        %v1659 = vpop.f32.mrf.mxu0
        %v1660 = vadd.f32 0.0, %v1659
        %1661 = vmatmul.f32.gmra.mxu0 %v1541
        %v1662 = vpop.f32.mrf.mxu0
        %v1663 = vadd.f32 0.0, %v1662
        %1664 = vdwg.mxu0
        %1665 = vmatpush.msra.mxu0 0.0
        %1666 = vmatpush.msra.mxu0 0.0
        %1667 = vmatpush.msra.mxu0 0.0
        %1668 = vmatpush.msra.mxu0 0.0
        %1669 = vmatpush.msra.mxu0 0.0
        %1670 = vmatpush.msra.mxu0 0.0
        %1671 = vmatpush.msra.mxu0 0.0
        %1672 = vmatpush.msra.mxu0 0.0
        %1673 = vmatpush.msra.mxu0 0.0
        %1674 = vmatpush.msra.mxu0 0.0
        %1675 = vmatpush.msra.mxu0 0.0
        %1676 = vmatpush.msra.mxu0 0.0
        %1677 = vmatpush.msra.mxu0 %v1556
        %1678 = vmatpush.msra.mxu0 %v1526
        %1679 = vmatpush.msra.mxu0 %v1520
        %1680 = vmatpush.msra.mxu0 %v1514
        %1681 = vmatmul.f32.gmra.mxu0 %v1535
        %v1682 = vpop.f32.mrf.mxu0
        %v1683 = vadd.f32 0.0, %v1682
        %1684 = vmatmul.f32.gmra.mxu0 %v1538
        %v1685 = vpop.f32.mrf.mxu0
        %v1686 = vadd.f32 0.0, %v1685
        %1687 = vmatmul.f32.gmra.mxu0 %v1541
        %v1688 = vpop.f32.mrf.mxu0
        %v1689 = vadd.f32 0.0, %v1688
        %1690 = vdwg.mxu0
        %1691 = vmatpush.msra.mxu0 0.0
        %1692 = vmatpush.msra.mxu0 0.0
        %1693 = vmatpush.msra.mxu0 0.0
        %1694 = vmatpush.msra.mxu0 0.0
        %1695 = vmatpush.msra.mxu0 0.0
        %1696 = vmatpush.msra.mxu0 0.0
        %1697 = vmatpush.msra.mxu0 0.0
        %1698 = vmatpush.msra.mxu0 0.0
        %1699 = vmatpush.msra.mxu0 0.0
        %1700 = vmatpush.msra.mxu0 0.0
        %1701 = vmatpush.msra.mxu0 0.0
        %1702 = vmatpush.msra.mxu0 0.0
        %1703 = vmatpush.msra.mxu0 %v1559
        %1704 = vmatpush.msra.mxu0 %v1527
        %1705 = vmatpush.msra.mxu0 %v1521
        %1706 = vmatpush.msra.mxu0 %v1515
        %1707 = vmatmul.f32.gmra.mxu0 %v1535
        %v1708 = vpop.f32.mrf.mxu0
        %v1709 = vadd.f32 0.0, %v1708
        %1710 = vmatmul.f32.gmra.mxu0 %v1538
        %v1711 = vpop.f32.mrf.mxu0
        %v1712 = vadd.f32 0.0, %v1711
        %1713 = vmatmul.f32.gmra.mxu0 %v1541
        %v1714 = vpop.f32.mrf.mxu0
        %v1715 = vadd.f32 0.0, %v1714
        %1716 = vdwg.mxu0
        %v1717 = vmax.f32 %v1228, %v1579
        %v1718 = vmax.f32 %v1229, %v1605
        %v1719 = vmax.f32 %v1230, %v1631
        %v1720 = vmax.f32 %v1231, %v1657
        %v1721 = vmax.f32 %v1232, %v1683
        %v1722 = vmax.f32 %v1233, %v1709
        %v1723 = vmax.f32 %v1234, %v1582
        %v1724 = vmax.f32 %v1235, %v1608
        %v1725 = vmax.f32 %v1236, %v1634
        %v1726 = vmax.f32 %v1237, %v1660
        %v1727 = vmax.f32 %v1238, %v1686
        %v1728 = vmax.f32 %v1239, %v1712
        %v1729 = vmax.f32 %v1240, %v1585
        %v1730 = vmax.f32 %v1241, %v1611
        %v1731 = vmax.f32 %v1242, %v1637
        %v1732 = vmax.f32 %v1243, %v1663
        %v1733 = vmax.f32 %v1244, %v1689
        %v1734 = vmax.f32 %v1245, %v1715
        %v1735 = vld [vmem:[%s312] ss:$8 sm:$0xf]
        %v1736 = vld [vmem:[%s312] ss:$8 sm:$0x30]
        %v1737 = vor.u32 %v1735, %v1736
        %1738 = vst.msk [vmem:[#allocation2] ss:$8 sm:$0xf] %vm282, %v1737
        %1739 = vst.msk [vmem:[#allocation2] ss:$8 sm:$0x30] %vm282, %v1737
        %v1740 = vld [vmem:[%s305] ss:$8 sm:$0xf]
        %v1741 = vld [vmem:[%s305] ss:$8 sm:$0x30]
        %v1742 = vor.u32 %v1740, %v1741
        %1744 = vrot.lane.b32.xlu0 %v1742, 127
        %v1745 = vpop.permute.xlu0 %1744
        %v1746 = vrot.slane %v1745, 1
        %v1747 = vsel %vm299, %v1745, %v1746
        %1749 = vst.msk [vmem:[%s289] ss:$8 sm:$0xf] %vm282, %v1747
        %1750 = vst.msk [vmem:[%s289] ss:$8 sm:$0x30] %vm282, %v1747
        %v1751 = vld [vmem:[%s312] ss:$8 sm:$0xf]
        %v1752 = vld [vmem:[%s312] ss:$8 sm:$0x30]
        %v1753 = vor.u32 %v1751, %v1752
        %1755 = vrot.lane.b32.xlu0 %v1753, 127
        %v1756 = vpop.permute.xlu0 %1755
        %v1757 = vrot.slane %v1756, 1
        %v1758 = vsel %vm299, %v1756, %v1757
        %1760 = vst.msk [vmem:[%s302] ss:$8 sm:$0xf] %vm282, %v1758
        %1761 = vst.msk [vmem:[%s302] ss:$8 sm:$0x30] %vm282, %v1758
        %v1762 = vld [vmem:[%s285] ss:$8 sm:$0xf]
        %v1763 = vld [vmem:[%s285] ss:$8 sm:$0x30]
        %v1764 = vor.u32 %v1762, %v1763
        %1766 = vrot.lane.b32.xlu0 %v1764, 102
        %v1767 = vpop.permute.xlu0 %1766
        %v1768 = vrot.slane %v1767, 1
        %v1769 = vsel %vm338, %v1767, %v1768
        %1771 = vst.msk [vmem:[%s309] ss:$8 sm:$0xf] %vm282, %v1769
        %1772 = vst.msk [vmem:[%s309] ss:$8 sm:$0x30] %vm282, %v1769
        %v1773 = vld [vmem:[%s275] ss:$8 sm:$0xf]
        %v1774 = vld [vmem:[%s275] ss:$8 sm:$0x30]
        %v1775 = vor.u32 %v1773, %v1774
        %1777 = vrot.lane.b32.xlu0 %v1775, 101
        %v1778 = vpop.permute.xlu0 %1777
        %v1779 = vrot.slane %v1778, 1
        %v1780 = vsel %vm363, %v1778, %v1779
        %1782 = vst.msk [vmem:[%s316] ss:$8 sm:$0xf] %vm282, %v1780
        %1783 = vst.msk [vmem:[%s316] ss:$8 sm:$0x30] %vm282, %v1780
        %v1784 = vld [vmem:[%s285] ss:$8 sm:$0xf]
        %v1785 = vld [vmem:[%s285] ss:$8 sm:$0x30]
        %v1786 = vor.u32 %v1784, %v1785
        %1788 = vrot.lane.b32.xlu0 %v1786, 101
        %v1789 = vpop.permute.xlu0 %1788
        %v1790 = vrot.slane %v1789, 1
        %v1791 = vsel %vm363, %v1789, %v1790
        %1793 = vst.msk [vmem:[%s328] ss:$8 sm:$0xf] %vm282, %v1791
        %1794 = vst.msk [vmem:[%s328] ss:$8 sm:$0x30] %vm282, %v1791
        %v1795 = vld [vmem:[%s312] ss:$8 sm:$0xf]
        %v1796 = vld [vmem:[%s312] ss:$8 sm:$0x30]
        %v1797 = vor.u32 %v1795, %v1796
        %1799 = vrot.lane.b32.xlu0 %v1797, 102
        %v1800 = vpop.permute.xlu0 %1799
        %v1801 = vrot.slane %v1800, 1
        %v1802 = vsel %vm338, %v1800, %v1801
        %1804 = vst.msk [vmem:[%s341] ss:$8 sm:$0xf] %vm282, %v1802
        %1805 = vst.msk [vmem:[%s341] ss:$8 sm:$0x30] %vm282, %v1802
        %v1806 = vld [vmem:[%s305] ss:$8 sm:$0xf]
        %v1807 = vld [vmem:[%s305] ss:$8 sm:$0x30]
        %v1808 = vor.u32 %v1806, %v1807
        %1810 = vrot.lane.b32.xlu0 %v1808, 101
        %v1811 = vpop.permute.xlu0 %1810
        %v1812 = vrot.slane %v1811, 1
        %v1813 = vsel %vm363, %v1811, %v1812
        %1815 = vst.msk [vmem:[%s353] ss:$8 sm:$0xf] %vm282, %v1813
        %1816 = vst.msk [vmem:[%s353] ss:$8 sm:$0x30] %vm282, %v1813
        %v1817 = vld [vmem:[%s312] ss:$8 sm:$0xf]
        %v1818 = vld [vmem:[%s312] ss:$8 sm:$0x30]
        %v1819 = vor.u32 %v1817, %v1818
        %1821 = vrot.lane.b32.xlu0 %v1819, 101
        %v1822 = vpop.permute.xlu0 %1821
        %v1823 = vrot.slane %v1822, 1
        %v1824 = vsel %vm363, %v1822, %v1823
        %1826 = vst.msk [vmem:[%s366] ss:$8 sm:$0xf] %vm282, %v1824
        %1827 = vst.msk [vmem:[%s366] ss:$8 sm:$0x30] %vm282, %v1824
        %v1828 = vld [vmem:[%s402] ss:$8 sm:$0xf]
        %v1829 = vld [vmem:[%s402] ss:$8 sm:$0x30]
        %v1830 = vor.u32 %v1828, %v1829
        %1831 = vst.msk [vmem:[%s373] ss:$8 sm:$0xf] %vm282, %v1830
        %1832 = vst.msk [vmem:[%s373] ss:$8 sm:$0x30] %vm282, %v1830
        %v1833 = vld [vmem:[%s395] ss:$8 sm:$0xf]
        %v1834 = vld [vmem:[%s395] ss:$8 sm:$0x30]
        %v1835 = vor.u32 %v1833, %v1834
        %1837 = vrot.lane.b32.xlu0 %v1835, 127
        %v1838 = vpop.permute.xlu0 %1837
        %v1839 = vrot.slane %v1838, 1
        %v1840 = vsel %vm299, %v1838, %v1839
        %1842 = vst.msk [vmem:[%s380] ss:$8 sm:$0xf] %vm282, %v1840
        %1843 = vst.msk [vmem:[%s380] ss:$8 sm:$0x30] %vm282, %v1840
        %v1844 = vld [vmem:[%s402] ss:$8 sm:$0xf]
        %v1845 = vld [vmem:[%s402] ss:$8 sm:$0x30]
        %v1846 = vor.u32 %v1844, %v1845
        %1848 = vrot.lane.b32.xlu0 %v1846, 127
        %v1849 = vpop.permute.xlu0 %1848
        %v1850 = vrot.slane %v1849, 1
        %v1851 = vsel %vm299, %v1849, %v1850
        %1853 = vst.msk [vmem:[%s392] ss:$8 sm:$0xf] %vm282, %v1851
        %1854 = vst.msk [vmem:[%s392] ss:$8 sm:$0x30] %vm282, %v1851
        %v1855 = vld [vmem:[%s376] ss:$8 sm:$0xf]
        %v1856 = vld [vmem:[%s376] ss:$8 sm:$0x30]
        %v1857 = vor.u32 %v1855, %v1856
        %1859 = vrot.lane.b32.xlu0 %v1857, 102
        %v1860 = vpop.permute.xlu0 %1859
        %v1861 = vrot.slane %v1860, 1
        %v1862 = vsel %vm338, %v1860, %v1861
        %1864 = vst.msk [vmem:[%s399] ss:$8 sm:$0xf] %vm282, %v1862
        %1865 = vst.msk [vmem:[%s399] ss:$8 sm:$0x30] %vm282, %v1862
        %v1866 = vld [vmem:[%s369] ss:$8 sm:$0xf]
        %v1867 = vld [vmem:[%s369] ss:$8 sm:$0x30]
        %v1868 = vor.u32 %v1866, %v1867
        %1870 = vrot.lane.b32.xlu0 %v1868, 101
        %v1871 = vpop.permute.xlu0 %1870
        %v1872 = vrot.slane %v1871, 1
        %v1873 = vsel %vm363, %v1871, %v1872
        %1875 = vst.msk [vmem:[%s406] ss:$8 sm:$0xf] %vm282, %v1873
        %1876 = vst.msk [vmem:[%s406] ss:$8 sm:$0x30] %vm282, %v1873
        %v1877 = vld [vmem:[%s376] ss:$8 sm:$0xf]
        %v1878 = vld [vmem:[%s376] ss:$8 sm:$0x30]
        %v1879 = vor.u32 %v1877, %v1878
        %1881 = vrot.lane.b32.xlu0 %v1879, 101
        %v1882 = vpop.permute.xlu0 %1881
        %v1883 = vrot.slane %v1882, 1
        %v1884 = vsel %vm363, %v1882, %v1883
        %1886 = vst.msk [vmem:[%s418] ss:$8 sm:$0xf] %vm282, %v1884
        %1887 = vst.msk [vmem:[%s418] ss:$8 sm:$0x30] %vm282, %v1884
        %v1888 = vld [vmem:[%s402] ss:$8 sm:$0xf]
        %v1889 = vld [vmem:[%s402] ss:$8 sm:$0x30]
        %v1890 = vor.u32 %v1888, %v1889
        %1892 = vrot.lane.b32.xlu0 %v1890, 102
        %v1893 = vpop.permute.xlu0 %1892
        %v1894 = vrot.slane %v1893, 1
        %v1895 = vsel %vm338, %v1893, %v1894
        %1897 = vst.msk [vmem:[%s430] ss:$8 sm:$0xf] %vm282, %v1895
        %1898 = vst.msk [vmem:[%s430] ss:$8 sm:$0x30] %vm282, %v1895
        %v1899 = vld [vmem:[%s395] ss:$8 sm:$0xf]
        %v1900 = vld [vmem:[%s395] ss:$8 sm:$0x30]
        %v1901 = vor.u32 %v1899, %v1900
        %1903 = vrot.lane.b32.xlu0 %v1901, 101
        %v1904 = vpop.permute.xlu0 %1903
        %v1905 = vrot.slane %v1904, 1
        %v1906 = vsel %vm363, %v1904, %v1905
        %1908 = vst.msk [vmem:[%s442] ss:$8 sm:$0xf] %vm282, %v1906
        %1909 = vst.msk [vmem:[%s442] ss:$8 sm:$0x30] %vm282, %v1906
        %v1910 = vld [vmem:[%s402] ss:$8 sm:$0xf]
        %v1911 = vld [vmem:[%s402] ss:$8 sm:$0x30]
        %v1912 = vor.u32 %v1910, %v1911
        %1914 = vrot.lane.b32.xlu0 %v1912, 101
        %v1915 = vpop.permute.xlu0 %1914
        %v1916 = vrot.slane %v1915, 1
        %v1917 = vsel %vm363, %v1915, %v1916
        %1919 = vst.msk [vmem:[%s454] ss:$8 sm:$0xf] %vm282, %v1917
        %1920 = vst.msk [vmem:[%s454] ss:$8 sm:$0x30] %vm282, %v1917
        %v1921 = vld [vmem:[%s490] ss:$8 sm:$0xf]
        %v1922 = vld [vmem:[%s490] ss:$8 sm:$0x30]
        %v1923 = vor.u32 %v1921, %v1922
        %1924 = vst.msk [vmem:[%s461] ss:$8 sm:$0xf] %vm282, %v1923
        %1925 = vst.msk [vmem:[%s461] ss:$8 sm:$0x30] %vm282, %v1923
        %v1926 = vld [vmem:[%s483] ss:$8 sm:$0xf]
        %v1927 = vld [vmem:[%s483] ss:$8 sm:$0x30]
        %v1928 = vor.u32 %v1926, %v1927
        %1930 = vrot.lane.b32.xlu0 %v1928, 127
        %v1931 = vpop.permute.xlu0 %1930
        %v1932 = vrot.slane %v1931, 1
        %v1933 = vsel %vm299, %v1931, %v1932
        %1935 = vst.msk [vmem:[%s468] ss:$8 sm:$0xf] %vm282, %v1933
        %1936 = vst.msk [vmem:[%s468] ss:$8 sm:$0x30] %vm282, %v1933
        %v1937 = vld [vmem:[%s490] ss:$8 sm:$0xf]
        %v1938 = vld [vmem:[%s490] ss:$8 sm:$0x30]
        %v1939 = vor.u32 %v1937, %v1938
        %1941 = vrot.lane.b32.xlu0 %v1939, 127
        %v1942 = vpop.permute.xlu0 %1941
        %v1943 = vrot.slane %v1942, 1
        %v1944 = vsel %vm299, %v1942, %v1943
        %1946 = vst.msk [vmem:[%s480] ss:$8 sm:$0xf] %vm282, %v1944
        %1947 = vst.msk [vmem:[%s480] ss:$8 sm:$0x30] %vm282, %v1944
        %v1948 = vld [vmem:[%s464] ss:$8 sm:$0xf]
        %v1949 = vld [vmem:[%s464] ss:$8 sm:$0x30]
        %v1950 = vor.u32 %v1948, %v1949
        %1952 = vrot.lane.b32.xlu0 %v1950, 102
        %v1953 = vpop.permute.xlu0 %1952
        %v1954 = vrot.slane %v1953, 1
        %v1955 = vsel %vm338, %v1953, %v1954
        %1957 = vst.msk [vmem:[%s487] ss:$8 sm:$0xf] %vm282, %v1955
        %1958 = vst.msk [vmem:[%s487] ss:$8 sm:$0x30] %vm282, %v1955
        %v1959 = vld [vmem:[%s457] ss:$8 sm:$0xf]
        %v1960 = vld [vmem:[%s457] ss:$8 sm:$0x30]
        %v1961 = vor.u32 %v1959, %v1960
        %1963 = vrot.lane.b32.xlu0 %v1961, 101
        %v1964 = vpop.permute.xlu0 %1963
        %v1965 = vrot.slane %v1964, 1
        %v1966 = vsel %vm363, %v1964, %v1965
        %1968 = vst.msk [vmem:[%s494] ss:$8 sm:$0xf] %vm282, %v1966
        %1969 = vst.msk [vmem:[%s494] ss:$8 sm:$0x30] %vm282, %v1966
        %v1970 = vld [vmem:[%s464] ss:$8 sm:$0xf]
        %v1971 = vld [vmem:[%s464] ss:$8 sm:$0x30]
        %v1972 = vor.u32 %v1970, %v1971
        %1974 = vrot.lane.b32.xlu0 %v1972, 101
        %v1975 = vpop.permute.xlu0 %1974
        %v1976 = vrot.slane %v1975, 1
        %v1977 = vsel %vm363, %v1975, %v1976
        %1979 = vst.msk [vmem:[%s506] ss:$8 sm:$0xf] %vm282, %v1977
        %1980 = vst.msk [vmem:[%s506] ss:$8 sm:$0x30] %vm282, %v1977
        %v1981 = vld [vmem:[%s490] ss:$8 sm:$0xf]
        %v1982 = vld [vmem:[%s490] ss:$8 sm:$0x30]
        %v1983 = vor.u32 %v1981, %v1982
        %1985 = vrot.lane.b32.xlu0 %v1983, 102
        %v1986 = vpop.permute.xlu0 %1985
        %v1987 = vrot.slane %v1986, 1
        %v1988 = vsel %vm338, %v1986, %v1987
        %1990 = vst.msk [vmem:[%s518] ss:$8 sm:$0xf] %vm282, %v1988
        %1991 = vst.msk [vmem:[%s518] ss:$8 sm:$0x30] %vm282, %v1988
        %v1992 = vld [vmem:[%s483] ss:$8 sm:$0xf]
        %v1993 = vld [vmem:[%s483] ss:$8 sm:$0x30]
        %v1994 = vor.u32 %v1992, %v1993
        %1996 = vrot.lane.b32.xlu0 %v1994, 101
        %v1997 = vpop.permute.xlu0 %1996
        %v1998 = vrot.slane %v1997, 1
        %v1999 = vsel %vm363, %v1997, %v1998
        %2001 = vst.msk [vmem:[%s530] ss:$8 sm:$0xf] %vm282, %v1999
        %2002 = vst.msk [vmem:[%s530] ss:$8 sm:$0x30] %vm282, %v1999
        %v2003 = vld [vmem:[%s490] ss:$8 sm:$0xf]
        %v2004 = vld [vmem:[%s490] ss:$8 sm:$0x30]
        %v2005 = vor.u32 %v2003, %v2004
        %2007 = vrot.lane.b32.xlu0 %v2005, 101
        %v2008 = vpop.permute.xlu0 %2007
        %v2009 = vrot.slane %v2008, 1
        %v2010 = vsel %vm363, %v2008, %v2009
        %2012 = vst.msk [vmem:[%s542] ss:$8 sm:$0xf] %vm282, %v2010
        %2013 = vst.msk [vmem:[%s542] ss:$8 sm:$0x30] %vm282, %v2010
        %v2014 = vld [vmem:[%s1] sm:$0xff]
        %v2015 = vld [vmem:[%s1 + $0x8] sm:$0xff]
        %v2016 = vld [vmem:[%s1 + $0x10] sm:$0x3]
        %v2017 = vld [vmem:[#allocation2] sm:$0xff]
        %v2018 = vld [vmem:[#allocation2 + $0x8] sm:$0xff]
        %v2019 = vld [vmem:[#allocation2 + $0x10] sm:$0xff]
        %v2020 = vld [vmem:[#allocation2 + $0x18] sm:$0xff]
        %v2021 = vld [vmem:[#allocation2 + $0x20] sm:$0xff]
        %v2022 = vld [vmem:[#allocation2 + $0x28] sm:$0xff]
        %v2023 = vld [vmem:[#allocation2 + $0x30] sm:$0xff]
        %v2024 = vld [vmem:[#allocation2 + $0x38] sm:$0xff]
        %v2025 = vld [vmem:[#allocation2 + $0x40] sm:$0xff]
        %v2026 = vld [vmem:[#allocation2 + $0x48] sm:$0xff]
        %v2027 = vld [vmem:[#allocation2 + $0x50] sm:$0xff]
        %v2028 = vld [vmem:[#allocation2 + $0x58] sm:$0xff]
        %v2029 = vld [vmem:[#allocation2 + $0x60] sm:$0xff]
        %v2030 = vld [vmem:[#allocation2 + $0x68] sm:$0xff]
        %v2031 = vld [vmem:[#allocation2 + $0x70] sm:$0xff]
        %v2032 = vld [vmem:[#allocation2 + $0x78] sm:$0xff]
        %v2033 = vld [vmem:[#allocation2 + $0x80] sm:$0xff]
        %v2034 = vld [vmem:[#allocation2 + $0x88] sm:$0xff]
        %v2035 = vld [vmem:[#allocation2 + $0x90] sm:$0x7]
        %v2036 = vld [vmem:[#allocation2 + $0x98] sm:$0x7]
        %v2037 = vld [vmem:[#allocation2 + $0xa0] sm:$0x7]
        %v2038 = vld [vmem:[#allocation2 + $0xa8] sm:$0x7]
        %v2039 = vld [vmem:[#allocation2 + $0xb0] sm:$0x7]
        %v2040 = vld [vmem:[#allocation2 + $0xb8] sm:$0x7]
        %v2042 = vsel %vm572, %v2014, 0
        %v2045 = vsel %vm572, %v2015, 0
        %v2048 = vsel %vm572, %v2016, 0
        %v2051 = vsel %vm582, %v2035, 0
        %v2054 = vsel %vm582, %v2036, 0
        %v2057 = vsel %vm582, %v2037, 0
        %v2060 = vsel %vm582, %v2038, 0
        %v2063 = vsel %vm582, %v2039, 0
        %v2066 = vsel %vm582, %v2040, 0
        %2068 = vmatpush.msra.mxu0 0.0
        %2069 = vmatpush.msra.mxu0 0.0
        %2070 = vmatpush.msra.mxu0 0.0
        %2071 = vmatpush.msra.mxu0 0.0
        %2072 = vmatpush.msra.mxu0 0.0
        %2073 = vmatpush.msra.mxu0 0.0
        %2074 = vmatpush.msra.mxu0 0.0
        %2075 = vmatpush.msra.mxu0 0.0
        %2076 = vmatpush.msra.mxu0 0.0
        %2077 = vmatpush.msra.mxu0 0.0
        %2078 = vmatpush.msra.mxu0 0.0
        %2079 = vmatpush.msra.mxu0 0.0
        %2080 = vmatpush.msra.mxu0 %v2051
        %2081 = vmatpush.msra.mxu0 %v2029
        %2082 = vmatpush.msra.mxu0 %v2023
        %2083 = vmatpush.msra.mxu0 %v2017
        %2084 = vmatmul.f32.gmra.mxu0 %v2042
        %v2085 = vpop.f32.mrf.mxu0
        %v2086 = vadd.f32 0.0, %v2085
        %2087 = vmatmul.f32.gmra.mxu0 %v2045
        %v2088 = vpop.f32.mrf.mxu0
        %v2089 = vadd.f32 0.0, %v2088
        %2090 = vmatmul.f32.gmra.mxu0 %v2048
        %v2091 = vpop.f32.mrf.mxu0
        %v2092 = vadd.f32 0.0, %v2091
        %2093 = vdwg.mxu0
        %2094 = vmatpush.msra.mxu0 0.0
        %2095 = vmatpush.msra.mxu0 0.0
        %2096 = vmatpush.msra.mxu0 0.0
        %2097 = vmatpush.msra.mxu0 0.0
        %2098 = vmatpush.msra.mxu0 0.0
        %2099 = vmatpush.msra.mxu0 0.0
        %2100 = vmatpush.msra.mxu0 0.0
        %2101 = vmatpush.msra.mxu0 0.0
        %2102 = vmatpush.msra.mxu0 0.0
        %2103 = vmatpush.msra.mxu0 0.0
        %2104 = vmatpush.msra.mxu0 0.0
        %2105 = vmatpush.msra.mxu0 0.0
        %2106 = vmatpush.msra.mxu0 %v2054
        %2107 = vmatpush.msra.mxu0 %v2030
        %2108 = vmatpush.msra.mxu0 %v2024
        %2109 = vmatpush.msra.mxu0 %v2018
        %2110 = vmatmul.f32.gmra.mxu0 %v2042
        %v2111 = vpop.f32.mrf.mxu0
        %v2112 = vadd.f32 0.0, %v2111
        %2113 = vmatmul.f32.gmra.mxu0 %v2045
        %v2114 = vpop.f32.mrf.mxu0
        %v2115 = vadd.f32 0.0, %v2114
        %2116 = vmatmul.f32.gmra.mxu0 %v2048
        %v2117 = vpop.f32.mrf.mxu0
        %v2118 = vadd.f32 0.0, %v2117
        %2119 = vdwg.mxu0
        %2120 = vmatpush.msra.mxu0 0.0
        %2121 = vmatpush.msra.mxu0 0.0
        %2122 = vmatpush.msra.mxu0 0.0
        %2123 = vmatpush.msra.mxu0 0.0
        %2124 = vmatpush.msra.mxu0 0.0
        %2125 = vmatpush.msra.mxu0 0.0
        %2126 = vmatpush.msra.mxu0 0.0
        %2127 = vmatpush.msra.mxu0 0.0
        %2128 = vmatpush.msra.mxu0 0.0
        %2129 = vmatpush.msra.mxu0 0.0
        %2130 = vmatpush.msra.mxu0 0.0
        %2131 = vmatpush.msra.mxu0 0.0
        %2132 = vmatpush.msra.mxu0 %v2057
        %2133 = vmatpush.msra.mxu0 %v2031
        %2134 = vmatpush.msra.mxu0 %v2025
        %2135 = vmatpush.msra.mxu0 %v2019
        %2136 = vmatmul.f32.gmra.mxu0 %v2042
        %v2137 = vpop.f32.mrf.mxu0
        %v2138 = vadd.f32 0.0, %v2137
        %2139 = vmatmul.f32.gmra.mxu0 %v2045
        %v2140 = vpop.f32.mrf.mxu0
        %v2141 = vadd.f32 0.0, %v2140
        %2142 = vmatmul.f32.gmra.mxu0 %v2048
        %v2143 = vpop.f32.mrf.mxu0
        %v2144 = vadd.f32 0.0, %v2143
        %2145 = vdwg.mxu0
        %2146 = vmatpush.msra.mxu0 0.0
        %2147 = vmatpush.msra.mxu0 0.0
        %2148 = vmatpush.msra.mxu0 0.0
        %2149 = vmatpush.msra.mxu0 0.0
        %2150 = vmatpush.msra.mxu0 0.0
        %2151 = vmatpush.msra.mxu0 0.0
        %2152 = vmatpush.msra.mxu0 0.0
        %2153 = vmatpush.msra.mxu0 0.0
        %2154 = vmatpush.msra.mxu0 0.0
        %2155 = vmatpush.msra.mxu0 0.0
        %2156 = vmatpush.msra.mxu0 0.0
        %2157 = vmatpush.msra.mxu0 0.0
        %2158 = vmatpush.msra.mxu0 %v2060
        %2159 = vmatpush.msra.mxu0 %v2032
        %2160 = vmatpush.msra.mxu0 %v2026
        %2161 = vmatpush.msra.mxu0 %v2020
        %2162 = vmatmul.f32.gmra.mxu0 %v2042
        %v2163 = vpop.f32.mrf.mxu0
        %v2164 = vadd.f32 0.0, %v2163
        %2165 = vmatmul.f32.gmra.mxu0 %v2045
        %v2166 = vpop.f32.mrf.mxu0
        %v2167 = vadd.f32 0.0, %v2166
        %2168 = vmatmul.f32.gmra.mxu0 %v2048
        %v2169 = vpop.f32.mrf.mxu0
        %v2170 = vadd.f32 0.0, %v2169
        %2171 = vdwg.mxu0
        %2172 = vmatpush.msra.mxu0 0.0
        %2173 = vmatpush.msra.mxu0 0.0
        %2174 = vmatpush.msra.mxu0 0.0
        %2175 = vmatpush.msra.mxu0 0.0
        %2176 = vmatpush.msra.mxu0 0.0
        %2177 = vmatpush.msra.mxu0 0.0
        %2178 = vmatpush.msra.mxu0 0.0
        %2179 = vmatpush.msra.mxu0 0.0
        %2180 = vmatpush.msra.mxu0 0.0
        %2181 = vmatpush.msra.mxu0 0.0
        %2182 = vmatpush.msra.mxu0 0.0
        %2183 = vmatpush.msra.mxu0 0.0
        %2184 = vmatpush.msra.mxu0 %v2063
        %2185 = vmatpush.msra.mxu0 %v2033
        %2186 = vmatpush.msra.mxu0 %v2027
        %2187 = vmatpush.msra.mxu0 %v2021
        %2188 = vmatmul.f32.gmra.mxu0 %v2042
        %v2189 = vpop.f32.mrf.mxu0
        %v2190 = vadd.f32 0.0, %v2189
        %2191 = vmatmul.f32.gmra.mxu0 %v2045
        %v2192 = vpop.f32.mrf.mxu0
        %v2193 = vadd.f32 0.0, %v2192
        %2194 = vmatmul.f32.gmra.mxu0 %v2048
        %v2195 = vpop.f32.mrf.mxu0
        %v2196 = vadd.f32 0.0, %v2195
        %2197 = vdwg.mxu0
        %2198 = vmatpush.msra.mxu0 0.0
        %2199 = vmatpush.msra.mxu0 0.0
        %2200 = vmatpush.msra.mxu0 0.0
        %2201 = vmatpush.msra.mxu0 0.0
        %2202 = vmatpush.msra.mxu0 0.0
        %2203 = vmatpush.msra.mxu0 0.0
        %2204 = vmatpush.msra.mxu0 0.0
        %2205 = vmatpush.msra.mxu0 0.0
        %2206 = vmatpush.msra.mxu0 0.0
        %2207 = vmatpush.msra.mxu0 0.0
        %2208 = vmatpush.msra.mxu0 0.0
        %2209 = vmatpush.msra.mxu0 0.0
        %2210 = vmatpush.msra.mxu0 %v2066
        %2211 = vmatpush.msra.mxu0 %v2034
        %2212 = vmatpush.msra.mxu0 %v2028
        %2213 = vmatpush.msra.mxu0 %v2022
        %2214 = vmatmul.f32.gmra.mxu0 %v2042
        %v2215 = vpop.f32.mrf.mxu0
        %v2216 = vadd.f32 0.0, %v2215
        %2217 = vmatmul.f32.gmra.mxu0 %v2045
        %v2218 = vpop.f32.mrf.mxu0
        %v2219 = vadd.f32 0.0, %v2218
        %2220 = vmatmul.f32.gmra.mxu0 %v2048
        %v2221 = vpop.f32.mrf.mxu0
        %v2222 = vadd.f32 0.0, %v2221
        %2223 = vdwg.mxu0
        %v2224 = vmax.f32 %v1717, %v2086
        %v2225 = vmax.f32 %v1718, %v2112
        %v2226 = vmax.f32 %v1719, %v2138
        %v2227 = vmax.f32 %v1720, %v2164
        %v2228 = vmax.f32 %v1721, %v2190
        %v2229 = vmax.f32 %v1722, %v2216
        %v2230 = vmax.f32 %v1723, %v2089
        %v2231 = vmax.f32 %v1724, %v2115
        %v2232 = vmax.f32 %v1725, %v2141
        %v2233 = vmax.f32 %v1726, %v2167
        %v2234 = vmax.f32 %v1727, %v2193
        %v2235 = vmax.f32 %v1728, %v2219
        %v2236 = vmax.f32 %v1729, %v2092
        %v2237 = vmax.f32 %v1730, %v2118
        %v2238 = vmax.f32 %v1731, %v2144
        %v2239 = vmax.f32 %v1732, %v2170
        %v2240 = vmax.f32 %v1733, %v2196
        %v2241 = vmax.f32 %v1734, %v2222
        %v2242 = vld [vmem:[%s2] sm:$0xff]
        %v2243 = vld [vmem:[%s2 + $0x8] sm:$0xff]
        %v2244 = vld [vmem:[%s2 + $0x10] sm:$0x3]
        %2246 = vset.pattern.permute.xlu0 0
        %2247 = vperm.xlu0 %2246, %v2242
        %v2248 = vpop.permute.xlu0 %2247
        %2251 = vset.pattern.permute.xlu0 0
        %2252 = vperm.xlu0 %2251, %v2243
        %v2253 = vpop.permute.xlu0 %2252
        %2256 = vset.pattern.permute.xlu0 0
        %2257 = vperm.xlu0 %2256, %v2244
        %v2258 = vpop.permute.xlu0 %2257
        %v2260 = vadd.f32 %v2224, %v2248
        %v2261 = vadd.f32 %v2225, %v2248
        %v2262 = vadd.f32 %v2226, %v2248
        %v2263 = vadd.f32 %v2227, %v2248
        %v2264 = vadd.f32 %v2228, %v2248
        %v2265 = vadd.f32 %v2229, %v2248
        %v2266 = vadd.f32 %v2230, %v2253
        %v2267 = vadd.f32 %v2231, %v2253
        %v2268 = vadd.f32 %v2232, %v2253
        %v2269 = vadd.f32 %v2233, %v2253
        %v2270 = vadd.f32 %v2234, %v2253
        %v2271 = vadd.f32 %v2235, %v2253
        %v2272 = vadd.f32 %v2236, %v2258
        %v2273 = vadd.f32 %v2237, %v2258
        %v2274 = vadd.f32 %v2238, %v2258
        %v2275 = vadd.f32 %v2239, %v2258
        %v2276 = vadd.f32 %v2240, %v2258
        %v2277 = vadd.f32 %v2241, %v2258
        %v2278 = vmax.f32 %v2260, 0.0
        %v2279 = vmax.f32 %v2261, 0.0
        %v2280 = vmax.f32 %v2262, 0.0
        %v2281 = vmax.f32 %v2263, 0.0
        %v2282 = vmax.f32 %v2264, 0.0
        %v2283 = vmax.f32 %v2265, 0.0
        %v2284 = vmax.f32 %v2266, 0.0
        %v2285 = vmax.f32 %v2267, 0.0
        %v2286 = vmax.f32 %v2268, 0.0
        %v2287 = vmax.f32 %v2269, 0.0
        %v2288 = vmax.f32 %v2270, 0.0
        %v2289 = vmax.f32 %v2271, 0.0
        %v2290 = vmax.f32 %v2272, 0.0
        %v2291 = vmax.f32 %v2273, 0.0
        %v2292 = vmax.f32 %v2274, 0.0
        %v2293 = vmax.f32 %v2275, 0.0
        %v2294 = vmax.f32 %v2276, 0.0
        %v2295 = vmax.f32 %v2277, 0.0
        %v2296 = vld [vmem:[%s3] sm:$0xff]
        %v2297 = vld [vmem:[%s3 + $0x8] sm:$0xff]
        %v2298 = vld [vmem:[%s3 + $0x10] sm:$0xff]
        %v2299 = vld [vmem:[%s3 + $0x18] sm:$0xff]
        %v2300 = vld [vmem:[%s3 + $0x20] sm:$0xff]
        %v2301 = vld [vmem:[%s3 + $0x28] sm:$0xff]
        %v2302 = vld [vmem:[%s3 + $0x30] sm:$0xff]
        %v2303 = vld [vmem:[%s3 + $0x38] sm:$0xff]
        %v2304 = vld [vmem:[%s3 + $0x40] sm:$0xff]
        %v2305 = vld [vmem:[%s3 + $0x48] sm:$0xff]
        %v2306 = vld [vmem:[%s3 + $0x50] sm:$0xff]
        %v2307 = vld [vmem:[%s3 + $0x58] sm:$0xff]
        %v2308 = vld [vmem:[%s3 + $0x60] sm:$0xff]
        %v2309 = vld [vmem:[%s3 + $0x68] sm:$0xff]
        %v2310 = vld [vmem:[%s3 + $0x70] sm:$0xff]
        %v2311 = vld [vmem:[%s3 + $0x78] sm:$0xff]
        %v2312 = vld [vmem:[%s3 + $0x80] sm:$0xff]
        %v2313 = vld [vmem:[%s3 + $0x88] sm:$0xff]
        %v2314 = vld [vmem:[%s3 + $0x90] sm:$0xff]
        %v2315 = vld [vmem:[%s3 + $0x98] sm:$0xff]
        %v2316 = vld [vmem:[%s3 + $0xa0] sm:$0xff]
        %v2317 = vld [vmem:[%s3 + $0xa8] sm:$0xff]
        %v2318 = vld [vmem:[%s3 + $0xb0] sm:$0xff]
        %v2319 = vld [vmem:[%s3 + $0xb8] sm:$0xff]
        %v2320 = vld [vmem:[%s3 + $0xc0] sm:$0xff]
        %v2321 = vld [vmem:[%s3 + $0xc8] sm:$0xff]
        %v2322 = vld [vmem:[%s3 + $0xd0] sm:$0xff]
        %v2323 = vld [vmem:[%s3 + $0xd8] sm:$0xff]
        %v2324 = vld [vmem:[%s3 + $0xe0] sm:$0xff]
        %v2325 = vld [vmem:[%s3 + $0xe8] sm:$0xff]
        %v2326 = vld [vmem:[%s3 + $0xf0] sm:$0xff]
        %v2327 = vld [vmem:[%s3 + $0xf8] sm:$0xff]
        %v2328 = vld [vmem:[%s3 + $0x100] sm:$0xff]
        %v2329 = vld [vmem:[%s3 + $0x108] sm:$0xff]
        %v2330 = vld [vmem:[%s3 + $0x110] sm:$0xff]
        %v2331 = vld [vmem:[%s3 + $0x118] sm:$0xff]
        %v2332 = vld [vmem:[%s3 + $0x120] sm:$0xff]
        %v2333 = vld [vmem:[%s3 + $0x128] sm:$0xff]
        %v2334 = vld [vmem:[%s3 + $0x130] sm:$0xff]
        %v2335 = vld [vmem:[%s3 + $0x138] sm:$0xff]
        %v2336 = vld [vmem:[%s3 + $0x140] sm:$0xff]
        %v2337 = vld [vmem:[%s3 + $0x148] sm:$0xff]
        %v2338 = vld [vmem:[%s3 + $0x150] sm:$0xff]
        %v2339 = vld [vmem:[%s3 + $0x158] sm:$0xff]
        %v2340 = vld [vmem:[%s3 + $0x160] sm:$0xff]
        %v2341 = vld [vmem:[%s3 + $0x168] sm:$0xff]
        %v2342 = vld [vmem:[%s3 + $0x170] sm:$0xff]
        %v2343 = vld [vmem:[%s3 + $0x178] sm:$0xff]
        %v2344 = vld [vmem:[%s3 + $0x180] sm:$0xff]
        %v2345 = vld [vmem:[%s3 + $0x188] sm:$0xff]
        %v2346 = vld [vmem:[%s3 + $0x190] sm:$0xff]
        %v2347 = vld [vmem:[%s3 + $0x198] sm:$0xff]
        %v2348 = vld [vmem:[%s3 + $0x1a0] sm:$0xff]
        %v2349 = vld [vmem:[%s3 + $0x1a8] sm:$0xff]
        %v2350 = vld [vmem:[%s3 + $0x1b0] sm:$0xff]
        %v2351 = vld [vmem:[%s3 + $0x1b8] sm:$0xff]
        %v2352 = vld [vmem:[%s3 + $0x1c0] sm:$0xff]
        %v2353 = vld [vmem:[%s3 + $0x1c8] sm:$0xff]
        %v2354 = vld [vmem:[%s3 + $0x1d0] sm:$0xff]
        %v2355 = vld [vmem:[%s3 + $0x1d8] sm:$0xff]
        %v2356 = vld [vmem:[%s3 + $0x1e0] sm:$0xff]
        %v2357 = vld [vmem:[%s3 + $0x1e8] sm:$0xff]
        %v2358 = vld [vmem:[%s3 + $0x1f0] sm:$0xff]
        %v2359 = vld [vmem:[%s3 + $0x1f8] sm:$0xff]
        %v2360 = vld [vmem:[%s3 + $0x200] sm:$0xff]
        %v2361 = vld [vmem:[%s3 + $0x208] sm:$0xff]
        %v2362 = vld [vmem:[%s3 + $0x210] sm:$0xff]
        %v2363 = vld [vmem:[%s3 + $0x218] sm:$0xff]
        %v2364 = vld [vmem:[%s3 + $0x220] sm:$0xff]
        %v2365 = vld [vmem:[%s3 + $0x228] sm:$0xff]
        %v2366 = vld [vmem:[%s3 + $0x230] sm:$0xff]
        %v2367 = vld [vmem:[%s3 + $0x238] sm:$0xff]
        %v2368 = vld [vmem:[%s3 + $0x240] sm:$0xff]
        %v2369 = vld [vmem:[%s3 + $0x248] sm:$0xff]
        %v2370 = vld [vmem:[%s3 + $0x250] sm:$0xff]
        %v2371 = vld [vmem:[%s3 + $0x258] sm:$0xff]
        %v2372 = vld [vmem:[%s3 + $0x260] sm:$0xff]
        %v2373 = vld [vmem:[%s3 + $0x268] sm:$0xff]
        %v2374 = vld [vmem:[%s3 + $0x270] sm:$0xff]
        %v2375 = vld [vmem:[%s3 + $0x278] sm:$0xff]
        %v2376 = vld [vmem:[%s3 + $0x280] sm:$0xff]
        %v2377 = vld [vmem:[%s3 + $0x288] sm:$0xff]
        %v2378 = vld [vmem:[%s3 + $0x290] sm:$0xff]
        %v2379 = vld [vmem:[%s3 + $0x298] sm:$0xff]
        %v2380 = vld [vmem:[%s3 + $0x2a0] sm:$0xff]
        %v2381 = vld [vmem:[%s3 + $0x2a8] sm:$0xff]
        %v2382 = vld [vmem:[%s3 + $0x2b0] sm:$0xff]
        %v2383 = vld [vmem:[%s3 + $0x2b8] sm:$0xff]
        %v2384 = vld [vmem:[%s3 + $0x2c0] sm:$0xff]
        %v2385 = vld [vmem:[%s3 + $0x2c8] sm:$0xff]
        %v2386 = vld [vmem:[%s3 + $0x2d0] sm:$0xff]
        %v2387 = vld [vmem:[%s3 + $0x2d8] sm:$0xff]
        %v2388 = vld [vmem:[%s3 + $0x2e0] sm:$0xff]
        %v2389 = vld [vmem:[%s3 + $0x2e8] sm:$0xff]
        %v2390 = vld [vmem:[%s3 + $0x2f0] sm:$0xff]
        %v2391 = vld [vmem:[%s3 + $0x2f8] sm:$0xff]
        %v2392 = vld [vmem:[%s3 + $0x300] sm:$0xff]
        %v2393 = vld [vmem:[%s3 + $0x308] sm:$0xff]
        %v2394 = vld [vmem:[%s3 + $0x310] sm:$0xff]
        %v2395 = vld [vmem:[%s3 + $0x318] sm:$0xff]
        %v2396 = vld [vmem:[%s3 + $0x320] sm:$0xff]
        %v2397 = vld [vmem:[%s3 + $0x328] sm:$0xff]
        %v2398 = vld [vmem:[%s3 + $0x330] sm:$0xff]
        %v2399 = vld [vmem:[%s3 + $0x338] sm:$0xff]
        %v2400 = vld [vmem:[%s3 + $0x340] sm:$0xff]
        %v2401 = vld [vmem:[%s3 + $0x348] sm:$0xff]
        %v2402 = vld [vmem:[%s3 + $0x350] sm:$0xff]
        %v2403 = vld [vmem:[%s3 + $0x358] sm:$0xff]
        %v2404 = vld [vmem:[%s3 + $0x360] sm:$0xff]
        %v2405 = vld [vmem:[%s3 + $0x368] sm:$0xff]
        %v2406 = vld [vmem:[%s3 + $0x370] sm:$0xff]
        %v2407 = vld [vmem:[%s3 + $0x378] sm:$0xff]
        %v2408 = vld [vmem:[%s3 + $0x380] sm:$0xff]
        %v2409 = vld [vmem:[%s3 + $0x388] sm:$0xff]
        %v2410 = vld [vmem:[%s3 + $0x390] sm:$0xff]
        %v2411 = vld [vmem:[%s3 + $0x398] sm:$0xff]
        %v2412 = vld [vmem:[%s3 + $0x3a0] sm:$0xff]
        %v2413 = vld [vmem:[%s3 + $0x3a8] sm:$0xff]
        %v2414 = vld [vmem:[%s3 + $0x3b0] sm:$0xff]
        %v2415 = vld [vmem:[%s3 + $0x3b8] sm:$0xff]
        %v2416 = vld [vmem:[%s3 + $0x3c0] sm:$0xff]
        %v2417 = vld [vmem:[%s3 + $0x3c8] sm:$0xff]
        %v2418 = vld [vmem:[%s3 + $0x3d0] sm:$0xff]
        %v2419 = vld [vmem:[%s3 + $0x3d8] sm:$0xff]
        %v2420 = vld [vmem:[%s3 + $0x3e0] sm:$0xff]
        %v2421 = vld [vmem:[%s3 + $0x3e8] sm:$0xff]
        %v2422 = vld [vmem:[%s3 + $0x3f0] sm:$0xff]
        %v2423 = vld [vmem:[%s3 + $0x3f8] sm:$0xff]
        %v2424 = vld [vmem:[%s3 + $0x400] sm:$0xff]
        %v2425 = vld [vmem:[%s3 + $0x408] sm:$0xff]
        %v2426 = vld [vmem:[%s3 + $0x410] sm:$0xff]
        %v2427 = vld [vmem:[%s3 + $0x418] sm:$0xff]
        %v2428 = vld [vmem:[%s3 + $0x420] sm:$0xff]
        %v2429 = vld [vmem:[%s3 + $0x428] sm:$0xff]
        %v2430 = vld [vmem:[%s3 + $0x430] sm:$0xff]
        %v2431 = vld [vmem:[%s3 + $0x438] sm:$0xff]
        %v2432 = vld [vmem:[%s3 + $0x440] sm:$0xff]
        %v2433 = vld [vmem:[%s3 + $0x448] sm:$0xff]
        %v2434 = vld [vmem:[%s3 + $0x450] sm:$0xff]
        %v2435 = vld [vmem:[%s3 + $0x458] sm:$0xff]
        %v2436 = vld [vmem:[%s3 + $0x460] sm:$0xff]
        %v2437 = vld [vmem:[%s3 + $0x468] sm:$0xff]
        %v2438 = vld [vmem:[%s3 + $0x470] sm:$0xff]
        %v2439 = vld [vmem:[%s3 + $0x478] sm:$0xff]
        %v2440 = vld [vmem:[%s3 + $0x480] sm:$0xff]
        %v2441 = vld [vmem:[%s3 + $0x488] sm:$0xff]
        %v2442 = vld [vmem:[%s3 + $0x490] sm:$0xff]
        %v2443 = vld [vmem:[%s3 + $0x498] sm:$0xff]
        %v2444 = vld [vmem:[%s3 + $0x4a0] sm:$0xff]
        %v2445 = vld [vmem:[%s3 + $0x4a8] sm:$0xff]
        %v2446 = vld [vmem:[%s3 + $0x4b0] sm:$0xff]
        %v2447 = vld [vmem:[%s3 + $0x4b8] sm:$0xff]
        %v2448 = vld [vmem:[%s3 + $0x4c0] sm:$0xff]
        %v2449 = vld [vmem:[%s3 + $0x4c8] sm:$0xff]
        %v2450 = vld [vmem:[%s3 + $0x4d0] sm:$0xff]
        %v2451 = vld [vmem:[%s3 + $0x4d8] sm:$0xff]
        %v2452 = vld [vmem:[%s3 + $0x4e0] sm:$0xff]
        %v2453 = vld [vmem:[%s3 + $0x4e8] sm:$0xff]
        %v2454 = vld [vmem:[%s3 + $0x4f0] sm:$0xff]
        %v2455 = vld [vmem:[%s3 + $0x4f8] sm:$0xff]
        %v2456 = vld [vmem:[%s3 + $0x500] sm:$0xff]
        %v2457 = vld [vmem:[%s3 + $0x508] sm:$0xff]
        %v2458 = vld [vmem:[%s3 + $0x510] sm:$0xff]
        %v2459 = vld [vmem:[%s3 + $0x518] sm:$0xff]
        %v2460 = vld [vmem:[%s3 + $0x520] sm:$0xff]
        %v2461 = vld [vmem:[%s3 + $0x528] sm:$0xff]
        %v2462 = vld [vmem:[%s3 + $0x530] sm:$0xff]
        %v2463 = vld [vmem:[%s3 + $0x538] sm:$0xff]
        %v2464 = vld [vmem:[%s3 + $0x540] sm:$0xff]
        %v2465 = vld [vmem:[%s3 + $0x548] sm:$0xff]
        %v2466 = vld [vmem:[%s3 + $0x550] sm:$0xff]
        %v2467 = vld [vmem:[%s3 + $0x558] sm:$0xff]
        %v2468 = vld [vmem:[%s3 + $0x560] sm:$0xff]
        %v2469 = vld [vmem:[%s3 + $0x568] sm:$0xff]
        %v2470 = vld [vmem:[%s3 + $0x570] sm:$0xff]
        %v2471 = vld [vmem:[%s3 + $0x578] sm:$0xff]
        %v2472 = vld [vmem:[%s3 + $0x580] sm:$0xff]
        %v2473 = vld [vmem:[%s3 + $0x588] sm:$0xff]
        %v2474 = vld [vmem:[%s3 + $0x590] sm:$0xff]
        %v2475 = vld [vmem:[%s3 + $0x598] sm:$0xff]
        %v2476 = vld [vmem:[%s3 + $0x5a0] sm:$0xff]
        %v2477 = vld [vmem:[%s3 + $0x5a8] sm:$0xff]
        %v2478 = vld [vmem:[%s3 + $0x5b0] sm:$0xff]
        %v2479 = vld [vmem:[%s3 + $0x5b8] sm:$0xff]
        %v2480 = vld [vmem:[%s3 + $0x5c0] sm:$0xff]
        %v2481 = vld [vmem:[%s3 + $0x5c8] sm:$0xff]
        %v2482 = vld [vmem:[%s3 + $0x5d0] sm:$0xff]
        %v2483 = vld [vmem:[%s3 + $0x5d8] sm:$0xff]
        %v2484 = vld [vmem:[%s3 + $0x5e0] sm:$0xff]
        %v2485 = vld [vmem:[%s3 + $0x5e8] sm:$0xff]
        %v2486 = vld [vmem:[%s3 + $0x5f0] sm:$0xff]
        %v2487 = vld [vmem:[%s3 + $0x5f8] sm:$0xff]
        %v2488 = vld [vmem:[%s3 + $0x600] sm:$0xff]
        %v2489 = vld [vmem:[%s3 + $0x608] sm:$0xff]
        %v2490 = vld [vmem:[%s3 + $0x610] sm:$0xff]
        %v2491 = vld [vmem:[%s3 + $0x618] sm:$0xff]
        %v2492 = vld [vmem:[%s3 + $0x620] sm:$0xff]
        %v2493 = vld [vmem:[%s3 + $0x628] sm:$0xff]
        %v2494 = vld [vmem:[%s3 + $0x630] sm:$0xff]
        %v2495 = vld [vmem:[%s3 + $0x638] sm:$0xff]
        %v2496 = vld [vmem:[%s3 + $0x640] sm:$0xff]
        %v2497 = vld [vmem:[%s3 + $0x648] sm:$0xff]
        %v2498 = vld [vmem:[%s3 + $0x650] sm:$0xff]
        %v2499 = vld [vmem:[%s3 + $0x658] sm:$0xff]
        %v2500 = vld [vmem:[%s3 + $0x660] sm:$0xff]
        %v2501 = vld [vmem:[%s3 + $0x668] sm:$0xff]
        %v2502 = vld [vmem:[%s3 + $0x670] sm:$0xff]
        %v2503 = vld [vmem:[%s3 + $0x678] sm:$0xff]
        %v2504 = vld [vmem:[%s3 + $0x680] sm:$0xff]
        %v2505 = vld [vmem:[%s3 + $0x688] sm:$0xff]
        %v2506 = vld [vmem:[%s3 + $0x690] sm:$0xff]
        %v2507 = vld [vmem:[%s3 + $0x698] sm:$0xff]
        %v2508 = vld [vmem:[%s3 + $0x6a0] sm:$0xff]
        %v2509 = vld [vmem:[%s3 + $0x6a8] sm:$0xff]
        %v2510 = vld [vmem:[%s3 + $0x6b0] sm:$0xff]
        %v2511 = vld [vmem:[%s3 + $0x6b8] sm:$0xff]
        %v2512 = vld [vmem:[%s3 + $0x6c0] sm:$0xff]
        %v2513 = vld [vmem:[%s3 + $0x6c8] sm:$0xff]
        %v2514 = vld [vmem:[%s3 + $0x6d0] sm:$0xff]
        %v2515 = vld [vmem:[%s3 + $0x6d8] sm:$0xff]
        %v2516 = vld [vmem:[%s3 + $0x6e0] sm:$0xff]
        %v2517 = vld [vmem:[%s3 + $0x6e8] sm:$0xff]
        %v2518 = vld [vmem:[%s3 + $0x6f0] sm:$0xff]
        %v2519 = vld [vmem:[%s3 + $0x6f8] sm:$0xff]
        %v2520 = vld [vmem:[%s3 + $0x700] sm:$0xff]
        %v2521 = vld [vmem:[%s3 + $0x708] sm:$0xff]
        %v2522 = vld [vmem:[%s3 + $0x710] sm:$0xff]
        %v2523 = vld [vmem:[%s3 + $0x718] sm:$0xff]
        %v2524 = vld [vmem:[%s3 + $0x720] sm:$0xff]
        %v2525 = vld [vmem:[%s3 + $0x728] sm:$0xff]
        %v2526 = vld [vmem:[%s3 + $0x730] sm:$0xff]
        %v2527 = vld [vmem:[%s3 + $0x738] sm:$0xff]
        %v2528 = vld [vmem:[%s3 + $0x740] sm:$0xff]
        %v2529 = vld [vmem:[%s3 + $0x748] sm:$0xff]
        %v2530 = vld [vmem:[%s3 + $0x750] sm:$0xff]
        %v2531 = vld [vmem:[%s3 + $0x758] sm:$0xff]
        %v2532 = vld [vmem:[%s3 + $0x760] sm:$0xff]
        %v2533 = vld [vmem:[%s3 + $0x768] sm:$0xff]
        %v2534 = vld [vmem:[%s3 + $0x770] sm:$0xff]
        %v2535 = vld [vmem:[%s3 + $0x778] sm:$0xff]
        %v2536 = vld [vmem:[%s3 + $0x780] sm:$0xff]
        %v2537 = vld [vmem:[%s3 + $0x788] sm:$0xff]
        %v2538 = vld [vmem:[%s3 + $0x790] sm:$0xff]
        %v2539 = vld [vmem:[%s3 + $0x798] sm:$0xff]
        %v2540 = vld [vmem:[%s3 + $0x7a0] sm:$0xff]
        %v2541 = vld [vmem:[%s3 + $0x7a8] sm:$0xff]
        %v2542 = vld [vmem:[%s3 + $0x7b0] sm:$0xff]
        %v2543 = vld [vmem:[%s3 + $0x7b8] sm:$0xff]
        %v2544 = vld [vmem:[%s3 + $0x7c0] sm:$0xff]
        %v2545 = vld [vmem:[%s3 + $0x7c8] sm:$0xff]
        %v2546 = vld [vmem:[%s3 + $0x7d0] sm:$0xff]
        %v2547 = vld [vmem:[%s3 + $0x7d8] sm:$0xff]
        %v2548 = vld [vmem:[%s3 + $0x7e0] sm:$0xff]
        %v2549 = vld [vmem:[%s3 + $0x7e8] sm:$0xff]
        %v2550 = vld [vmem:[%s3 + $0x7f0] sm:$0xff]
        %v2551 = vld [vmem:[%s3 + $0x7f8] sm:$0xff]
        %v2552 = vld [vmem:[%s3 + $0x800] sm:$0xff]
        %v2553 = vld [vmem:[%s3 + $0x808] sm:$0xff]
        %v2554 = vld [vmem:[%s3 + $0x810] sm:$0xff]
        %v2555 = vld [vmem:[%s3 + $0x818] sm:$0xff]
        %v2556 = vld [vmem:[%s3 + $0x820] sm:$0xff]
        %v2557 = vld [vmem:[%s3 + $0x828] sm:$0xff]
        %v2558 = vld [vmem:[%s3 + $0x830] sm:$0xff]
        %v2559 = vld [vmem:[%s3 + $0x838] sm:$0xff]
        %v2560 = vld [vmem:[%s3 + $0x840] sm:$0xff]
        %v2561 = vld [vmem:[%s3 + $0x848] sm:$0xff]
        %v2562 = vld [vmem:[%s3 + $0x850] sm:$0xff]
        %v2563 = vld [vmem:[%s3 + $0x858] sm:$0xff]
        %v2564 = vld [vmem:[%s3 + $0x860] sm:$0xff]
        %v2565 = vld [vmem:[%s3 + $0x868] sm:$0xff]
        %v2566 = vld [vmem:[%s3 + $0x870] sm:$0xff]
        %v2567 = vld [vmem:[%s3 + $0x878] sm:$0xff]
        %v2568 = vld [vmem:[%s3 + $0x880] sm:$0xff]
        %v2569 = vld [vmem:[%s3 + $0x888] sm:$0xff]
        %v2570 = vld [vmem:[%s3 + $0x890] sm:$0xff]
        %v2571 = vld [vmem:[%s3 + $0x898] sm:$0xff]
        %v2572 = vld [vmem:[%s3 + $0x8a0] sm:$0xff]
        %v2573 = vld [vmem:[%s3 + $0x8a8] sm:$0xff]
        %v2574 = vld [vmem:[%s3 + $0x8b0] sm:$0xff]
        %v2575 = vld [vmem:[%s3 + $0x8b8] sm:$0xff]
        %v2576 = vld [vmem:[%s3 + $0x8c0] sm:$0xff]
        %v2577 = vld [vmem:[%s3 + $0x8c8] sm:$0xff]
        %v2578 = vld [vmem:[%s3 + $0x8d0] sm:$0xff]
        %v2579 = vld [vmem:[%s3 + $0x8d8] sm:$0xff]
        %v2580 = vld [vmem:[%s3 + $0x8e0] sm:$0xff]
        %v2581 = vld [vmem:[%s3 + $0x8e8] sm:$0xff]
        %v2582 = vld [vmem:[%s3 + $0x8f0] sm:$0xff]
        %v2583 = vld [vmem:[%s3 + $0x8f8] sm:$0xff]
        %v2584 = vld [vmem:[%s3 + $0x900] sm:$0xff]
        %v2585 = vld [vmem:[%s3 + $0x908] sm:$0xff]
        %v2586 = vld [vmem:[%s3 + $0x910] sm:$0xff]
        %v2587 = vld [vmem:[%s3 + $0x918] sm:$0xff]
        %v2588 = vld [vmem:[%s3 + $0x920] sm:$0xff]
        %v2589 = vld [vmem:[%s3 + $0x928] sm:$0xff]
        %v2590 = vld [vmem:[%s3 + $0x930] sm:$0xff]
        %v2591 = vld [vmem:[%s3 + $0x938] sm:$0xff]
        %v2592 = vld [vmem:[%s3 + $0x940] sm:$0xff]
        %v2593 = vld [vmem:[%s3 + $0x948] sm:$0xff]
        %v2594 = vld [vmem:[%s3 + $0x950] sm:$0xff]
        %v2595 = vld [vmem:[%s3 + $0x958] sm:$0xff]
        %v2596 = vld [vmem:[%s3 + $0x960] sm:$0xff]
        %v2597 = vld [vmem:[%s3 + $0x968] sm:$0xff]
        %v2598 = vld [vmem:[%s3 + $0x970] sm:$0xff]
        %v2599 = vld [vmem:[%s3 + $0x978] sm:$0xff]
        %v2600 = vld [vmem:[%s3 + $0x980] sm:$0xff]
        %v2601 = vld [vmem:[%s3 + $0x988] sm:$0xff]
        %v2602 = vld [vmem:[%s3 + $0x990] sm:$0xff]
        %v2603 = vld [vmem:[%s3 + $0x998] sm:$0xff]
        %v2604 = vld [vmem:[%s3 + $0x9a0] sm:$0xff]
        %v2605 = vld [vmem:[%s3 + $0x9a8] sm:$0xff]
        %v2606 = vld [vmem:[%s3 + $0x9b0] sm:$0xff]
        %v2607 = vld [vmem:[%s3 + $0x9b8] sm:$0xff]
        %v2608 = vld [vmem:[%s3 + $0x9c0] sm:$0xff]
        %v2609 = vld [vmem:[%s3 + $0x9c8] sm:$0xff]
        %v2610 = vld [vmem:[%s3 + $0x9d0] sm:$0xff]
        %v2611 = vld [vmem:[%s3 + $0x9d8] sm:$0xff]
        %v2612 = vld [vmem:[%s3 + $0x9e0] sm:$0xff]
        %v2613 = vld [vmem:[%s3 + $0x9e8] sm:$0xff]
        %v2614 = vld [vmem:[%s3 + $0x9f0] sm:$0xff]
        %v2615 = vld [vmem:[%s3 + $0x9f8] sm:$0xff]
        %v2616 = vld [vmem:[%s3 + $0xa00] sm:$0xff]
        %v2617 = vld [vmem:[%s3 + $0xa08] sm:$0xff]
        %v2618 = vld [vmem:[%s3 + $0xa10] sm:$0xff]
        %v2619 = vld [vmem:[%s3 + $0xa18] sm:$0xff]
        %v2620 = vld [vmem:[%s3 + $0xa20] sm:$0xff]
        %v2621 = vld [vmem:[%s3 + $0xa28] sm:$0xff]
        %v2622 = vld [vmem:[%s3 + $0xa30] sm:$0xff]
        %v2623 = vld [vmem:[%s3 + $0xa38] sm:$0xff]
        %v2624 = vld [vmem:[%s3 + $0xa40] sm:$0xff]
        %v2625 = vld [vmem:[%s3 + $0xa48] sm:$0xff]
        %v2626 = vld [vmem:[%s3 + $0xa50] sm:$0xff]
        %v2627 = vld [vmem:[%s3 + $0xa58] sm:$0xff]
        %v2628 = vld [vmem:[%s3 + $0xa60] sm:$0xff]
        %v2629 = vld [vmem:[%s3 + $0xa68] sm:$0xff]
        %v2630 = vld [vmem:[%s3 + $0xa70] sm:$0xff]
        %v2631 = vld [vmem:[%s3 + $0xa78] sm:$0xff]
        %v2632 = vld [vmem:[%s3 + $0xa80] sm:$0xff]
        %v2633 = vld [vmem:[%s3 + $0xa88] sm:$0xff]
        %v2634 = vld [vmem:[%s3 + $0xa90] sm:$0xff]
        %v2635 = vld [vmem:[%s3 + $0xa98] sm:$0xff]
        %v2636 = vld [vmem:[%s3 + $0xaa0] sm:$0xff]
        %v2637 = vld [vmem:[%s3 + $0xaa8] sm:$0xff]
        %v2638 = vld [vmem:[%s3 + $0xab0] sm:$0xff]
        %v2639 = vld [vmem:[%s3 + $0xab8] sm:$0xff]
        %v2640 = vld [vmem:[%s3 + $0xac0] sm:$0xff]
        %v2641 = vld [vmem:[%s3 + $0xac8] sm:$0xff]
        %v2642 = vld [vmem:[%s3 + $0xad0] sm:$0xff]
        %v2643 = vld [vmem:[%s3 + $0xad8] sm:$0xff]
        %v2644 = vld [vmem:[%s3 + $0xae0] sm:$0xff]
        %v2645 = vld [vmem:[%s3 + $0xae8] sm:$0xff]
        %v2646 = vld [vmem:[%s3 + $0xaf0] sm:$0xff]
        %v2647 = vld [vmem:[%s3 + $0xaf8] sm:$0xff]
        %v2648 = vld [vmem:[%s3 + $0xb00] sm:$0xff]
        %v2649 = vld [vmem:[%s3 + $0xb08] sm:$0xff]
        %v2650 = vld [vmem:[%s3 + $0xb10] sm:$0xff]
        %v2651 = vld [vmem:[%s3 + $0xb18] sm:$0xff]
        %v2652 = vld [vmem:[%s3 + $0xb20] sm:$0xff]
        %v2653 = vld [vmem:[%s3 + $0xb28] sm:$0xff]
        %v2654 = vld [vmem:[%s3 + $0xb30] sm:$0xff]
        %v2655 = vld [vmem:[%s3 + $0xb38] sm:$0xff]
        %v2656 = vld [vmem:[%s3 + $0xb40] sm:$0xff]
        %v2657 = vld [vmem:[%s3 + $0xb48] sm:$0xff]
        %v2658 = vld [vmem:[%s3 + $0xb50] sm:$0xff]
        %v2659 = vld [vmem:[%s3 + $0xb58] sm:$0xff]
        %v2660 = vld [vmem:[%s3 + $0xb60] sm:$0xff]
        %v2661 = vld [vmem:[%s3 + $0xb68] sm:$0xff]
        %v2662 = vld [vmem:[%s3 + $0xb70] sm:$0xff]
        %v2663 = vld [vmem:[%s3 + $0xb78] sm:$0xff]
        %v2664 = vld [vmem:[%s3 + $0xb80] sm:$0xff]
        %v2665 = vld [vmem:[%s3 + $0xb88] sm:$0xff]
        %v2666 = vld [vmem:[%s3 + $0xb90] sm:$0xff]
        %v2667 = vld [vmem:[%s3 + $0xb98] sm:$0xff]
        %v2668 = vld [vmem:[%s3 + $0xba0] sm:$0xff]
        %v2669 = vld [vmem:[%s3 + $0xba8] sm:$0xff]
        %v2670 = vld [vmem:[%s3 + $0xbb0] sm:$0xff]
        %v2671 = vld [vmem:[%s3 + $0xbb8] sm:$0xff]
        %v2672 = vld [vmem:[%s3 + $0xbc0] sm:$0xff]
        %v2673 = vld [vmem:[%s3 + $0xbc8] sm:$0xff]
        %v2674 = vld [vmem:[%s3 + $0xbd0] sm:$0xff]
        %v2675 = vld [vmem:[%s3 + $0xbd8] sm:$0xff]
        %v2676 = vld [vmem:[%s3 + $0xbe0] sm:$0xff]
        %v2677 = vld [vmem:[%s3 + $0xbe8] sm:$0xff]
        %v2678 = vld [vmem:[%s3 + $0xbf0] sm:$0xff]
        %v2679 = vld [vmem:[%s3 + $0xbf8] sm:$0xff]
        %v2680 = vld [vmem:[%s3 + $0xc00] sm:$0xff]
        %v2681 = vld [vmem:[%s3 + $0xc08] sm:$0xff]
        %v2682 = vld [vmem:[%s3 + $0xc10] sm:$0xff]
        %v2683 = vld [vmem:[%s3 + $0xc18] sm:$0xff]
        %v2684 = vld [vmem:[%s3 + $0xc20] sm:$0xff]
        %v2685 = vld [vmem:[%s3 + $0xc28] sm:$0xff]
        %v2686 = vld [vmem:[%s3 + $0xc30] sm:$0xff]
        %v2687 = vld [vmem:[%s3 + $0xc38] sm:$0xff]
        %v2688 = vld [vmem:[%s3 + $0xc40] sm:$0xff]
        %v2689 = vld [vmem:[%s3 + $0xc48] sm:$0xff]
        %v2690 = vld [vmem:[%s3 + $0xc50] sm:$0xff]
        %v2691 = vld [vmem:[%s3 + $0xc58] sm:$0xff]
        %v2692 = vld [vmem:[%s3 + $0xc60] sm:$0xff]
        %v2693 = vld [vmem:[%s3 + $0xc68] sm:$0xff]
        %v2694 = vld [vmem:[%s3 + $0xc70] sm:$0xff]
        %v2695 = vld [vmem:[%s3 + $0xc78] sm:$0xff]
        %v2696 = vld [vmem:[%s3 + $0xc80] sm:$0xff]
        %v2697 = vld [vmem:[%s3 + $0xc88] sm:$0xff]
        %v2698 = vld [vmem:[%s3 + $0xc90] sm:$0xff]
        %v2699 = vld [vmem:[%s3 + $0xc98] sm:$0xff]
        %v2700 = vld [vmem:[%s3 + $0xca0] sm:$0xff]
        %v2701 = vld [vmem:[%s3 + $0xca8] sm:$0xff]
        %v2702 = vld [vmem:[%s3 + $0xcb0] sm:$0xff]
        %v2703 = vld [vmem:[%s3 + $0xcb8] sm:$0xff]
        %v2704 = vld [vmem:[%s3 + $0xcc0] sm:$0xff]
        %v2705 = vld [vmem:[%s3 + $0xcc8] sm:$0xff]
        %v2706 = vld [vmem:[%s3 + $0xcd0] sm:$0xff]
        %v2707 = vld [vmem:[%s3 + $0xcd8] sm:$0xff]
        %v2708 = vld [vmem:[%s3 + $0xce0] sm:$0xff]
        %v2709 = vld [vmem:[%s3 + $0xce8] sm:$0xff]
        %v2710 = vld [vmem:[%s3 + $0xcf0] sm:$0xff]
        %v2711 = vld [vmem:[%s3 + $0xcf8] sm:$0xff]
        %v2712 = vld [vmem:[%s3 + $0xd00] sm:$0xff]
        %v2713 = vld [vmem:[%s3 + $0xd08] sm:$0xff]
        %v2714 = vld [vmem:[%s3 + $0xd10] sm:$0xff]
        %v2715 = vld [vmem:[%s3 + $0xd18] sm:$0xff]
        %v2716 = vld [vmem:[%s3 + $0xd20] sm:$0xff]
        %v2717 = vld [vmem:[%s3 + $0xd28] sm:$0xff]
        %v2718 = vld [vmem:[%s3 + $0xd30] sm:$0xff]
        %v2719 = vld [vmem:[%s3 + $0xd38] sm:$0xff]
        %v2720 = vld [vmem:[%s3 + $0xd40] sm:$0xff]
        %v2721 = vld [vmem:[%s3 + $0xd48] sm:$0xff]
        %v2722 = vld [vmem:[%s3 + $0xd50] sm:$0xff]
        %v2723 = vld [vmem:[%s3 + $0xd58] sm:$0xff]
        %v2724 = vld [vmem:[%s3 + $0xd60] sm:$0xff]
        %v2725 = vld [vmem:[%s3 + $0xd68] sm:$0xff]
        %v2726 = vld [vmem:[%s3 + $0xd70] sm:$0xff]
        %v2727 = vld [vmem:[%s3 + $0xd78] sm:$0xff]
        %v2728 = vld [vmem:[%s3 + $0xd80] sm:$0xff]
        %v2729 = vld [vmem:[%s3 + $0xd88] sm:$0xff]
        %v2730 = vld [vmem:[%s3 + $0xd90] sm:$0xff]
        %v2731 = vld [vmem:[%s3 + $0xd98] sm:$0xff]
        %v2732 = vld [vmem:[%s3 + $0xda0] sm:$0xff]
        %v2733 = vld [vmem:[%s3 + $0xda8] sm:$0xff]
        %v2734 = vld [vmem:[%s3 + $0xdb0] sm:$0xff]
        %v2735 = vld [vmem:[%s3 + $0xdb8] sm:$0xff]
        %v2736 = vld [vmem:[%s3 + $0xdc0] sm:$0xff]
        %v2737 = vld [vmem:[%s3 + $0xdc8] sm:$0xff]
        %v2738 = vld [vmem:[%s3 + $0xdd0] sm:$0xff]
        %v2739 = vld [vmem:[%s3 + $0xdd8] sm:$0xff]
        %v2740 = vld [vmem:[%s3 + $0xde0] sm:$0xff]
        %v2741 = vld [vmem:[%s3 + $0xde8] sm:$0xff]
        %v2742 = vld [vmem:[%s3 + $0xdf0] sm:$0xff]
        %v2743 = vld [vmem:[%s3 + $0xdf8] sm:$0xff]
        %v2744 = vld [vmem:[%s3 + $0xe00] sm:$0xff]
        %v2745 = vld [vmem:[%s3 + $0xe08] sm:$0xff]
        %v2746 = vld [vmem:[%s3 + $0xe10] sm:$0xff]
        %v2747 = vld [vmem:[%s3 + $0xe18] sm:$0xff]
        %v2748 = vld [vmem:[%s3 + $0xe20] sm:$0xff]
        %v2749 = vld [vmem:[%s3 + $0xe28] sm:$0xff]
        %v2750 = vld [vmem:[%s3 + $0xe30] sm:$0xff]
        %v2751 = vld [vmem:[%s3 + $0xe38] sm:$0xff]
        %v2752 = vld [vmem:[%s3 + $0xe40] sm:$0xff]
        %v2753 = vld [vmem:[%s3 + $0xe48] sm:$0xff]
        %v2754 = vld [vmem:[%s3 + $0xe50] sm:$0xff]
        %v2755 = vld [vmem:[%s3 + $0xe58] sm:$0xff]
        %v2756 = vld [vmem:[%s3 + $0xe60] sm:$0xff]
        %v2757 = vld [vmem:[%s3 + $0xe68] sm:$0xff]
        %v2758 = vld [vmem:[%s3 + $0xe70] sm:$0xff]
        %v2759 = vld [vmem:[%s3 + $0xe78] sm:$0xff]
        %v2760 = vld [vmem:[%s3 + $0xe80] sm:$0xff]
        %v2761 = vld [vmem:[%s3 + $0xe88] sm:$0xff]
        %v2762 = vld [vmem:[%s3 + $0xe90] sm:$0xff]
        %v2763 = vld [vmem:[%s3 + $0xe98] sm:$0xff]
        %v2764 = vld [vmem:[%s3 + $0xea0] sm:$0xff]
        %v2765 = vld [vmem:[%s3 + $0xea8] sm:$0xff]
        %v2766 = vld [vmem:[%s3 + $0xeb0] sm:$0xff]
        %v2767 = vld [vmem:[%s3 + $0xeb8] sm:$0xff]
        %v2768 = vld [vmem:[%s3 + $0xec0] sm:$0xff]
        %v2769 = vld [vmem:[%s3 + $0xec8] sm:$0xff]
        %v2770 = vld [vmem:[%s3 + $0xed0] sm:$0xff]
        %v2771 = vld [vmem:[%s3 + $0xed8] sm:$0xff]
        %v2772 = vld [vmem:[%s3 + $0xee0] sm:$0xff]
        %v2773 = vld [vmem:[%s3 + $0xee8] sm:$0xff]
        %v2774 = vld [vmem:[%s3 + $0xef0] sm:$0xff]
        %v2775 = vld [vmem:[%s3 + $0xef8] sm:$0xff]
        %v2776 = vld [vmem:[%s3 + $0xf00] sm:$0xff]
        %v2777 = vld [vmem:[%s3 + $0xf08] sm:$0xff]
        %v2778 = vld [vmem:[%s3 + $0xf10] sm:$0xff]
        %v2779 = vld [vmem:[%s3 + $0xf18] sm:$0xff]
        %v2780 = vld [vmem:[%s3 + $0xf20] sm:$0xff]
        %v2781 = vld [vmem:[%s3 + $0xf28] sm:$0xff]
        %v2782 = vld [vmem:[%s3 + $0xf30] sm:$0xff]
        %v2783 = vld [vmem:[%s3 + $0xf38] sm:$0xff]
        %v2784 = vld [vmem:[%s3 + $0xf40] sm:$0xff]
        %v2785 = vld [vmem:[%s3 + $0xf48] sm:$0xff]
        %v2786 = vld [vmem:[%s3 + $0xf50] sm:$0xff]
        %v2787 = vld [vmem:[%s3 + $0xf58] sm:$0xff]
        %v2788 = vld [vmem:[%s3 + $0xf60] sm:$0xff]
        %v2789 = vld [vmem:[%s3 + $0xf68] sm:$0xff]
        %v2790 = vld [vmem:[%s3 + $0xf70] sm:$0xff]
        %v2791 = vld [vmem:[%s3 + $0xf78] sm:$0xff]
        %v2792 = vld [vmem:[%s3 + $0xf80] sm:$0xff]
        %v2793 = vld [vmem:[%s3 + $0xf88] sm:$0xff]
        %v2794 = vld [vmem:[%s3 + $0xf90] sm:$0xff]
        %v2795 = vld [vmem:[%s3 + $0xf98] sm:$0xff]
        %v2796 = vld [vmem:[%s3 + $0xfa0] sm:$0xff]
        %v2797 = vld [vmem:[%s3 + $0xfa8] sm:$0xff]
        %v2798 = vld [vmem:[%s3 + $0xfb0] sm:$0xff]
        %v2799 = vld [vmem:[%s3 + $0xfb8] sm:$0xff]
        %v2800 = vld [vmem:[%s3 + $0xfc0] sm:$0xff]
        %v2801 = vld [vmem:[%s3 + $0xfc8] sm:$0xff]
        %v2802 = vld [vmem:[%s3 + $0xfd0] sm:$0xff]
        %v2803 = vld [vmem:[%s3 + $0xfd8] sm:$0xff]
        %v2804 = vld [vmem:[%s3 + $0xfe0] sm:$0xff]
        %v2805 = vld [vmem:[%s3 + $0xfe8] sm:$0xff]
        %v2806 = vld [vmem:[%s3 + $0xff0] sm:$0xff]
        %v2807 = vld [vmem:[%s3 + $0xff8] sm:$0xff]
        %v2808 = vld [vmem:[%s3 + $0x1000] sm:$0xff]
        %v2809 = vld [vmem:[%s3 + $0x1008] sm:$0xff]
        %v2810 = vld [vmem:[%s3 + $0x1010] sm:$0xff]
        %v2811 = vld [vmem:[%s3 + $0x1018] sm:$0xff]
        %v2812 = vld [vmem:[%s3 + $0x1020] sm:$0xff]
        %v2813 = vld [vmem:[%s3 + $0x1028] sm:$0xff]
        %v2814 = vld [vmem:[%s3 + $0x1030] sm:$0xff]
        %v2815 = vld [vmem:[%s3 + $0x1038] sm:$0xff]
        %v2816 = vld [vmem:[%s3 + $0x1040] sm:$0xff]
        %v2817 = vld [vmem:[%s3 + $0x1048] sm:$0xff]
        %v2818 = vld [vmem:[%s3 + $0x1050] sm:$0xff]
        %v2819 = vld [vmem:[%s3 + $0x1058] sm:$0xff]
        %v2820 = vld [vmem:[%s3 + $0x1060] sm:$0xff]
        %v2821 = vld [vmem:[%s3 + $0x1068] sm:$0xff]
        %v2822 = vld [vmem:[%s3 + $0x1070] sm:$0xff]
        %v2823 = vld [vmem:[%s3 + $0x1078] sm:$0xff]
        %v2824 = vld [vmem:[%s3 + $0x1080] sm:$0xff]
        %v2825 = vld [vmem:[%s3 + $0x1088] sm:$0xff]
        %v2826 = vld [vmem:[%s3 + $0x1090] sm:$0xff]
        %v2827 = vld [vmem:[%s3 + $0x1098] sm:$0xff]
        %v2828 = vld [vmem:[%s3 + $0x10a0] sm:$0xff]
        %v2829 = vld [vmem:[%s3 + $0x10a8] sm:$0xff]
        %v2830 = vld [vmem:[%s3 + $0x10b0] sm:$0xff]
        %v2831 = vld [vmem:[%s3 + $0x10b8] sm:$0xff]
        %v2832 = vld [vmem:[%s3 + $0x10c0] sm:$0xff]
        %v2833 = vld [vmem:[%s3 + $0x10c8] sm:$0xff]
        %v2834 = vld [vmem:[%s3 + $0x10d0] sm:$0xff]
        %v2835 = vld [vmem:[%s3 + $0x10d8] sm:$0xff]
        %v2836 = vld [vmem:[%s3 + $0x10e0] sm:$0xff]
        %v2837 = vld [vmem:[%s3 + $0x10e8] sm:$0xff]
        %v2838 = vld [vmem:[%s3 + $0x10f0] sm:$0xff]
        %v2839 = vld [vmem:[%s3 + $0x10f8] sm:$0xff]
        %v2840 = vld [vmem:[%s3 + $0x1100] sm:$0xff]
        %v2841 = vld [vmem:[%s3 + $0x1108] sm:$0xff]
        %v2842 = vld [vmem:[%s3 + $0x1110] sm:$0xff]
        %v2843 = vld [vmem:[%s3 + $0x1118] sm:$0xff]
        %v2844 = vld [vmem:[%s3 + $0x1120] sm:$0xff]
        %v2845 = vld [vmem:[%s3 + $0x1128] sm:$0xff]
        %v2846 = vld [vmem:[%s3 + $0x1130] sm:$0xff]
        %v2847 = vld [vmem:[%s3 + $0x1138] sm:$0xff]
        %v2848 = vld [vmem:[%s3 + $0x1140] sm:$0xff]
        %v2849 = vld [vmem:[%s3 + $0x1148] sm:$0xff]
        %v2850 = vld [vmem:[%s3 + $0x1150] sm:$0xff]
        %v2851 = vld [vmem:[%s3 + $0x1158] sm:$0xff]
        %v2852 = vld [vmem:[%s3 + $0x1160] sm:$0xff]
        %v2853 = vld [vmem:[%s3 + $0x1168] sm:$0xff]
        %v2854 = vld [vmem:[%s3 + $0x1170] sm:$0xff]
        %v2855 = vld [vmem:[%s3 + $0x1178] sm:$0xff]
        %v2856 = vld [vmem:[%s3 + $0x1180] sm:$0xff]
        %v2857 = vld [vmem:[%s3 + $0x1188] sm:$0xff]
        %v2858 = vld [vmem:[%s3 + $0x1190] sm:$0xff]
        %v2859 = vld [vmem:[%s3 + $0x1198] sm:$0xff]
        %v2860 = vld [vmem:[%s3 + $0x11a0] sm:$0xff]
        %v2861 = vld [vmem:[%s3 + $0x11a8] sm:$0xff]
        %v2862 = vld [vmem:[%s3 + $0x11b0] sm:$0xff]
        %v2863 = vld [vmem:[%s3 + $0x11b8] sm:$0xff]
        %v2864 = vld [vmem:[%s3 + $0x11c0] sm:$0xff]
        %v2865 = vld [vmem:[%s3 + $0x11c8] sm:$0xff]
        %v2866 = vld [vmem:[%s3 + $0x11d0] sm:$0xff]
        %v2867 = vld [vmem:[%s3 + $0x11d8] sm:$0xff]
        %v2868 = vld [vmem:[%s3 + $0x11e0] sm:$0xff]
        %v2869 = vld [vmem:[%s3 + $0x11e8] sm:$0xff]
        %v2870 = vld [vmem:[%s3 + $0x11f0] sm:$0xff]
        %v2871 = vld [vmem:[%s3 + $0x11f8] sm:$0xff]
        %v2872 = vld [vmem:[%s3 + $0x1200] sm:$0xff]
        %v2873 = vld [vmem:[%s3 + $0x1208] sm:$0xff]
        %v2874 = vld [vmem:[%s3 + $0x1210] sm:$0xff]
        %v2875 = vld [vmem:[%s3 + $0x1218] sm:$0xff]
        %v2876 = vld [vmem:[%s3 + $0x1220] sm:$0xff]
        %v2877 = vld [vmem:[%s3 + $0x1228] sm:$0xff]
        %v2878 = vld [vmem:[%s3 + $0x1230] sm:$0xff]
        %v2879 = vld [vmem:[%s3 + $0x1238] sm:$0xff]
        %v2880 = vld [vmem:[%s3 + $0x1240] sm:$0xff]
        %v2881 = vld [vmem:[%s3 + $0x1248] sm:$0xff]
        %v2882 = vld [vmem:[%s3 + $0x1250] sm:$0xff]
        %v2883 = vld [vmem:[%s3 + $0x1258] sm:$0xff]
        %v2884 = vld [vmem:[%s3 + $0x1260] sm:$0xff]
        %v2885 = vld [vmem:[%s3 + $0x1268] sm:$0xff]
        %v2886 = vld [vmem:[%s3 + $0x1270] sm:$0xff]
        %v2887 = vld [vmem:[%s3 + $0x1278] sm:$0xff]
        %v2888 = vld [vmem:[%s3 + $0x1280] sm:$0xff]
        %v2889 = vld [vmem:[%s3 + $0x1288] sm:$0xff]
        %v2890 = vld [vmem:[%s3 + $0x1290] sm:$0xff]
        %v2891 = vld [vmem:[%s3 + $0x1298] sm:$0xff]
        %v2892 = vld [vmem:[%s3 + $0x12a0] sm:$0xff]
        %v2893 = vld [vmem:[%s3 + $0x12a8] sm:$0xff]
        %v2894 = vld [vmem:[%s3 + $0x12b0] sm:$0xff]
        %v2895 = vld [vmem:[%s3 + $0x12b8] sm:$0xff]
        %v2896 = vld [vmem:[%s3 + $0x12c0] sm:$0xff]
        %v2897 = vld [vmem:[%s3 + $0x12c8] sm:$0xff]
        %v2898 = vld [vmem:[%s3 + $0x12d0] sm:$0xff]
        %v2899 = vld [vmem:[%s3 + $0x12d8] sm:$0xff]
        %v2900 = vld [vmem:[%s3 + $0x12e0] sm:$0xff]
        %v2901 = vld [vmem:[%s3 + $0x12e8] sm:$0xff]
        %v2902 = vld [vmem:[%s3 + $0x12f0] sm:$0xff]
        %v2903 = vld [vmem:[%s3 + $0x12f8] sm:$0xff]
        %v2904 = vld [vmem:[%s3 + $0x1300] sm:$0xff]
        %v2905 = vld [vmem:[%s3 + $0x1308] sm:$0xff]
        %v2906 = vld [vmem:[%s3 + $0x1310] sm:$0xff]
        %v2907 = vld [vmem:[%s3 + $0x1318] sm:$0xff]
        %v2908 = vld [vmem:[%s3 + $0x1320] sm:$0xff]
        %v2909 = vld [vmem:[%s3 + $0x1328] sm:$0xff]
        %v2910 = vld [vmem:[%s3 + $0x1330] sm:$0xff]
        %v2911 = vld [vmem:[%s3 + $0x1338] sm:$0xff]
        %v2912 = vld [vmem:[%s3 + $0x1340] sm:$0xff]
        %v2913 = vld [vmem:[%s3 + $0x1348] sm:$0xff]
        %v2914 = vld [vmem:[%s3 + $0x1350] sm:$0xff]
        %v2915 = vld [vmem:[%s3 + $0x1358] sm:$0xff]
        %v2916 = vld [vmem:[%s3 + $0x1360] sm:$0xff]
        %v2917 = vld [vmem:[%s3 + $0x1368] sm:$0xff]
        %v2918 = vld [vmem:[%s3 + $0x1370] sm:$0xff]
        %v2919 = vld [vmem:[%s3 + $0x1378] sm:$0xff]
        %v2920 = vld [vmem:[%s3 + $0x1380] sm:$0xff]
        %v2921 = vld [vmem:[%s3 + $0x1388] sm:$0xff]
        %v2922 = vld [vmem:[%s3 + $0x1390] sm:$0xff]
        %v2923 = vld [vmem:[%s3 + $0x1398] sm:$0xff]
        %v2924 = vld [vmem:[%s3 + $0x13a0] sm:$0xff]
        %v2925 = vld [vmem:[%s3 + $0x13a8] sm:$0xff]
        %v2926 = vld [vmem:[%s3 + $0x13b0] sm:$0xff]
        %v2927 = vld [vmem:[%s3 + $0x13b8] sm:$0xff]
        %v2928 = vld [vmem:[%s3 + $0x13c0] sm:$0xff]
        %v2929 = vld [vmem:[%s3 + $0x13c8] sm:$0xff]
        %v2930 = vld [vmem:[%s3 + $0x13d0] sm:$0xff]
        %v2931 = vld [vmem:[%s3 + $0x13d8] sm:$0xff]
        %v2932 = vld [vmem:[%s3 + $0x13e0] sm:$0xff]
        %v2933 = vld [vmem:[%s3 + $0x13e8] sm:$0xff]
        %v2934 = vld [vmem:[%s3 + $0x13f0] sm:$0xff]
        %v2935 = vld [vmem:[%s3 + $0x13f8] sm:$0xff]
        %v2936 = vld [vmem:[%s3 + $0x1400] sm:$0xff]
        %v2937 = vld [vmem:[%s3 + $0x1408] sm:$0xff]
        %v2938 = vld [vmem:[%s3 + $0x1410] sm:$0xff]
        %v2939 = vld [vmem:[%s3 + $0x1418] sm:$0xff]
        %v2940 = vld [vmem:[%s3 + $0x1420] sm:$0xff]
        %v2941 = vld [vmem:[%s3 + $0x1428] sm:$0xff]
        %v2942 = vld [vmem:[%s3 + $0x1430] sm:$0xff]
        %v2943 = vld [vmem:[%s3 + $0x1438] sm:$0xff]
        %v2944 = vld [vmem:[%s3 + $0x1440] sm:$0xff]
        %v2945 = vld [vmem:[%s3 + $0x1448] sm:$0xff]
        %v2946 = vld [vmem:[%s3 + $0x1450] sm:$0xff]
        %v2947 = vld [vmem:[%s3 + $0x1458] sm:$0xff]
        %v2948 = vld [vmem:[%s3 + $0x1460] sm:$0xff]
        %v2949 = vld [vmem:[%s3 + $0x1468] sm:$0xff]
        %v2950 = vld [vmem:[%s3 + $0x1470] sm:$0xff]
        %v2951 = vld [vmem:[%s3 + $0x1478] sm:$0xff]
        %v2952 = vld [vmem:[%s3 + $0x1480] sm:$0xff]
        %v2953 = vld [vmem:[%s3 + $0x1488] sm:$0xff]
        %v2954 = vld [vmem:[%s3 + $0x1490] sm:$0xff]
        %v2955 = vld [vmem:[%s3 + $0x1498] sm:$0xff]
        %v2956 = vld [vmem:[%s3 + $0x14a0] sm:$0xff]
        %v2957 = vld [vmem:[%s3 + $0x14a8] sm:$0xff]
        %v2958 = vld [vmem:[%s3 + $0x14b0] sm:$0xff]
        %v2959 = vld [vmem:[%s3 + $0x14b8] sm:$0xff]
        %v2960 = vld [vmem:[%s3 + $0x14c0] sm:$0xff]
        %v2961 = vld [vmem:[%s3 + $0x14c8] sm:$0xff]
        %v2962 = vld [vmem:[%s3 + $0x14d0] sm:$0xff]
        %v2963 = vld [vmem:[%s3 + $0x14d8] sm:$0xff]
        %v2964 = vld [vmem:[%s3 + $0x14e0] sm:$0xff]
        %v2965 = vld [vmem:[%s3 + $0x14e8] sm:$0xff]
        %v2966 = vld [vmem:[%s3 + $0x14f0] sm:$0xff]
        %v2967 = vld [vmem:[%s3 + $0x14f8] sm:$0xff]
        %v2968 = vld [vmem:[%s3 + $0x1500] sm:$0xff]
        %v2969 = vld [vmem:[%s3 + $0x1508] sm:$0xff]
        %v2970 = vld [vmem:[%s3 + $0x1510] sm:$0xff]
        %v2971 = vld [vmem:[%s3 + $0x1518] sm:$0xff]
        %v2972 = vld [vmem:[%s3 + $0x1520] sm:$0xff]
        %v2973 = vld [vmem:[%s3 + $0x1528] sm:$0xff]
        %v2974 = vld [vmem:[%s3 + $0x1530] sm:$0xff]
        %v2975 = vld [vmem:[%s3 + $0x1538] sm:$0xff]
        %v2976 = vld [vmem:[%s3 + $0x1540] sm:$0xff]
        %v2977 = vld [vmem:[%s3 + $0x1548] sm:$0xff]
        %v2978 = vld [vmem:[%s3 + $0x1550] sm:$0xff]
        %v2979 = vld [vmem:[%s3 + $0x1558] sm:$0xff]
        %v2980 = vld [vmem:[%s3 + $0x1560] sm:$0xff]
        %v2981 = vld [vmem:[%s3 + $0x1568] sm:$0xff]
        %v2982 = vld [vmem:[%s3 + $0x1570] sm:$0xff]
        %v2983 = vld [vmem:[%s3 + $0x1578] sm:$0xff]
        %v2984 = vld [vmem:[%s3 + $0x1580] sm:$0xff]
        %v2985 = vld [vmem:[%s3 + $0x1588] sm:$0xff]
        %v2986 = vld [vmem:[%s3 + $0x1590] sm:$0xff]
        %v2987 = vld [vmem:[%s3 + $0x1598] sm:$0xff]
        %v2988 = vld [vmem:[%s3 + $0x15a0] sm:$0xff]
        %v2989 = vld [vmem:[%s3 + $0x15a8] sm:$0xff]
        %v2990 = vld [vmem:[%s3 + $0x15b0] sm:$0xff]
        %v2991 = vld [vmem:[%s3 + $0x15b8] sm:$0xff]
        %v2992 = vld [vmem:[%s3 + $0x15c0] sm:$0xff]
        %v2993 = vld [vmem:[%s3 + $0x15c8] sm:$0xff]
        %v2994 = vld [vmem:[%s3 + $0x15d0] sm:$0xff]
        %v2995 = vld [vmem:[%s3 + $0x15d8] sm:$0xff]
        %v2996 = vld [vmem:[%s3 + $0x15e0] sm:$0xff]
        %v2997 = vld [vmem:[%s3 + $0x15e8] sm:$0xff]
        %v2998 = vld [vmem:[%s3 + $0x15f0] sm:$0xff]
        %v2999 = vld [vmem:[%s3 + $0x15f8] sm:$0xff]
        %v3000 = vld [vmem:[%s3 + $0x1600] sm:$0xff]
        %v3001 = vld [vmem:[%s3 + $0x1608] sm:$0xff]
        %v3002 = vld [vmem:[%s3 + $0x1610] sm:$0xff]
        %v3003 = vld [vmem:[%s3 + $0x1618] sm:$0xff]
        %v3004 = vld [vmem:[%s3 + $0x1620] sm:$0xff]
        %v3005 = vld [vmem:[%s3 + $0x1628] sm:$0xff]
        %v3006 = vld [vmem:[%s3 + $0x1630] sm:$0xff]
        %v3007 = vld [vmem:[%s3 + $0x1638] sm:$0xff]
        %v3008 = vld [vmem:[%s3 + $0x1640] sm:$0xff]
        %v3009 = vld [vmem:[%s3 + $0x1648] sm:$0xff]
        %v3010 = vld [vmem:[%s3 + $0x1650] sm:$0xff]
        %v3011 = vld [vmem:[%s3 + $0x1658] sm:$0xff]
        %v3012 = vld [vmem:[%s3 + $0x1660] sm:$0xff]
        %v3013 = vld [vmem:[%s3 + $0x1668] sm:$0xff]
        %v3014 = vld [vmem:[%s3 + $0x1670] sm:$0xff]
        %v3015 = vld [vmem:[%s3 + $0x1678] sm:$0xff]
        %v3016 = vld [vmem:[%s3 + $0x1680] sm:$0xff]
        %v3017 = vld [vmem:[%s3 + $0x1688] sm:$0xff]
        %v3018 = vld [vmem:[%s3 + $0x1690] sm:$0xff]
        %v3019 = vld [vmem:[%s3 + $0x1698] sm:$0xff]
        %v3020 = vld [vmem:[%s3 + $0x16a0] sm:$0xff]
        %v3021 = vld [vmem:[%s3 + $0x16a8] sm:$0xff]
        %v3022 = vld [vmem:[%s3 + $0x16b0] sm:$0xff]
        %v3023 = vld [vmem:[%s3 + $0x16b8] sm:$0xff]
        %v3024 = vld [vmem:[%s3 + $0x16c0] sm:$0xff]
        %v3025 = vld [vmem:[%s3 + $0x16c8] sm:$0x1]
        %v3026 = vld [vmem:[%s3 + $0x16d0] sm:$0x1]
        %v3027 = vld [vmem:[%s3 + $0x16d8] sm:$0x1]
        %v3028 = vld [vmem:[%s3 + $0x16e0] sm:$0x1]
        %v3029 = vld [vmem:[%s3 + $0x16e8] sm:$0x1]
        %v3030 = vld [vmem:[%s3 + $0x16f0] sm:$0x1]
        %v3031 = vld [vmem:[%s3 + $0x16f8] sm:$0x1]
        %v3032 = vld [vmem:[%s3 + $0x1700] sm:$0x1]
        %v3033 = vld [vmem:[%s3 + $0x1708] sm:$0x1]
        %vm3034 = vcmask 72704
        %v3036 = vsel %vm3034, %v2283, 0
        %v3039 = vsel %vm3034, %v2289, 0
        %v3042 = vsel %vm3034, %v2295, 0
        %vm3044 = vcmask 1040384
        %v3046 = vsel %vm3044, %v3025, 0
        %v3049 = vsel %vm3044, %v3026, 0
        %v3052 = vsel %vm3044, %v3027, 0
        %v3055 = vsel %vm3044, %v3028, 0
        %v3058 = vsel %vm3044, %v3029, 0
        %v3061 = vsel %vm3044, %v3030, 0
        %v3064 = vsel %vm3044, %v3031, 0
        %v3067 = vsel %vm3044, %v3032, 0
        %v3070 = vsel %vm3044, %v3033, 0
        %3072 = vmatpush.msra.mxu0 %v2431
        %3073 = vmatpush.msra.mxu0 %v2422
        %3074 = vmatpush.msra.mxu0 %v2413
        %3075 = vmatpush.msra.mxu0 %v2404
        %3076 = vmatpush.msra.mxu0 %v2395
        %3077 = vmatpush.msra.mxu0 %v2386
        %3078 = vmatpush.msra.mxu0 %v2377
        %3079 = vmatpush.msra.mxu0 %v2368
        %3080 = vmatpush.msra.mxu0 %v2359
        %3081 = vmatpush.msra.mxu0 %v2350
        %3082 = vmatpush.msra.mxu0 %v2341
        %3083 = vmatpush.msra.mxu0 %v2332
        %3084 = vmatpush.msra.mxu0 %v2323
        %3085 = vmatpush.msra.mxu0 %v2314
        %3086 = vmatpush.msra.mxu0 %v2305
        %3087 = vmatpush.msra.mxu0 %v2296
        %3088 = vmatmul.f32.gmra.mxu0 %v2278
        %v3089 = vpop.f32.mrf.mxu0
        %v3090 = vadd.f32 0.0, %v3089
        %3091 = vmatmul.f32.gmra.mxu0 %v2284
        %v3092 = vpop.f32.mrf.mxu0
        %3093 = vmatmul.f32.gmra.mxu0 %v2290
        %v3094 = vpop.f32.mrf.mxu0
        %3095 = vdwg.mxu0
        %3096 = vmatpush.msra.mxu0 %v2575
        %3097 = vmatpush.msra.mxu0 %v2566
        %3098 = vmatpush.msra.mxu0 %v2557
        %3099 = vmatpush.msra.mxu0 %v2548
        %3100 = vmatpush.msra.mxu0 %v2539
        %3101 = vmatpush.msra.mxu0 %v2530
        %3102 = vmatpush.msra.mxu0 %v2521
        %3103 = vmatpush.msra.mxu0 %v2512
        %3104 = vmatpush.msra.mxu0 %v2503
        %3105 = vmatpush.msra.mxu0 %v2494
        %3106 = vmatpush.msra.mxu0 %v2485
        %3107 = vmatpush.msra.mxu0 %v2476
        %3108 = vmatpush.msra.mxu0 %v2467
        %3109 = vmatpush.msra.mxu0 %v2458
        %3110 = vmatpush.msra.mxu0 %v2449
        %3111 = vmatpush.msra.mxu0 %v2440
        %3112 = vmatmul.f32.gmra.mxu0 %v2279
        %v3113 = vpop.f32.mrf.mxu0
        %v3114 = vadd.f32 %v3090, %v3113
        %3115 = vmatmul.f32.gmra.mxu0 %v2285
        %v3116 = vpop.f32.mrf.mxu0
        %3117 = vmatmul.f32.gmra.mxu0 %v2291
        %v3118 = vpop.f32.mrf.mxu0
        %3119 = vdwg.mxu0
        %3120 = vmatpush.msra.mxu0 %v2719
        %3121 = vmatpush.msra.mxu0 %v2710
        %3122 = vmatpush.msra.mxu0 %v2701
        %3123 = vmatpush.msra.mxu0 %v2692
        %3124 = vmatpush.msra.mxu0 %v2683
        %3125 = vmatpush.msra.mxu0 %v2674
        %3126 = vmatpush.msra.mxu0 %v2665
        %3127 = vmatpush.msra.mxu0 %v2656
        %3128 = vmatpush.msra.mxu0 %v2647
        %3129 = vmatpush.msra.mxu0 %v2638
        %3130 = vmatpush.msra.mxu0 %v2629
        %3131 = vmatpush.msra.mxu0 %v2620
        %3132 = vmatpush.msra.mxu0 %v2611
        %3133 = vmatpush.msra.mxu0 %v2602
        %3134 = vmatpush.msra.mxu0 %v2593
        %3135 = vmatpush.msra.mxu0 %v2584
        %3136 = vmatmul.f32.gmra.mxu0 %v2280
        %v3137 = vpop.f32.mrf.mxu0
        %v3138 = vadd.f32 %v3114, %v3137
        %3139 = vmatmul.f32.gmra.mxu0 %v2286
        %v3140 = vpop.f32.mrf.mxu0
        %3141 = vmatmul.f32.gmra.mxu0 %v2292
        %v3142 = vpop.f32.mrf.mxu0
        %3143 = vdwg.mxu0
        %3144 = vmatpush.msra.mxu0 %v2863
        %3145 = vmatpush.msra.mxu0 %v2854
        %3146 = vmatpush.msra.mxu0 %v2845
        %3147 = vmatpush.msra.mxu0 %v2836
        %3148 = vmatpush.msra.mxu0 %v2827
        %3149 = vmatpush.msra.mxu0 %v2818
        %3150 = vmatpush.msra.mxu0 %v2809
        %3151 = vmatpush.msra.mxu0 %v2800
        %3152 = vmatpush.msra.mxu0 %v2791
        %3153 = vmatpush.msra.mxu0 %v2782
        %3154 = vmatpush.msra.mxu0 %v2773
        %3155 = vmatpush.msra.mxu0 %v2764
        %3156 = vmatpush.msra.mxu0 %v2755
        %3157 = vmatpush.msra.mxu0 %v2746
        %3158 = vmatpush.msra.mxu0 %v2737
        %3159 = vmatpush.msra.mxu0 %v2728
        %3160 = vmatmul.f32.gmra.mxu0 %v2281
        %v3161 = vpop.f32.mrf.mxu0
        %v3162 = vadd.f32 %v3138, %v3161
        %3163 = vmatmul.f32.gmra.mxu0 %v2287
        %v3164 = vpop.f32.mrf.mxu0
        %3165 = vmatmul.f32.gmra.mxu0 %v2293
        %v3166 = vpop.f32.mrf.mxu0
        %3167 = vdwg.mxu0
        %3168 = vmatpush.msra.mxu0 %v3007
        %3169 = vmatpush.msra.mxu0 %v2998
        %3170 = vmatpush.msra.mxu0 %v2989
        %3171 = vmatpush.msra.mxu0 %v2980
        %3172 = vmatpush.msra.mxu0 %v2971
        %3173 = vmatpush.msra.mxu0 %v2962
        %3174 = vmatpush.msra.mxu0 %v2953
        %3175 = vmatpush.msra.mxu0 %v2944
        %3176 = vmatpush.msra.mxu0 %v2935
        %3177 = vmatpush.msra.mxu0 %v2926
        %3178 = vmatpush.msra.mxu0 %v2917
        %3179 = vmatpush.msra.mxu0 %v2908
        %3180 = vmatpush.msra.mxu0 %v2899
        %3181 = vmatpush.msra.mxu0 %v2890
        %3182 = vmatpush.msra.mxu0 %v2881
        %3183 = vmatpush.msra.mxu0 %v2872
        %3184 = vmatmul.f32.gmra.mxu0 %v2282
        %v3185 = vpop.f32.mrf.mxu0
        %v3186 = vadd.f32 %v3162, %v3185
        %3187 = vmatmul.f32.gmra.mxu0 %v2288
        %v3188 = vpop.f32.mrf.mxu0
        %3189 = vmatmul.f32.gmra.mxu0 %v2294
        %v3190 = vpop.f32.mrf.mxu0
        %3191 = vdwg.mxu0
        %3192 = vmatpush.msra.mxu0 0.0
        %3193 = vmatpush.msra.mxu0 0.0
        %3194 = vmatpush.msra.mxu0 0.0
        %3195 = vmatpush.msra.mxu0 0.0
        %3196 = vmatpush.msra.mxu0 0.0
        %3197 = vmatpush.msra.mxu0 0.0
        %3198 = vmatpush.msra.mxu0 0.0
        %3199 = vmatpush.msra.mxu0 0.0
        %3200 = vmatpush.msra.mxu0 0.0
        %3201 = vmatpush.msra.mxu0 0.0
        %3202 = vmatpush.msra.mxu0 0.0
        %3203 = vmatpush.msra.mxu0 0.0
        %3204 = vmatpush.msra.mxu0 0.0
        %3205 = vmatpush.msra.mxu0 0.0
        %3206 = vmatpush.msra.mxu0 %v3046
        %3207 = vmatpush.msra.mxu0 %v3016
        %3208 = vmatmul.f32.gmra.mxu0 %v3036
        %v3209 = vpop.f32.mrf.mxu0
        %v3210 = vadd.f32 %v3186, %v3209
        %3211 = vmatmul.f32.gmra.mxu0 %v3039
        %v3212 = vpop.f32.mrf.mxu0
        %3213 = vmatmul.f32.gmra.mxu0 %v3042
        %v3214 = vpop.f32.mrf.mxu0
        %3215 = vdwg.mxu0
        %3216 = vmatpush.msra.mxu0 %v2432
        %3217 = vmatpush.msra.mxu0 %v2423
        %3218 = vmatpush.msra.mxu0 %v2414
        %3219 = vmatpush.msra.mxu0 %v2405
        %3220 = vmatpush.msra.mxu0 %v2396
        %3221 = vmatpush.msra.mxu0 %v2387
        %3222 = vmatpush.msra.mxu0 %v2378
        %3223 = vmatpush.msra.mxu0 %v2369
        %3224 = vmatpush.msra.mxu0 %v2360
        %3225 = vmatpush.msra.mxu0 %v2351
        %3226 = vmatpush.msra.mxu0 %v2342
        %3227 = vmatpush.msra.mxu0 %v2333
        %3228 = vmatpush.msra.mxu0 %v2324
        %3229 = vmatpush.msra.mxu0 %v2315
        %3230 = vmatpush.msra.mxu0 %v2306
        %3231 = vmatpush.msra.mxu0 %v2297
        %3232 = vmatmul.f32.gmra.mxu0 %v2278
        %v3233 = vpop.f32.mrf.mxu0
        %v3234 = vadd.f32 0.0, %v3233
        %3235 = vmatmul.f32.gmra.mxu0 %v2284
        %v3236 = vpop.f32.mrf.mxu0
        %3237 = vmatmul.f32.gmra.mxu0 %v2290
        %v3238 = vpop.f32.mrf.mxu0
        %3239 = vdwg.mxu0
        %3240 = vmatpush.msra.mxu0 %v2576
        %3241 = vmatpush.msra.mxu0 %v2567
        %3242 = vmatpush.msra.mxu0 %v2558
        %3243 = vmatpush.msra.mxu0 %v2549
        %3244 = vmatpush.msra.mxu0 %v2540
        %3245 = vmatpush.msra.mxu0 %v2531
        %3246 = vmatpush.msra.mxu0 %v2522
        %3247 = vmatpush.msra.mxu0 %v2513
        %3248 = vmatpush.msra.mxu0 %v2504
        %3249 = vmatpush.msra.mxu0 %v2495
        %3250 = vmatpush.msra.mxu0 %v2486
        %3251 = vmatpush.msra.mxu0 %v2477
        %3252 = vmatpush.msra.mxu0 %v2468
        %3253 = vmatpush.msra.mxu0 %v2459
        %3254 = vmatpush.msra.mxu0 %v2450
        %3255 = vmatpush.msra.mxu0 %v2441
        %3256 = vmatmul.f32.gmra.mxu0 %v2279
        %v3257 = vpop.f32.mrf.mxu0
        %v3258 = vadd.f32 %v3234, %v3257
        %3259 = vmatmul.f32.gmra.mxu0 %v2285
        %v3260 = vpop.f32.mrf.mxu0
        %3261 = vmatmul.f32.gmra.mxu0 %v2291
        %v3262 = vpop.f32.mrf.mxu0
        %3263 = vdwg.mxu0
        %3264 = vmatpush.msra.mxu0 %v2720
        %3265 = vmatpush.msra.mxu0 %v2711
        %3266 = vmatpush.msra.mxu0 %v2702
        %3267 = vmatpush.msra.mxu0 %v2693
        %3268 = vmatpush.msra.mxu0 %v2684
        %3269 = vmatpush.msra.mxu0 %v2675
        %3270 = vmatpush.msra.mxu0 %v2666
        %3271 = vmatpush.msra.mxu0 %v2657
        %3272 = vmatpush.msra.mxu0 %v2648
        %3273 = vmatpush.msra.mxu0 %v2639
        %3274 = vmatpush.msra.mxu0 %v2630
        %3275 = vmatpush.msra.mxu0 %v2621
        %3276 = vmatpush.msra.mxu0 %v2612
        %3277 = vmatpush.msra.mxu0 %v2603
        %3278 = vmatpush.msra.mxu0 %v2594
        %3279 = vmatpush.msra.mxu0 %v2585
        %3280 = vmatmul.f32.gmra.mxu0 %v2280
        %v3281 = vpop.f32.mrf.mxu0
        %v3282 = vadd.f32 %v3258, %v3281
        %3283 = vmatmul.f32.gmra.mxu0 %v2286
        %v3284 = vpop.f32.mrf.mxu0
        %3285 = vmatmul.f32.gmra.mxu0 %v2292
        %v3286 = vpop.f32.mrf.mxu0
        %3287 = vdwg.mxu0
        %3288 = vmatpush.msra.mxu0 %v2864
        %3289 = vmatpush.msra.mxu0 %v2855
        %3290 = vmatpush.msra.mxu0 %v2846
        %3291 = vmatpush.msra.mxu0 %v2837
        %3292 = vmatpush.msra.mxu0 %v2828
        %3293 = vmatpush.msra.mxu0 %v2819
        %3294 = vmatpush.msra.mxu0 %v2810
        %3295 = vmatpush.msra.mxu0 %v2801
        %3296 = vmatpush.msra.mxu0 %v2792
        %3297 = vmatpush.msra.mxu0 %v2783
        %3298 = vmatpush.msra.mxu0 %v2774
        %3299 = vmatpush.msra.mxu0 %v2765
        %3300 = vmatpush.msra.mxu0 %v2756
        %3301 = vmatpush.msra.mxu0 %v2747
        %3302 = vmatpush.msra.mxu0 %v2738
        %3303 = vmatpush.msra.mxu0 %v2729
        %3304 = vmatmul.f32.gmra.mxu0 %v2281
        %v3305 = vpop.f32.mrf.mxu0
        %v3306 = vadd.f32 %v3282, %v3305
        %3307 = vmatmul.f32.gmra.mxu0 %v2287
        %v3308 = vpop.f32.mrf.mxu0
        %3309 = vmatmul.f32.gmra.mxu0 %v2293
        %v3310 = vpop.f32.mrf.mxu0
        %3311 = vdwg.mxu0
        %3312 = vmatpush.msra.mxu0 %v3008
        %3313 = vmatpush.msra.mxu0 %v2999
        %3314 = vmatpush.msra.mxu0 %v2990
        %3315 = vmatpush.msra.mxu0 %v2981
        %3316 = vmatpush.msra.mxu0 %v2972
        %3317 = vmatpush.msra.mxu0 %v2963
        %3318 = vmatpush.msra.mxu0 %v2954
        %3319 = vmatpush.msra.mxu0 %v2945
        %3320 = vmatpush.msra.mxu0 %v2936
        %3321 = vmatpush.msra.mxu0 %v2927
        %3322 = vmatpush.msra.mxu0 %v2918
        %3323 = vmatpush.msra.mxu0 %v2909
        %3324 = vmatpush.msra.mxu0 %v2900
        %3325 = vmatpush.msra.mxu0 %v2891
        %3326 = vmatpush.msra.mxu0 %v2882
        %3327 = vmatpush.msra.mxu0 %v2873
        %3328 = vmatmul.f32.gmra.mxu0 %v2282
        %v3329 = vpop.f32.mrf.mxu0
        %v3330 = vadd.f32 %v3306, %v3329
        %3331 = vmatmul.f32.gmra.mxu0 %v2288
        %v3332 = vpop.f32.mrf.mxu0
        %3333 = vmatmul.f32.gmra.mxu0 %v2294
        %v3334 = vpop.f32.mrf.mxu0
        %3335 = vdwg.mxu0
        %3336 = vmatpush.msra.mxu0 0.0
        %3337 = vmatpush.msra.mxu0 0.0
        %3338 = vmatpush.msra.mxu0 0.0
        %3339 = vmatpush.msra.mxu0 0.0
        %3340 = vmatpush.msra.mxu0 0.0
        %3341 = vmatpush.msra.mxu0 0.0
        %3342 = vmatpush.msra.mxu0 0.0
        %3343 = vmatpush.msra.mxu0 0.0
        %3344 = vmatpush.msra.mxu0 0.0
        %3345 = vmatpush.msra.mxu0 0.0
        %3346 = vmatpush.msra.mxu0 0.0
        %3347 = vmatpush.msra.mxu0 0.0
        %3348 = vmatpush.msra.mxu0 0.0
        %3349 = vmatpush.msra.mxu0 0.0
        %3350 = vmatpush.msra.mxu0 %v3049
        %3351 = vmatpush.msra.mxu0 %v3017
        %3352 = vmatmul.f32.gmra.mxu0 %v3036
        %v3353 = vpop.f32.mrf.mxu0
        %v3354 = vadd.f32 %v3330, %v3353
        %3355 = vmatmul.f32.gmra.mxu0 %v3039
        %v3356 = vpop.f32.mrf.mxu0
        %3357 = vmatmul.f32.gmra.mxu0 %v3042
        %v3358 = vpop.f32.mrf.mxu0
        %3359 = vdwg.mxu0
        %3360 = vmatpush.msra.mxu0 %v2433
        %3361 = vmatpush.msra.mxu0 %v2424
        %3362 = vmatpush.msra.mxu0 %v2415
        %3363 = vmatpush.msra.mxu0 %v2406
        %3364 = vmatpush.msra.mxu0 %v2397
        %3365 = vmatpush.msra.mxu0 %v2388
        %3366 = vmatpush.msra.mxu0 %v2379
        %3367 = vmatpush.msra.mxu0 %v2370
        %3368 = vmatpush.msra.mxu0 %v2361
        %3369 = vmatpush.msra.mxu0 %v2352
        %3370 = vmatpush.msra.mxu0 %v2343
        %3371 = vmatpush.msra.mxu0 %v2334
        %3372 = vmatpush.msra.mxu0 %v2325
        %3373 = vmatpush.msra.mxu0 %v2316
        %3374 = vmatpush.msra.mxu0 %v2307
        %3375 = vmatpush.msra.mxu0 %v2298
        %3376 = vmatmul.f32.gmra.mxu0 %v2278
        %v3377 = vpop.f32.mrf.mxu0
        %v3378 = vadd.f32 0.0, %v3377
        %3379 = vmatmul.f32.gmra.mxu0 %v2284
        %v3380 = vpop.f32.mrf.mxu0
        %3381 = vmatmul.f32.gmra.mxu0 %v2290
        %v3382 = vpop.f32.mrf.mxu0
        %3383 = vdwg.mxu0
        %3384 = vmatpush.msra.mxu0 %v2577
        %3385 = vmatpush.msra.mxu0 %v2568
        %3386 = vmatpush.msra.mxu0 %v2559
        %3387 = vmatpush.msra.mxu0 %v2550
        %3388 = vmatpush.msra.mxu0 %v2541
        %3389 = vmatpush.msra.mxu0 %v2532
        %3390 = vmatpush.msra.mxu0 %v2523
        %3391 = vmatpush.msra.mxu0 %v2514
        %3392 = vmatpush.msra.mxu0 %v2505
        %3393 = vmatpush.msra.mxu0 %v2496
        %3394 = vmatpush.msra.mxu0 %v2487
        %3395 = vmatpush.msra.mxu0 %v2478
        %3396 = vmatpush.msra.mxu0 %v2469
        %3397 = vmatpush.msra.mxu0 %v2460
        %3398 = vmatpush.msra.mxu0 %v2451
        %3399 = vmatpush.msra.mxu0 %v2442
        %3400 = vmatmul.f32.gmra.mxu0 %v2279
        %v3401 = vpop.f32.mrf.mxu0
        %v3402 = vadd.f32 %v3378, %v3401
        %3403 = vmatmul.f32.gmra.mxu0 %v2285
        %v3404 = vpop.f32.mrf.mxu0
        %3405 = vmatmul.f32.gmra.mxu0 %v2291
        %v3406 = vpop.f32.mrf.mxu0
        %3407 = vdwg.mxu0
        %3408 = vmatpush.msra.mxu0 %v2721
        %3409 = vmatpush.msra.mxu0 %v2712
        %3410 = vmatpush.msra.mxu0 %v2703
        %3411 = vmatpush.msra.mxu0 %v2694
        %3412 = vmatpush.msra.mxu0 %v2685
        %3413 = vmatpush.msra.mxu0 %v2676
        %3414 = vmatpush.msra.mxu0 %v2667
        %3415 = vmatpush.msra.mxu0 %v2658
        %3416 = vmatpush.msra.mxu0 %v2649
        %3417 = vmatpush.msra.mxu0 %v2640
        %3418 = vmatpush.msra.mxu0 %v2631
        %3419 = vmatpush.msra.mxu0 %v2622
        %3420 = vmatpush.msra.mxu0 %v2613
        %3421 = vmatpush.msra.mxu0 %v2604
        %3422 = vmatpush.msra.mxu0 %v2595
        %3423 = vmatpush.msra.mxu0 %v2586
        %3424 = vmatmul.f32.gmra.mxu0 %v2280
        %v3425 = vpop.f32.mrf.mxu0
        %v3426 = vadd.f32 %v3402, %v3425
        %3427 = vmatmul.f32.gmra.mxu0 %v2286
        %v3428 = vpop.f32.mrf.mxu0
        %3429 = vmatmul.f32.gmra.mxu0 %v2292
        %v3430 = vpop.f32.mrf.mxu0
        %3431 = vdwg.mxu0
        %3432 = vmatpush.msra.mxu0 %v2865
        %3433 = vmatpush.msra.mxu0 %v2856
        %3434 = vmatpush.msra.mxu0 %v2847
        %3435 = vmatpush.msra.mxu0 %v2838
        %3436 = vmatpush.msra.mxu0 %v2829
        %3437 = vmatpush.msra.mxu0 %v2820
        %3438 = vmatpush.msra.mxu0 %v2811
        %3439 = vmatpush.msra.mxu0 %v2802
        %3440 = vmatpush.msra.mxu0 %v2793
        %3441 = vmatpush.msra.mxu0 %v2784
        %3442 = vmatpush.msra.mxu0 %v2775
        %3443 = vmatpush.msra.mxu0 %v2766
        %3444 = vmatpush.msra.mxu0 %v2757
        %3445 = vmatpush.msra.mxu0 %v2748
        %3446 = vmatpush.msra.mxu0 %v2739
        %3447 = vmatpush.msra.mxu0 %v2730
        %3448 = vmatmul.f32.gmra.mxu0 %v2281
        %v3449 = vpop.f32.mrf.mxu0
        %v3450 = vadd.f32 %v3426, %v3449
        %3451 = vmatmul.f32.gmra.mxu0 %v2287
        %v3452 = vpop.f32.mrf.mxu0
        %3453 = vmatmul.f32.gmra.mxu0 %v2293
        %v3454 = vpop.f32.mrf.mxu0
        %3455 = vdwg.mxu0
        %3456 = vmatpush.msra.mxu0 %v3009
        %3457 = vmatpush.msra.mxu0 %v3000
        %3458 = vmatpush.msra.mxu0 %v2991
        %3459 = vmatpush.msra.mxu0 %v2982
        %3460 = vmatpush.msra.mxu0 %v2973
        %3461 = vmatpush.msra.mxu0 %v2964
        %3462 = vmatpush.msra.mxu0 %v2955
        %3463 = vmatpush.msra.mxu0 %v2946
        %3464 = vmatpush.msra.mxu0 %v2937
        %3465 = vmatpush.msra.mxu0 %v2928
        %3466 = vmatpush.msra.mxu0 %v2919
        %3467 = vmatpush.msra.mxu0 %v2910
        %3468 = vmatpush.msra.mxu0 %v2901
        %3469 = vmatpush.msra.mxu0 %v2892
        %3470 = vmatpush.msra.mxu0 %v2883
        %3471 = vmatpush.msra.mxu0 %v2874
        %3472 = vmatmul.f32.gmra.mxu0 %v2282
        %v3473 = vpop.f32.mrf.mxu0
        %v3474 = vadd.f32 %v3450, %v3473
        %3475 = vmatmul.f32.gmra.mxu0 %v2288
        %v3476 = vpop.f32.mrf.mxu0
        %3477 = vmatmul.f32.gmra.mxu0 %v2294
        %v3478 = vpop.f32.mrf.mxu0
        %3479 = vdwg.mxu0
        %3480 = vmatpush.msra.mxu0 0.0
        %3481 = vmatpush.msra.mxu0 0.0
        %3482 = vmatpush.msra.mxu0 0.0
        %3483 = vmatpush.msra.mxu0 0.0
        %3484 = vmatpush.msra.mxu0 0.0
        %3485 = vmatpush.msra.mxu0 0.0
        %3486 = vmatpush.msra.mxu0 0.0
        %3487 = vmatpush.msra.mxu0 0.0
        %3488 = vmatpush.msra.mxu0 0.0
        %3489 = vmatpush.msra.mxu0 0.0
        %3490 = vmatpush.msra.mxu0 0.0
        %3491 = vmatpush.msra.mxu0 0.0
        %3492 = vmatpush.msra.mxu0 0.0
        %3493 = vmatpush.msra.mxu0 0.0
        %3494 = vmatpush.msra.mxu0 %v3052
        %3495 = vmatpush.msra.mxu0 %v3018
        %3496 = vmatmul.f32.gmra.mxu0 %v3036
        %v3497 = vpop.f32.mrf.mxu0
        %v3498 = vadd.f32 %v3474, %v3497
        %3499 = vmatmul.f32.gmra.mxu0 %v3039
        %v3500 = vpop.f32.mrf.mxu0
        %3501 = vmatmul.f32.gmra.mxu0 %v3042
        %v3502 = vpop.f32.mrf.mxu0
        %3503 = vdwg.mxu0
        %3504 = vmatpush.msra.mxu0 %v2434
        %3505 = vmatpush.msra.mxu0 %v2425
        %3506 = vmatpush.msra.mxu0 %v2416
        %3507 = vmatpush.msra.mxu0 %v2407
        %3508 = vmatpush.msra.mxu0 %v2398
        %3509 = vmatpush.msra.mxu0 %v2389
        %3510 = vmatpush.msra.mxu0 %v2380
        %3511 = vmatpush.msra.mxu0 %v2371
        %3512 = vmatpush.msra.mxu0 %v2362
        %3513 = vmatpush.msra.mxu0 %v2353
        %3514 = vmatpush.msra.mxu0 %v2344
        %3515 = vmatpush.msra.mxu0 %v2335
        %3516 = vmatpush.msra.mxu0 %v2326
        %3517 = vmatpush.msra.mxu0 %v2317
        %3518 = vmatpush.msra.mxu0 %v2308
        %3519 = vmatpush.msra.mxu0 %v2299
        %3520 = vmatmul.f32.gmra.mxu0 %v2278
        %v3521 = vpop.f32.mrf.mxu0
        %v3522 = vadd.f32 0.0, %v3521
        %3523 = vmatmul.f32.gmra.mxu0 %v2284
        %v3524 = vpop.f32.mrf.mxu0
        %3525 = vmatmul.f32.gmra.mxu0 %v2290
        %v3526 = vpop.f32.mrf.mxu0
        %3527 = vdwg.mxu0
        %3528 = vmatpush.msra.mxu0 %v2578
        %3529 = vmatpush.msra.mxu0 %v2569
        %3530 = vmatpush.msra.mxu0 %v2560
        %3531 = vmatpush.msra.mxu0 %v2551
        %3532 = vmatpush.msra.mxu0 %v2542
        %3533 = vmatpush.msra.mxu0 %v2533
        %3534 = vmatpush.msra.mxu0 %v2524
        %3535 = vmatpush.msra.mxu0 %v2515
        %3536 = vmatpush.msra.mxu0 %v2506
        %3537 = vmatpush.msra.mxu0 %v2497
        %3538 = vmatpush.msra.mxu0 %v2488
        %3539 = vmatpush.msra.mxu0 %v2479
        %3540 = vmatpush.msra.mxu0 %v2470
        %3541 = vmatpush.msra.mxu0 %v2461
        %3542 = vmatpush.msra.mxu0 %v2452
        %3543 = vmatpush.msra.mxu0 %v2443
        %3544 = vmatmul.f32.gmra.mxu0 %v2279
        %v3545 = vpop.f32.mrf.mxu0
        %v3546 = vadd.f32 %v3522, %v3545
        %3547 = vmatmul.f32.gmra.mxu0 %v2285
        %v3548 = vpop.f32.mrf.mxu0
        %3549 = vmatmul.f32.gmra.mxu0 %v2291
        %v3550 = vpop.f32.mrf.mxu0
        %3551 = vdwg.mxu0
        %3552 = vmatpush.msra.mxu0 %v2722
        %3553 = vmatpush.msra.mxu0 %v2713
        %3554 = vmatpush.msra.mxu0 %v2704
        %3555 = vmatpush.msra.mxu0 %v2695
        %3556 = vmatpush.msra.mxu0 %v2686
        %3557 = vmatpush.msra.mxu0 %v2677
        %3558 = vmatpush.msra.mxu0 %v2668
        %3559 = vmatpush.msra.mxu0 %v2659
        %3560 = vmatpush.msra.mxu0 %v2650
        %3561 = vmatpush.msra.mxu0 %v2641
        %3562 = vmatpush.msra.mxu0 %v2632
        %3563 = vmatpush.msra.mxu0 %v2623
        %3564 = vmatpush.msra.mxu0 %v2614
        %3565 = vmatpush.msra.mxu0 %v2605
        %3566 = vmatpush.msra.mxu0 %v2596
        %3567 = vmatpush.msra.mxu0 %v2587
        %3568 = vmatmul.f32.gmra.mxu0 %v2280
        %v3569 = vpop.f32.mrf.mxu0
        %v3570 = vadd.f32 %v3546, %v3569
        %3571 = vmatmul.f32.gmra.mxu0 %v2286
        %v3572 = vpop.f32.mrf.mxu0
        %3573 = vmatmul.f32.gmra.mxu0 %v2292
        %v3574 = vpop.f32.mrf.mxu0
        %3575 = vdwg.mxu0
        %3576 = vmatpush.msra.mxu0 %v2866
        %3577 = vmatpush.msra.mxu0 %v2857
        %3578 = vmatpush.msra.mxu0 %v2848
        %3579 = vmatpush.msra.mxu0 %v2839
        %3580 = vmatpush.msra.mxu0 %v2830
        %3581 = vmatpush.msra.mxu0 %v2821
        %3582 = vmatpush.msra.mxu0 %v2812
        %3583 = vmatpush.msra.mxu0 %v2803
        %3584 = vmatpush.msra.mxu0 %v2794
        %3585 = vmatpush.msra.mxu0 %v2785
        %3586 = vmatpush.msra.mxu0 %v2776
        %3587 = vmatpush.msra.mxu0 %v2767
        %3588 = vmatpush.msra.mxu0 %v2758
        %3589 = vmatpush.msra.mxu0 %v2749
        %3590 = vmatpush.msra.mxu0 %v2740
        %3591 = vmatpush.msra.mxu0 %v2731
        %3592 = vmatmul.f32.gmra.mxu0 %v2281
        %v3593 = vpop.f32.mrf.mxu0
        %v3594 = vadd.f32 %v3570, %v3593
        %3595 = vmatmul.f32.gmra.mxu0 %v2287
        %v3596 = vpop.f32.mrf.mxu0
        %3597 = vmatmul.f32.gmra.mxu0 %v2293
        %v3598 = vpop.f32.mrf.mxu0
        %3599 = vdwg.mxu0
        %3600 = vmatpush.msra.mxu0 %v3010
        %3601 = vmatpush.msra.mxu0 %v3001
        %3602 = vmatpush.msra.mxu0 %v2992
        %3603 = vmatpush.msra.mxu0 %v2983
        %3604 = vmatpush.msra.mxu0 %v2974
        %3605 = vmatpush.msra.mxu0 %v2965
        %3606 = vmatpush.msra.mxu0 %v2956
        %3607 = vmatpush.msra.mxu0 %v2947
        %3608 = vmatpush.msra.mxu0 %v2938
        %3609 = vmatpush.msra.mxu0 %v2929
        %3610 = vmatpush.msra.mxu0 %v2920
        %3611 = vmatpush.msra.mxu0 %v2911
        %3612 = vmatpush.msra.mxu0 %v2902
        %3613 = vmatpush.msra.mxu0 %v2893
        %3614 = vmatpush.msra.mxu0 %v2884
        %3615 = vmatpush.msra.mxu0 %v2875
        %3616 = vmatmul.f32.gmra.mxu0 %v2282
        %v3617 = vpop.f32.mrf.mxu0
        %v3618 = vadd.f32 %v3594, %v3617
        %3619 = vmatmul.f32.gmra.mxu0 %v2288
        %v3620 = vpop.f32.mrf.mxu0
        %3621 = vmatmul.f32.gmra.mxu0 %v2294
        %v3622 = vpop.f32.mrf.mxu0
        %3623 = vdwg.mxu0
        %3624 = vmatpush.msra.mxu0 0.0
        %3625 = vmatpush.msra.mxu0 0.0
        %3626 = vmatpush.msra.mxu0 0.0
        %3627 = vmatpush.msra.mxu0 0.0
        %3628 = vmatpush.msra.mxu0 0.0
        %3629 = vmatpush.msra.mxu0 0.0
        %3630 = vmatpush.msra.mxu0 0.0
        %3631 = vmatpush.msra.mxu0 0.0
        %3632 = vmatpush.msra.mxu0 0.0
        %3633 = vmatpush.msra.mxu0 0.0
        %3634 = vmatpush.msra.mxu0 0.0
        %3635 = vmatpush.msra.mxu0 0.0
        %3636 = vmatpush.msra.mxu0 0.0
        %3637 = vmatpush.msra.mxu0 0.0
        %3638 = vmatpush.msra.mxu0 %v3055
        %3639 = vmatpush.msra.mxu0 %v3019
        %3640 = vmatmul.f32.gmra.mxu0 %v3036
        %v3641 = vpop.f32.mrf.mxu0
        %v3642 = vadd.f32 %v3618, %v3641
        %3643 = vmatmul.f32.gmra.mxu0 %v3039
        %v3644 = vpop.f32.mrf.mxu0
        %3645 = vmatmul.f32.gmra.mxu0 %v3042
        %v3646 = vpop.f32.mrf.mxu0
        %3647 = vdwg.mxu0
        %3648 = vmatpush.msra.mxu0 %v2435
        %3649 = vmatpush.msra.mxu0 %v2426
        %3650 = vmatpush.msra.mxu0 %v2417
        %3651 = vmatpush.msra.mxu0 %v2408
        %3652 = vmatpush.msra.mxu0 %v2399
        %3653 = vmatpush.msra.mxu0 %v2390
        %3654 = vmatpush.msra.mxu0 %v2381
        %3655 = vmatpush.msra.mxu0 %v2372
        %3656 = vmatpush.msra.mxu0 %v2363
        %3657 = vmatpush.msra.mxu0 %v2354
        %3658 = vmatpush.msra.mxu0 %v2345
        %3659 = vmatpush.msra.mxu0 %v2336
        %3660 = vmatpush.msra.mxu0 %v2327
        %3661 = vmatpush.msra.mxu0 %v2318
        %3662 = vmatpush.msra.mxu0 %v2309
        %3663 = vmatpush.msra.mxu0 %v2300
        %3664 = vmatmul.f32.gmra.mxu0 %v2278
        %v3665 = vpop.f32.mrf.mxu0
        %3666 = vmatmul.f32.gmra.mxu0 %v2284
        %v3667 = vpop.f32.mrf.mxu0
        %v3668 = vadd.f32 0.0, %v3667
        %3669 = vmatmul.f32.gmra.mxu0 %v2290
        %v3670 = vpop.f32.mrf.mxu0
        %3671 = vdwg.mxu0
        %3672 = vmatpush.msra.mxu0 %v2579
        %3673 = vmatpush.msra.mxu0 %v2570
        %3674 = vmatpush.msra.mxu0 %v2561
        %3675 = vmatpush.msra.mxu0 %v2552
        %3676 = vmatpush.msra.mxu0 %v2543
        %3677 = vmatpush.msra.mxu0 %v2534
        %3678 = vmatpush.msra.mxu0 %v2525
        %3679 = vmatpush.msra.mxu0 %v2516
        %3680 = vmatpush.msra.mxu0 %v2507
        %3681 = vmatpush.msra.mxu0 %v2498
        %3682 = vmatpush.msra.mxu0 %v2489
        %3683 = vmatpush.msra.mxu0 %v2480
        %3684 = vmatpush.msra.mxu0 %v2471
        %3685 = vmatpush.msra.mxu0 %v2462
        %3686 = vmatpush.msra.mxu0 %v2453
        %3687 = vmatpush.msra.mxu0 %v2444
        %3688 = vmatmul.f32.gmra.mxu0 %v2279
        %v3689 = vpop.f32.mrf.mxu0
        %3690 = vmatmul.f32.gmra.mxu0 %v2285
        %v3691 = vpop.f32.mrf.mxu0
        %v3692 = vadd.f32 %v3668, %v3691
        %3693 = vmatmul.f32.gmra.mxu0 %v2291
        %v3694 = vpop.f32.mrf.mxu0
        %3695 = vdwg.mxu0
        %3696 = vmatpush.msra.mxu0 %v2723
        %3697 = vmatpush.msra.mxu0 %v2714
        %3698 = vmatpush.msra.mxu0 %v2705
        %3699 = vmatpush.msra.mxu0 %v2696
        %3700 = vmatpush.msra.mxu0 %v2687
        %3701 = vmatpush.msra.mxu0 %v2678
        %3702 = vmatpush.msra.mxu0 %v2669
        %3703 = vmatpush.msra.mxu0 %v2660
        %3704 = vmatpush.msra.mxu0 %v2651
        %3705 = vmatpush.msra.mxu0 %v2642
        %3706 = vmatpush.msra.mxu0 %v2633
        %3707 = vmatpush.msra.mxu0 %v2624
        %3708 = vmatpush.msra.mxu0 %v2615
        %3709 = vmatpush.msra.mxu0 %v2606
        %3710 = vmatpush.msra.mxu0 %v2597
        %3711 = vmatpush.msra.mxu0 %v2588
        %3712 = vmatmul.f32.gmra.mxu0 %v2280
        %v3713 = vpop.f32.mrf.mxu0
        %3714 = vmatmul.f32.gmra.mxu0 %v2286
        %v3715 = vpop.f32.mrf.mxu0
        %v3716 = vadd.f32 %v3692, %v3715
        %3717 = vmatmul.f32.gmra.mxu0 %v2292
        %v3718 = vpop.f32.mrf.mxu0
        %3719 = vdwg.mxu0
        %3720 = vmatpush.msra.mxu0 %v2867
        %3721 = vmatpush.msra.mxu0 %v2858
        %3722 = vmatpush.msra.mxu0 %v2849
        %3723 = vmatpush.msra.mxu0 %v2840
        %3724 = vmatpush.msra.mxu0 %v2831
        %3725 = vmatpush.msra.mxu0 %v2822
        %3726 = vmatpush.msra.mxu0 %v2813
        %3727 = vmatpush.msra.mxu0 %v2804
        %3728 = vmatpush.msra.mxu0 %v2795
        %3729 = vmatpush.msra.mxu0 %v2786
        %3730 = vmatpush.msra.mxu0 %v2777
        %3731 = vmatpush.msra.mxu0 %v2768
        %3732 = vmatpush.msra.mxu0 %v2759
        %3733 = vmatpush.msra.mxu0 %v2750
        %3734 = vmatpush.msra.mxu0 %v2741
        %3735 = vmatpush.msra.mxu0 %v2732
        %3736 = vmatmul.f32.gmra.mxu0 %v2281
        %v3737 = vpop.f32.mrf.mxu0
        %3738 = vmatmul.f32.gmra.mxu0 %v2287
        %v3739 = vpop.f32.mrf.mxu0
        %v3740 = vadd.f32 %v3716, %v3739
        %3741 = vmatmul.f32.gmra.mxu0 %v2293
        %v3742 = vpop.f32.mrf.mxu0
        %3743 = vdwg.mxu0
        %3744 = vmatpush.msra.mxu0 %v3011
        %3745 = vmatpush.msra.mxu0 %v3002
        %3746 = vmatpush.msra.mxu0 %v2993
        %3747 = vmatpush.msra.mxu0 %v2984
        %3748 = vmatpush.msra.mxu0 %v2975
        %3749 = vmatpush.msra.mxu0 %v2966
        %3750 = vmatpush.msra.mxu0 %v2957
        %3751 = vmatpush.msra.mxu0 %v2948
        %3752 = vmatpush.msra.mxu0 %v2939
        %3753 = vmatpush.msra.mxu0 %v2930
        %3754 = vmatpush.msra.mxu0 %v2921
        %3755 = vmatpush.msra.mxu0 %v2912
        %3756 = vmatpush.msra.mxu0 %v2903
        %3757 = vmatpush.msra.mxu0 %v2894
        %3758 = vmatpush.msra.mxu0 %v2885
        %3759 = vmatpush.msra.mxu0 %v2876
        %3760 = vmatmul.f32.gmra.mxu0 %v2282
        %v3761 = vpop.f32.mrf.mxu0
        %3762 = vmatmul.f32.gmra.mxu0 %v2288
        %v3763 = vpop.f32.mrf.mxu0
        %v3764 = vadd.f32 %v3740, %v3763
        %3765 = vmatmul.f32.gmra.mxu0 %v2294
        %v3766 = vpop.f32.mrf.mxu0
        %3767 = vdwg.mxu0
        %3768 = vmatpush.msra.mxu0 0.0
        %3769 = vmatpush.msra.mxu0 0.0
        %3770 = vmatpush.msra.mxu0 0.0
        %3771 = vmatpush.msra.mxu0 0.0
        %3772 = vmatpush.msra.mxu0 0.0
        %3773 = vmatpush.msra.mxu0 0.0
        %3774 = vmatpush.msra.mxu0 0.0
        %3775 = vmatpush.msra.mxu0 0.0
        %3776 = vmatpush.msra.mxu0 0.0
        %3777 = vmatpush.msra.mxu0 0.0
        %3778 = vmatpush.msra.mxu0 0.0
        %3779 = vmatpush.msra.mxu0 0.0
        %3780 = vmatpush.msra.mxu0 0.0
        %3781 = vmatpush.msra.mxu0 0.0
        %3782 = vmatpush.msra.mxu0 %v3058
        %3783 = vmatpush.msra.mxu0 %v3020
        %3784 = vmatmul.f32.gmra.mxu0 %v3036
        %v3785 = vpop.f32.mrf.mxu0
        %3786 = vmatmul.f32.gmra.mxu0 %v3039
        %v3787 = vpop.f32.mrf.mxu0
        %v3788 = vadd.f32 %v3764, %v3787
        %3789 = vmatmul.f32.gmra.mxu0 %v3042
        %v3790 = vpop.f32.mrf.mxu0
        %3791 = vdwg.mxu0
        %3792 = vmatpush.msra.mxu0 %v2436
        %3793 = vmatpush.msra.mxu0 %v2427
        %3794 = vmatpush.msra.mxu0 %v2418
        %3795 = vmatpush.msra.mxu0 %v2409
        %3796 = vmatpush.msra.mxu0 %v2400
        %3797 = vmatpush.msra.mxu0 %v2391
        %3798 = vmatpush.msra.mxu0 %v2382
        %3799 = vmatpush.msra.mxu0 %v2373
        %3800 = vmatpush.msra.mxu0 %v2364
        %3801 = vmatpush.msra.mxu0 %v2355
        %3802 = vmatpush.msra.mxu0 %v2346
        %3803 = vmatpush.msra.mxu0 %v2337
        %3804 = vmatpush.msra.mxu0 %v2328
        %3805 = vmatpush.msra.mxu0 %v2319
        %3806 = vmatpush.msra.mxu0 %v2310
        %3807 = vmatpush.msra.mxu0 %v2301
        %3808 = vmatmul.f32.gmra.mxu0 %v2278
        %v3809 = vpop.f32.mrf.mxu0
        %3810 = vmatmul.f32.gmra.mxu0 %v2284
        %v3811 = vpop.f32.mrf.mxu0
        %v3812 = vadd.f32 0.0, %v3811
        %3813 = vmatmul.f32.gmra.mxu0 %v2290
        %v3814 = vpop.f32.mrf.mxu0
        %3815 = vdwg.mxu0
        %3816 = vmatpush.msra.mxu0 %v2580
        %3817 = vmatpush.msra.mxu0 %v2571
        %3818 = vmatpush.msra.mxu0 %v2562
        %3819 = vmatpush.msra.mxu0 %v2553
        %3820 = vmatpush.msra.mxu0 %v2544
        %3821 = vmatpush.msra.mxu0 %v2535
        %3822 = vmatpush.msra.mxu0 %v2526
        %3823 = vmatpush.msra.mxu0 %v2517
        %3824 = vmatpush.msra.mxu0 %v2508
        %3825 = vmatpush.msra.mxu0 %v2499
        %3826 = vmatpush.msra.mxu0 %v2490
        %3827 = vmatpush.msra.mxu0 %v2481
        %3828 = vmatpush.msra.mxu0 %v2472
        %3829 = vmatpush.msra.mxu0 %v2463
        %3830 = vmatpush.msra.mxu0 %v2454
        %3831 = vmatpush.msra.mxu0 %v2445
        %3832 = vmatmul.f32.gmra.mxu0 %v2279
        %v3833 = vpop.f32.mrf.mxu0
        %3834 = vmatmul.f32.gmra.mxu0 %v2285
        %v3835 = vpop.f32.mrf.mxu0
        %v3836 = vadd.f32 %v3812, %v3835
        %3837 = vmatmul.f32.gmra.mxu0 %v2291
        %v3838 = vpop.f32.mrf.mxu0
        %3839 = vdwg.mxu0
        %3840 = vmatpush.msra.mxu0 %v2724
        %3841 = vmatpush.msra.mxu0 %v2715
        %3842 = vmatpush.msra.mxu0 %v2706
        %3843 = vmatpush.msra.mxu0 %v2697
        %3844 = vmatpush.msra.mxu0 %v2688
        %3845 = vmatpush.msra.mxu0 %v2679
        %3846 = vmatpush.msra.mxu0 %v2670
        %3847 = vmatpush.msra.mxu0 %v2661
        %3848 = vmatpush.msra.mxu0 %v2652
        %3849 = vmatpush.msra.mxu0 %v2643
        %3850 = vmatpush.msra.mxu0 %v2634
        %3851 = vmatpush.msra.mxu0 %v2625
        %3852 = vmatpush.msra.mxu0 %v2616
        %3853 = vmatpush.msra.mxu0 %v2607
        %3854 = vmatpush.msra.mxu0 %v2598
        %3855 = vmatpush.msra.mxu0 %v2589
        %3856 = vmatmul.f32.gmra.mxu0 %v2280
        %v3857 = vpop.f32.mrf.mxu0
        %3858 = vmatmul.f32.gmra.mxu0 %v2286
        %v3859 = vpop.f32.mrf.mxu0
        %v3860 = vadd.f32 %v3836, %v3859
        %3861 = vmatmul.f32.gmra.mxu0 %v2292
        %v3862 = vpop.f32.mrf.mxu0
        %3863 = vdwg.mxu0
        %3864 = vmatpush.msra.mxu0 %v2868
        %3865 = vmatpush.msra.mxu0 %v2859
        %3866 = vmatpush.msra.mxu0 %v2850
        %3867 = vmatpush.msra.mxu0 %v2841
        %3868 = vmatpush.msra.mxu0 %v2832
        %3869 = vmatpush.msra.mxu0 %v2823
        %3870 = vmatpush.msra.mxu0 %v2814
        %3871 = vmatpush.msra.mxu0 %v2805
        %3872 = vmatpush.msra.mxu0 %v2796
        %3873 = vmatpush.msra.mxu0 %v2787
        %3874 = vmatpush.msra.mxu0 %v2778
        %3875 = vmatpush.msra.mxu0 %v2769
        %3876 = vmatpush.msra.mxu0 %v2760
        %3877 = vmatpush.msra.mxu0 %v2751
        %3878 = vmatpush.msra.mxu0 %v2742
        %3879 = vmatpush.msra.mxu0 %v2733
        %3880 = vmatmul.f32.gmra.mxu0 %v2281
        %v3881 = vpop.f32.mrf.mxu0
        %3882 = vmatmul.f32.gmra.mxu0 %v2287
        %v3883 = vpop.f32.mrf.mxu0
        %v3884 = vadd.f32 %v3860, %v3883
        %3885 = vmatmul.f32.gmra.mxu0 %v2293
        %v3886 = vpop.f32.mrf.mxu0
        %3887 = vdwg.mxu0
        %3888 = vmatpush.msra.mxu0 %v3012
        %3889 = vmatpush.msra.mxu0 %v3003
        %3890 = vmatpush.msra.mxu0 %v2994
        %3891 = vmatpush.msra.mxu0 %v2985
        %3892 = vmatpush.msra.mxu0 %v2976
        %3893 = vmatpush.msra.mxu0 %v2967
        %3894 = vmatpush.msra.mxu0 %v2958
        %3895 = vmatpush.msra.mxu0 %v2949
        %3896 = vmatpush.msra.mxu0 %v2940
        %3897 = vmatpush.msra.mxu0 %v2931
        %3898 = vmatpush.msra.mxu0 %v2922
        %3899 = vmatpush.msra.mxu0 %v2913
        %3900 = vmatpush.msra.mxu0 %v2904
        %3901 = vmatpush.msra.mxu0 %v2895
        %3902 = vmatpush.msra.mxu0 %v2886
        %3903 = vmatpush.msra.mxu0 %v2877
        %3904 = vmatmul.f32.gmra.mxu0 %v2282
        %v3905 = vpop.f32.mrf.mxu0
        %3906 = vmatmul.f32.gmra.mxu0 %v2288
        %v3907 = vpop.f32.mrf.mxu0
        %v3908 = vadd.f32 %v3884, %v3907
        %3909 = vmatmul.f32.gmra.mxu0 %v2294
        %v3910 = vpop.f32.mrf.mxu0
        %3911 = vdwg.mxu0
        %3912 = vmatpush.msra.mxu0 0.0
        %3913 = vmatpush.msra.mxu0 0.0
        %3914 = vmatpush.msra.mxu0 0.0
        %3915 = vmatpush.msra.mxu0 0.0
        %3916 = vmatpush.msra.mxu0 0.0
        %3917 = vmatpush.msra.mxu0 0.0
        %3918 = vmatpush.msra.mxu0 0.0
        %3919 = vmatpush.msra.mxu0 0.0
        %3920 = vmatpush.msra.mxu0 0.0
        %3921 = vmatpush.msra.mxu0 0.0
        %3922 = vmatpush.msra.mxu0 0.0
        %3923 = vmatpush.msra.mxu0 0.0
        %3924 = vmatpush.msra.mxu0 0.0
        %3925 = vmatpush.msra.mxu0 0.0
        %3926 = vmatpush.msra.mxu0 %v3061
        %3927 = vmatpush.msra.mxu0 %v3021
        %3928 = vmatmul.f32.gmra.mxu0 %v3036
        %v3929 = vpop.f32.mrf.mxu0
        %3930 = vmatmul.f32.gmra.mxu0 %v3039
        %v3931 = vpop.f32.mrf.mxu0
        %v3932 = vadd.f32 %v3908, %v3931
        %3933 = vmatmul.f32.gmra.mxu0 %v3042
        %v3934 = vpop.f32.mrf.mxu0
        %3935 = vdwg.mxu0
        %3936 = vmatpush.msra.mxu0 %v2437
        %3937 = vmatpush.msra.mxu0 %v2428
        %3938 = vmatpush.msra.mxu0 %v2419
        %3939 = vmatpush.msra.mxu0 %v2410
        %3940 = vmatpush.msra.mxu0 %v2401
        %3941 = vmatpush.msra.mxu0 %v2392
        %3942 = vmatpush.msra.mxu0 %v2383
        %3943 = vmatpush.msra.mxu0 %v2374
        %3944 = vmatpush.msra.mxu0 %v2365
        %3945 = vmatpush.msra.mxu0 %v2356
        %3946 = vmatpush.msra.mxu0 %v2347
        %3947 = vmatpush.msra.mxu0 %v2338
        %3948 = vmatpush.msra.mxu0 %v2329
        %3949 = vmatpush.msra.mxu0 %v2320
        %3950 = vmatpush.msra.mxu0 %v2311
        %3951 = vmatpush.msra.mxu0 %v2302
        %3952 = vmatmul.f32.gmra.mxu0 %v2278
        %v3953 = vpop.f32.mrf.mxu0
        %3954 = vmatmul.f32.gmra.mxu0 %v2284
        %v3955 = vpop.f32.mrf.mxu0
        %v3956 = vadd.f32 0.0, %v3955
        %3957 = vmatmul.f32.gmra.mxu0 %v2290
        %v3958 = vpop.f32.mrf.mxu0
        %3959 = vdwg.mxu0
        %3960 = vmatpush.msra.mxu0 %v2581
        %3961 = vmatpush.msra.mxu0 %v2572
        %3962 = vmatpush.msra.mxu0 %v2563
        %3963 = vmatpush.msra.mxu0 %v2554
        %3964 = vmatpush.msra.mxu0 %v2545
        %3965 = vmatpush.msra.mxu0 %v2536
        %3966 = vmatpush.msra.mxu0 %v2527
        %3967 = vmatpush.msra.mxu0 %v2518
        %3968 = vmatpush.msra.mxu0 %v2509
        %3969 = vmatpush.msra.mxu0 %v2500
        %3970 = vmatpush.msra.mxu0 %v2491
        %3971 = vmatpush.msra.mxu0 %v2482
        %3972 = vmatpush.msra.mxu0 %v2473
        %3973 = vmatpush.msra.mxu0 %v2464
        %3974 = vmatpush.msra.mxu0 %v2455
        %3975 = vmatpush.msra.mxu0 %v2446
        %3976 = vmatmul.f32.gmra.mxu0 %v2279
        %v3977 = vpop.f32.mrf.mxu0
        %3978 = vmatmul.f32.gmra.mxu0 %v2285
        %v3979 = vpop.f32.mrf.mxu0
        %v3980 = vadd.f32 %v3956, %v3979
        %3981 = vmatmul.f32.gmra.mxu0 %v2291
        %v3982 = vpop.f32.mrf.mxu0
        %3983 = vdwg.mxu0
        %3984 = vmatpush.msra.mxu0 %v2725
        %3985 = vmatpush.msra.mxu0 %v2716
        %3986 = vmatpush.msra.mxu0 %v2707
        %3987 = vmatpush.msra.mxu0 %v2698
        %3988 = vmatpush.msra.mxu0 %v2689
        %3989 = vmatpush.msra.mxu0 %v2680
        %3990 = vmatpush.msra.mxu0 %v2671
        %3991 = vmatpush.msra.mxu0 %v2662
        %3992 = vmatpush.msra.mxu0 %v2653
        %3993 = vmatpush.msra.mxu0 %v2644
        %3994 = vmatpush.msra.mxu0 %v2635
        %3995 = vmatpush.msra.mxu0 %v2626
        %3996 = vmatpush.msra.mxu0 %v2617
        %3997 = vmatpush.msra.mxu0 %v2608
        %3998 = vmatpush.msra.mxu0 %v2599
        %3999 = vmatpush.msra.mxu0 %v2590
        %4000 = vmatmul.f32.gmra.mxu0 %v2280
        %v4001 = vpop.f32.mrf.mxu0
        %4002 = vmatmul.f32.gmra.mxu0 %v2286
        %v4003 = vpop.f32.mrf.mxu0
        %v4004 = vadd.f32 %v3980, %v4003
        %4005 = vmatmul.f32.gmra.mxu0 %v2292
        %v4006 = vpop.f32.mrf.mxu0
        %4007 = vdwg.mxu0
        %4008 = vmatpush.msra.mxu0 %v2869
        %4009 = vmatpush.msra.mxu0 %v2860
        %4010 = vmatpush.msra.mxu0 %v2851
        %4011 = vmatpush.msra.mxu0 %v2842
        %4012 = vmatpush.msra.mxu0 %v2833
        %4013 = vmatpush.msra.mxu0 %v2824
        %4014 = vmatpush.msra.mxu0 %v2815
        %4015 = vmatpush.msra.mxu0 %v2806
        %4016 = vmatpush.msra.mxu0 %v2797
        %4017 = vmatpush.msra.mxu0 %v2788
        %4018 = vmatpush.msra.mxu0 %v2779
        %4019 = vmatpush.msra.mxu0 %v2770
        %4020 = vmatpush.msra.mxu0 %v2761
        %4021 = vmatpush.msra.mxu0 %v2752
        %4022 = vmatpush.msra.mxu0 %v2743
        %4023 = vmatpush.msra.mxu0 %v2734
        %4024 = vmatmul.f32.gmra.mxu0 %v2281
        %v4025 = vpop.f32.mrf.mxu0
        %4026 = vmatmul.f32.gmra.mxu0 %v2287
        %v4027 = vpop.f32.mrf.mxu0
        %v4028 = vadd.f32 %v4004, %v4027
        %4029 = vmatmul.f32.gmra.mxu0 %v2293
        %v4030 = vpop.f32.mrf.mxu0
        %4031 = vdwg.mxu0
        %4032 = vmatpush.msra.mxu0 %v3013
        %4033 = vmatpush.msra.mxu0 %v3004
        %4034 = vmatpush.msra.mxu0 %v2995
        %4035 = vmatpush.msra.mxu0 %v2986
        %4036 = vmatpush.msra.mxu0 %v2977
        %4037 = vmatpush.msra.mxu0 %v2968
        %4038 = vmatpush.msra.mxu0 %v2959
        %4039 = vmatpush.msra.mxu0 %v2950
        %4040 = vmatpush.msra.mxu0 %v2941
        %4041 = vmatpush.msra.mxu0 %v2932
        %4042 = vmatpush.msra.mxu0 %v2923
        %4043 = vmatpush.msra.mxu0 %v2914
        %4044 = vmatpush.msra.mxu0 %v2905
        %4045 = vmatpush.msra.mxu0 %v2896
        %4046 = vmatpush.msra.mxu0 %v2887
        %4047 = vmatpush.msra.mxu0 %v2878
        %4048 = vmatmul.f32.gmra.mxu0 %v2282
        %v4049 = vpop.f32.mrf.mxu0
        %4050 = vmatmul.f32.gmra.mxu0 %v2288
        %v4051 = vpop.f32.mrf.mxu0
        %v4052 = vadd.f32 %v4028, %v4051
        %4053 = vmatmul.f32.gmra.mxu0 %v2294
        %v4054 = vpop.f32.mrf.mxu0
        %4055 = vdwg.mxu0
        %4056 = vmatpush.msra.mxu0 0.0
        %4057 = vmatpush.msra.mxu0 0.0
        %4058 = vmatpush.msra.mxu0 0.0
        %4059 = vmatpush.msra.mxu0 0.0
        %4060 = vmatpush.msra.mxu0 0.0
        %4061 = vmatpush.msra.mxu0 0.0
        %4062 = vmatpush.msra.mxu0 0.0
        %4063 = vmatpush.msra.mxu0 0.0
        %4064 = vmatpush.msra.mxu0 0.0
        %4065 = vmatpush.msra.mxu0 0.0
        %4066 = vmatpush.msra.mxu0 0.0
        %4067 = vmatpush.msra.mxu0 0.0
        %4068 = vmatpush.msra.mxu0 0.0
        %4069 = vmatpush.msra.mxu0 0.0
        %4070 = vmatpush.msra.mxu0 %v3064
        %4071 = vmatpush.msra.mxu0 %v3022
        %4072 = vmatmul.f32.gmra.mxu0 %v3036
        %v4073 = vpop.f32.mrf.mxu0
        %4074 = vmatmul.f32.gmra.mxu0 %v3039
        %v4075 = vpop.f32.mrf.mxu0
        %v4076 = vadd.f32 %v4052, %v4075
        %4077 = vmatmul.f32.gmra.mxu0 %v3042
        %v4078 = vpop.f32.mrf.mxu0
        %4079 = vdwg.mxu0
        %4080 = vmatpush.msra.mxu0 %v2438
        %4081 = vmatpush.msra.mxu0 %v2429
        %4082 = vmatpush.msra.mxu0 %v2420
        %4083 = vmatpush.msra.mxu0 %v2411
        %4084 = vmatpush.msra.mxu0 %v2402
        %4085 = vmatpush.msra.mxu0 %v2393
        %4086 = vmatpush.msra.mxu0 %v2384
        %4087 = vmatpush.msra.mxu0 %v2375
        %4088 = vmatpush.msra.mxu0 %v2366
        %4089 = vmatpush.msra.mxu0 %v2357
        %4090 = vmatpush.msra.mxu0 %v2348
        %4091 = vmatpush.msra.mxu0 %v2339
        %4092 = vmatpush.msra.mxu0 %v2330
        %4093 = vmatpush.msra.mxu0 %v2321
        %4094 = vmatpush.msra.mxu0 %v2312
        %4095 = vmatpush.msra.mxu0 %v2303
        %4096 = vmatmul.f32.gmra.mxu0 %v2278
        %v4097 = vpop.f32.mrf.mxu0
        %4098 = vmatmul.f32.gmra.mxu0 %v2284
        %v4099 = vpop.f32.mrf.mxu0
        %v4100 = vadd.f32 0.0, %v4099
        %4101 = vmatmul.f32.gmra.mxu0 %v2290
        %v4102 = vpop.f32.mrf.mxu0
        %4103 = vdwg.mxu0
        %4104 = vmatpush.msra.mxu0 %v2582
        %4105 = vmatpush.msra.mxu0 %v2573
        %4106 = vmatpush.msra.mxu0 %v2564
        %4107 = vmatpush.msra.mxu0 %v2555
        %4108 = vmatpush.msra.mxu0 %v2546
        %4109 = vmatpush.msra.mxu0 %v2537
        %4110 = vmatpush.msra.mxu0 %v2528
        %4111 = vmatpush.msra.mxu0 %v2519
        %4112 = vmatpush.msra.mxu0 %v2510
        %4113 = vmatpush.msra.mxu0 %v2501
        %4114 = vmatpush.msra.mxu0 %v2492
        %4115 = vmatpush.msra.mxu0 %v2483
        %4116 = vmatpush.msra.mxu0 %v2474
        %4117 = vmatpush.msra.mxu0 %v2465
        %4118 = vmatpush.msra.mxu0 %v2456
        %4119 = vmatpush.msra.mxu0 %v2447
        %4120 = vmatmul.f32.gmra.mxu0 %v2279
        %v4121 = vpop.f32.mrf.mxu0
        %4122 = vmatmul.f32.gmra.mxu0 %v2285
        %v4123 = vpop.f32.mrf.mxu0
        %v4124 = vadd.f32 %v4100, %v4123
        %4125 = vmatmul.f32.gmra.mxu0 %v2291
        %v4126 = vpop.f32.mrf.mxu0
        %4127 = vdwg.mxu0
        %4128 = vmatpush.msra.mxu0 %v2726
        %4129 = vmatpush.msra.mxu0 %v2717
        %4130 = vmatpush.msra.mxu0 %v2708
        %4131 = vmatpush.msra.mxu0 %v2699
        %4132 = vmatpush.msra.mxu0 %v2690
        %4133 = vmatpush.msra.mxu0 %v2681
        %4134 = vmatpush.msra.mxu0 %v2672
        %4135 = vmatpush.msra.mxu0 %v2663
        %4136 = vmatpush.msra.mxu0 %v2654
        %4137 = vmatpush.msra.mxu0 %v2645
        %4138 = vmatpush.msra.mxu0 %v2636
        %4139 = vmatpush.msra.mxu0 %v2627
        %4140 = vmatpush.msra.mxu0 %v2618
        %4141 = vmatpush.msra.mxu0 %v2609
        %4142 = vmatpush.msra.mxu0 %v2600
        %4143 = vmatpush.msra.mxu0 %v2591
        %4144 = vmatmul.f32.gmra.mxu0 %v2280
        %v4145 = vpop.f32.mrf.mxu0
        %4146 = vmatmul.f32.gmra.mxu0 %v2286
        %v4147 = vpop.f32.mrf.mxu0
        %v4148 = vadd.f32 %v4124, %v4147
        %4149 = vmatmul.f32.gmra.mxu0 %v2292
        %v4150 = vpop.f32.mrf.mxu0
        %4151 = vdwg.mxu0
        %4152 = vmatpush.msra.mxu0 %v2870
        %4153 = vmatpush.msra.mxu0 %v2861
        %4154 = vmatpush.msra.mxu0 %v2852
        %4155 = vmatpush.msra.mxu0 %v2843
        %4156 = vmatpush.msra.mxu0 %v2834
        %4157 = vmatpush.msra.mxu0 %v2825
        %4158 = vmatpush.msra.mxu0 %v2816
        %4159 = vmatpush.msra.mxu0 %v2807
        %4160 = vmatpush.msra.mxu0 %v2798
        %4161 = vmatpush.msra.mxu0 %v2789
        %4162 = vmatpush.msra.mxu0 %v2780
        %4163 = vmatpush.msra.mxu0 %v2771
        %4164 = vmatpush.msra.mxu0 %v2762
        %4165 = vmatpush.msra.mxu0 %v2753
        %4166 = vmatpush.msra.mxu0 %v2744
        %4167 = vmatpush.msra.mxu0 %v2735
        %4168 = vmatmul.f32.gmra.mxu0 %v2281
        %v4169 = vpop.f32.mrf.mxu0
        %4170 = vmatmul.f32.gmra.mxu0 %v2287
        %v4171 = vpop.f32.mrf.mxu0
        %v4172 = vadd.f32 %v4148, %v4171
        %4173 = vmatmul.f32.gmra.mxu0 %v2293
        %v4174 = vpop.f32.mrf.mxu0
        %4175 = vdwg.mxu0
        %4176 = vmatpush.msra.mxu0 %v3014
        %4177 = vmatpush.msra.mxu0 %v3005
        %4178 = vmatpush.msra.mxu0 %v2996
        %4179 = vmatpush.msra.mxu0 %v2987
        %4180 = vmatpush.msra.mxu0 %v2978
        %4181 = vmatpush.msra.mxu0 %v2969
        %4182 = vmatpush.msra.mxu0 %v2960
        %4183 = vmatpush.msra.mxu0 %v2951
        %4184 = vmatpush.msra.mxu0 %v2942
        %4185 = vmatpush.msra.mxu0 %v2933
        %4186 = vmatpush.msra.mxu0 %v2924
        %4187 = vmatpush.msra.mxu0 %v2915
        %4188 = vmatpush.msra.mxu0 %v2906
        %4189 = vmatpush.msra.mxu0 %v2897
        %4190 = vmatpush.msra.mxu0 %v2888
        %4191 = vmatpush.msra.mxu0 %v2879
        %4192 = vmatmul.f32.gmra.mxu0 %v2282
        %v4193 = vpop.f32.mrf.mxu0
        %4194 = vmatmul.f32.gmra.mxu0 %v2288
        %v4195 = vpop.f32.mrf.mxu0
        %v4196 = vadd.f32 %v4172, %v4195
        %4197 = vmatmul.f32.gmra.mxu0 %v2294
        %v4198 = vpop.f32.mrf.mxu0
        %4199 = vdwg.mxu0
        %4200 = vmatpush.msra.mxu0 0.0
        %4201 = vmatpush.msra.mxu0 0.0
        %4202 = vmatpush.msra.mxu0 0.0
        %4203 = vmatpush.msra.mxu0 0.0
        %4204 = vmatpush.msra.mxu0 0.0
        %4205 = vmatpush.msra.mxu0 0.0
        %4206 = vmatpush.msra.mxu0 0.0
        %4207 = vmatpush.msra.mxu0 0.0
        %4208 = vmatpush.msra.mxu0 0.0
        %4209 = vmatpush.msra.mxu0 0.0
        %4210 = vmatpush.msra.mxu0 0.0
        %4211 = vmatpush.msra.mxu0 0.0
        %4212 = vmatpush.msra.mxu0 0.0
        %4213 = vmatpush.msra.mxu0 0.0
        %4214 = vmatpush.msra.mxu0 %v3067
        %4215 = vmatpush.msra.mxu0 %v3023
        %4216 = vmatmul.f32.gmra.mxu0 %v3036
        %v4217 = vpop.f32.mrf.mxu0
        %4218 = vmatmul.f32.gmra.mxu0 %v3039
        %v4219 = vpop.f32.mrf.mxu0
        %v4220 = vadd.f32 %v4196, %v4219
        %4221 = vmatmul.f32.gmra.mxu0 %v3042
        %v4222 = vpop.f32.mrf.mxu0
        %4223 = vdwg.mxu0
        %4224 = vmatpush.msra.mxu0 %v2439
        %4225 = vmatpush.msra.mxu0 %v2430
        %4226 = vmatpush.msra.mxu0 %v2421
        %4227 = vmatpush.msra.mxu0 %v2412
        %4228 = vmatpush.msra.mxu0 %v2403
        %4229 = vmatpush.msra.mxu0 %v2394
        %4230 = vmatpush.msra.mxu0 %v2385
        %4231 = vmatpush.msra.mxu0 %v2376
        %4232 = vmatpush.msra.mxu0 %v2367
        %4233 = vmatpush.msra.mxu0 %v2358
        %4234 = vmatpush.msra.mxu0 %v2349
        %4235 = vmatpush.msra.mxu0 %v2340
        %4236 = vmatpush.msra.mxu0 %v2331
        %4237 = vmatpush.msra.mxu0 %v2322
        %4238 = vmatpush.msra.mxu0 %v2313
        %4239 = vmatpush.msra.mxu0 %v2304
        %4240 = vmatmul.f32.gmra.mxu0 %v2278
        %v4241 = vpop.f32.mrf.mxu0
        %4242 = vmatmul.f32.gmra.mxu0 %v2284
        %v4243 = vpop.f32.mrf.mxu0
        %4244 = vmatmul.f32.gmra.mxu0 %v2290
        %v4245 = vpop.f32.mrf.mxu0
        %v4246 = vadd.f32 0.0, %v4245
        %4247 = vdwg.mxu0
        %4248 = vmatpush.msra.mxu0 %v2583
        %4249 = vmatpush.msra.mxu0 %v2574
        %4250 = vmatpush.msra.mxu0 %v2565
        %4251 = vmatpush.msra.mxu0 %v2556
        %4252 = vmatpush.msra.mxu0 %v2547
        %4253 = vmatpush.msra.mxu0 %v2538
        %4254 = vmatpush.msra.mxu0 %v2529
        %4255 = vmatpush.msra.mxu0 %v2520
        %4256 = vmatpush.msra.mxu0 %v2511
        %4257 = vmatpush.msra.mxu0 %v2502
        %4258 = vmatpush.msra.mxu0 %v2493
        %4259 = vmatpush.msra.mxu0 %v2484
        %4260 = vmatpush.msra.mxu0 %v2475
        %4261 = vmatpush.msra.mxu0 %v2466
        %4262 = vmatpush.msra.mxu0 %v2457
        %4263 = vmatpush.msra.mxu0 %v2448
        %4264 = vmatmul.f32.gmra.mxu0 %v2279
        %v4265 = vpop.f32.mrf.mxu0
        %4266 = vmatmul.f32.gmra.mxu0 %v2285
        %v4267 = vpop.f32.mrf.mxu0
        %4268 = vmatmul.f32.gmra.mxu0 %v2291
        %v4269 = vpop.f32.mrf.mxu0
        %v4270 = vadd.f32 %v4246, %v4269
        %4271 = vdwg.mxu0
        %4272 = vmatpush.msra.mxu0 %v2727
        %4273 = vmatpush.msra.mxu0 %v2718
        %4274 = vmatpush.msra.mxu0 %v2709
        %4275 = vmatpush.msra.mxu0 %v2700
        %4276 = vmatpush.msra.mxu0 %v2691
        %4277 = vmatpush.msra.mxu0 %v2682
        %4278 = vmatpush.msra.mxu0 %v2673
        %4279 = vmatpush.msra.mxu0 %v2664
        %4280 = vmatpush.msra.mxu0 %v2655
        %4281 = vmatpush.msra.mxu0 %v2646
        %4282 = vmatpush.msra.mxu0 %v2637
        %4283 = vmatpush.msra.mxu0 %v2628
        %4284 = vmatpush.msra.mxu0 %v2619
        %4285 = vmatpush.msra.mxu0 %v2610
        %4286 = vmatpush.msra.mxu0 %v2601
        %4287 = vmatpush.msra.mxu0 %v2592
        %4288 = vmatmul.f32.gmra.mxu0 %v2280
        %v4289 = vpop.f32.mrf.mxu0
        %4290 = vmatmul.f32.gmra.mxu0 %v2286
        %v4291 = vpop.f32.mrf.mxu0
        %4292 = vmatmul.f32.gmra.mxu0 %v2292
        %v4293 = vpop.f32.mrf.mxu0
        %v4294 = vadd.f32 %v4270, %v4293
        %4295 = vdwg.mxu0
        %4296 = vmatpush.msra.mxu0 %v2871
        %4297 = vmatpush.msra.mxu0 %v2862
        %4298 = vmatpush.msra.mxu0 %v2853
        %4299 = vmatpush.msra.mxu0 %v2844
        %4300 = vmatpush.msra.mxu0 %v2835
        %4301 = vmatpush.msra.mxu0 %v2826
        %4302 = vmatpush.msra.mxu0 %v2817
        %4303 = vmatpush.msra.mxu0 %v2808
        %4304 = vmatpush.msra.mxu0 %v2799
        %4305 = vmatpush.msra.mxu0 %v2790
        %4306 = vmatpush.msra.mxu0 %v2781
        %4307 = vmatpush.msra.mxu0 %v2772
        %4308 = vmatpush.msra.mxu0 %v2763
        %4309 = vmatpush.msra.mxu0 %v2754
        %4310 = vmatpush.msra.mxu0 %v2745
        %4311 = vmatpush.msra.mxu0 %v2736
        %4312 = vmatmul.f32.gmra.mxu0 %v2281
        %v4313 = vpop.f32.mrf.mxu0
        %4314 = vmatmul.f32.gmra.mxu0 %v2287
        %v4315 = vpop.f32.mrf.mxu0
        %4316 = vmatmul.f32.gmra.mxu0 %v2293
        %v4317 = vpop.f32.mrf.mxu0
        %v4318 = vadd.f32 %v4294, %v4317
        %4319 = vdwg.mxu0
        %4320 = vmatpush.msra.mxu0 %v3015
        %4321 = vmatpush.msra.mxu0 %v3006
        %4322 = vmatpush.msra.mxu0 %v2997
        %4323 = vmatpush.msra.mxu0 %v2988
        %4324 = vmatpush.msra.mxu0 %v2979
        %4325 = vmatpush.msra.mxu0 %v2970
        %4326 = vmatpush.msra.mxu0 %v2961
        %4327 = vmatpush.msra.mxu0 %v2952
        %4328 = vmatpush.msra.mxu0 %v2943
        %4329 = vmatpush.msra.mxu0 %v2934
        %4330 = vmatpush.msra.mxu0 %v2925
        %4331 = vmatpush.msra.mxu0 %v2916
        %4332 = vmatpush.msra.mxu0 %v2907
        %4333 = vmatpush.msra.mxu0 %v2898
        %4334 = vmatpush.msra.mxu0 %v2889
        %4335 = vmatpush.msra.mxu0 %v2880
        %4336 = vmatmul.f32.gmra.mxu0 %v2282
        %v4337 = vpop.f32.mrf.mxu0
        %4338 = vmatmul.f32.gmra.mxu0 %v2288
        %v4339 = vpop.f32.mrf.mxu0
        %4340 = vmatmul.f32.gmra.mxu0 %v2294
        %v4341 = vpop.f32.mrf.mxu0
        %v4342 = vadd.f32 %v4318, %v4341
        %4343 = vdwg.mxu0
        %4344 = vmatpush.msra.mxu0 0.0
        %4345 = vmatpush.msra.mxu0 0.0
        %4346 = vmatpush.msra.mxu0 0.0
        %4347 = vmatpush.msra.mxu0 0.0
        %4348 = vmatpush.msra.mxu0 0.0
        %4349 = vmatpush.msra.mxu0 0.0
        %4350 = vmatpush.msra.mxu0 0.0
        %4351 = vmatpush.msra.mxu0 0.0
        %4352 = vmatpush.msra.mxu0 0.0
        %4353 = vmatpush.msra.mxu0 0.0
        %4354 = vmatpush.msra.mxu0 0.0
        %4355 = vmatpush.msra.mxu0 0.0
        %4356 = vmatpush.msra.mxu0 0.0
        %4357 = vmatpush.msra.mxu0 0.0
        %4358 = vmatpush.msra.mxu0 %v3070
        %4359 = vmatpush.msra.mxu0 %v3024
        %4360 = vmatmul.f32.gmra.mxu0 %v3036
        %v4361 = vpop.f32.mrf.mxu0
        %4362 = vmatmul.f32.gmra.mxu0 %v3039
        %v4363 = vpop.f32.mrf.mxu0
        %4364 = vmatmul.f32.gmra.mxu0 %v3042
        %v4365 = vpop.f32.mrf.mxu0
        %v4366 = vadd.f32 %v4342, %v4365
        %4367 = vdwg.mxu0
        %v4368 = vld [vmem:[%s4] sm:$0x1]
        %v4369 = vadd.f32 %v4368, %v3210
        %4371 = vst [vmem:[#allocation1] sm:$0xff] %v3210
        %s4372 = scalar_lea.vmem [#allocation1], 1
        %v4373 = vld [vmem:[%s4372] ss:$9 sm:$0xff]
        %4374 = vrot.lane.b32.xlu0 %v4373, 64
        %v4375 = vpop.permute.xlu0 %4374
        %v4377 = vadd.f32 %v4369, %v4375
        %4379 = vst [vmem:[#allocation1] sm:$0xff] %v3354
        %s4380 = scalar_lea.vmem [#allocation1], 2
        %v4381 = vld [vmem:[%s4380] ss:$9 sm:$0xff]
        %v4383 = vadd.f32 %v4377, %v4381
        %4384 = vst [vmem:[#allocation1] sm:$0xff] %v3354
        %s4385 = scalar_lea.vmem [#allocation1], 3
        %v4386 = vld [vmem:[%s4385] ss:$9 sm:$0xff]
        %4387 = vrot.lane.b32.xlu0 %v4386, 64
        %v4388 = vpop.permute.xlu0 %4387
        %v4390 = vadd.f32 %v4383, %v4388
        %4392 = vst [vmem:[#allocation1] sm:$0xff] %v3498
        %s4393 = scalar_lea.vmem [#allocation1], 4
        %v4394 = vld [vmem:[%s4393] ss:$9 sm:$0xff]
        %v4396 = vadd.f32 %v4390, %v4394
        %4397 = vst [vmem:[#allocation1] sm:$0xff] %v3498
        %s4398 = scalar_lea.vmem [#allocation1], 5
        %v4399 = vld [vmem:[%s4398] ss:$9 sm:$0xff]
        %4400 = vrot.lane.b32.xlu0 %v4399, 64
        %v4401 = vpop.permute.xlu0 %4400
        %v4403 = vadd.f32 %v4396, %v4401
        %4405 = vst [vmem:[#allocation1] sm:$0xff] %v3642
        %s4406 = scalar_lea.vmem [#allocation1], 6
        %v4407 = vld [vmem:[%s4406] ss:$9 sm:$0xff]
        %v4409 = vadd.f32 %v4403, %v4407
        %4410 = vst [vmem:[#allocation1] sm:$0xff] %v3642
        %s4411 = scalar_lea.vmem [#allocation1], 7
        %v4412 = vld [vmem:[%s4411] ss:$9 sm:$0xff]
        %4413 = vrot.lane.b32.xlu0 %v4412, 64
        %v4414 = vpop.permute.xlu0 %4413
        %v4416 = vadd.f32 %v4409, %v4414
        %v4417 = vadd.f32 %v4416, %v3788
        %4419 = vst [vmem:[#allocation1] sm:$0xff] %v3788
        %s4420 = scalar_lea.vmem [#allocation1], 1
        %v4421 = vld [vmem:[%s4420] ss:$9 sm:$0xff]
        %4422 = vrot.lane.b32.xlu0 %v4421, 64
        %v4423 = vpop.permute.xlu0 %4422
        %v4425 = vadd.f32 %v4417, %v4423
        %4427 = vst [vmem:[#allocation1] sm:$0xff] %v3932
        %s4428 = scalar_lea.vmem [#allocation1], 2
        %v4429 = vld [vmem:[%s4428] ss:$9 sm:$0xff]
        %v4431 = vadd.f32 %v4425, %v4429
        %4432 = vst [vmem:[#allocation1] sm:$0xff] %v3932
        %s4433 = scalar_lea.vmem [#allocation1], 3
        %v4434 = vld [vmem:[%s4433] ss:$9 sm:$0xff]
        %4435 = vrot.lane.b32.xlu0 %v4434, 64
        %v4436 = vpop.permute.xlu0 %4435
        %v4438 = vadd.f32 %v4431, %v4436
        %4440 = vst [vmem:[#allocation1] sm:$0xff] %v4076
        %s4441 = scalar_lea.vmem [#allocation1], 4
        %v4442 = vld [vmem:[%s4441] ss:$9 sm:$0xff]
        %v4444 = vadd.f32 %v4438, %v4442
        %4445 = vst [vmem:[#allocation1] sm:$0xff] %v4076
        %s4446 = scalar_lea.vmem [#allocation1], 5
        %v4447 = vld [vmem:[%s4446] ss:$9 sm:$0xff]
        %4448 = vrot.lane.b32.xlu0 %v4447, 64
        %v4449 = vpop.permute.xlu0 %4448
        %v4451 = vadd.f32 %v4444, %v4449
        %4453 = vst [vmem:[#allocation1] sm:$0xff] %v4220
        %s4454 = scalar_lea.vmem [#allocation1], 6
        %v4455 = vld [vmem:[%s4454] ss:$9 sm:$0xff]
        %v4457 = vadd.f32 %v4451, %v4455
        %4458 = vst [vmem:[#allocation1] sm:$0xff] %v4220
        %s4459 = scalar_lea.vmem [#allocation1], 7
        %v4460 = vld [vmem:[%s4459] ss:$9 sm:$0xff]
        %4461 = vrot.lane.b32.xlu0 %v4460, 64
        %v4462 = vpop.permute.xlu0 %4461
        %v4464 = vadd.f32 %v4457, %v4462
        %v4465 = vadd.f32 %v4464, %v4366
        %4467 = vst [vmem:[#allocation1] sm:$0xff] %v4366
        %s4468 = scalar_lea.vmem [#allocation1], 1
        %v4469 = vld [vmem:[%s4468] ss:$9 sm:$0xff]
        %4470 = vrot.lane.b32.xlu0 %v4469, 64
        %v4471 = vpop.permute.xlu0 %4470
        %v4473 = vadd.f32 %v4465, %v4471
        %v4474 = vmax.f32 %v4473, 0.0
        %v4475 = vld [vmem:[%s5] sm:$0xff]
        %v4476 = vld [vmem:[%s5 + $0x8] sm:$0xff]
        %v4477 = vld [vmem:[%s5 + $0x10] sm:$0xff]
        %v4478 = vld [vmem:[%s5 + $0x18] sm:$0xff]
        %v4479 = vld [vmem:[%s5 + $0x20] sm:$0xff]
        %v4480 = vld [vmem:[%s5 + $0x28] sm:$0xff]
        %v4481 = vld [vmem:[%s5 + $0x30] sm:$0xff]
        %v4482 = vld [vmem:[%s5 + $0x38] sm:$0xff]
        %v4483 = vld [vmem:[%s6] sm:$0x1]
        %vm4484 = vcmask 523264
        %v4486 = vsel %vm4484, %v4474, 0
        %4488 = vmatpush.msra.mxu0 0.0
        %4489 = vmatpush.msra.mxu0 0.0
        %4490 = vmatpush.msra.mxu0 0.0
        %4491 = vmatpush.msra.mxu0 0.0
        %4492 = vmatpush.msra.mxu0 0.0
        %4493 = vmatpush.msra.mxu0 0.0
        %4494 = vmatpush.msra.mxu0 0.0
        %4495 = vmatpush.msra.mxu0 0.0
        %4496 = vmatpush.msra.mxu0 %v4482
        %4497 = vmatpush.msra.mxu0 %v4481
        %4498 = vmatpush.msra.mxu0 %v4480
        %4499 = vmatpush.msra.mxu0 %v4479
        %4500 = vmatpush.msra.mxu0 %v4478
        %4501 = vmatpush.msra.mxu0 %v4477
        %4502 = vmatpush.msra.mxu0 %v4476
        %4503 = vmatpush.msra.mxu0 %v4475
        %4504 = vmatmul.f32.gmra.mxu0 %v4486
        %v4505 = vpop.f32.mrf.mxu0
        %v4506 = vadd.f32 %v4483, %v4505
        %4507 = vdwg.mxu0
        %vm4508 = vcmask 8192
        %4509 = vst.msk [vmem:[%s270] sm:$0x1] %vm4508, %v4506
        %s4510 = sand.u32 %s181, 1
        %s4511 = scalar_lea.sflag [#allocation4], %s4510
        %s4512 = sand.u32 %s181, 1
        %s4513 = scalar_lea.vmem [#allocation3], %s4512
        // Predicated region
        $region49: #{simple_cnn_forward.1} parent=47 // pred_check
          %p4514 = pneg %p191
        $region50: #{simple_cnn_forward.1} parent=47 // pred_check_branch
          %4516 = sbr.rel (%p4514) target = $region52
        $region51: #{simple_cnn_forward.1} parent=47 // pred_region
          %4518 = vsyncadd %s4511, 0
          %s4519 = scalar_lea.hbm %s7, %s21
          %s4521 = sshll.u32 %s4513, 4
          %s4522 = int_to_ptr.vmem [resolvable:$true] %s4521
          %s4523 = sshll.u32 %s4519, 4
          %s4524 = int_to_ptr.hbm [resolvable:$true] %s4523
          %4526 = dma.vmem_to_hbm [thread:$0]  %s4522, 16, %s4524, %s4511
        $region52: #{simple_cnn_forward.1} parent=47 // pred_fallthru
          _
      $region48: #{simple_cnn_forward.1} parent=5 // pred_fallthru
        _
      %p4527 = scmp.le.s32.totalorder 2, %s16
      // Predicated region
      $region53: #{simple_cnn_forward.1} parent=5 // pred_check
        %p4528 = pneg %p4527
      $region54: #{simple_cnn_forward.1} parent=5 // pred_check_branch
        %4530 = sbr.rel (%p4528) target = $region56
      $region55: #{simple_cnn_forward.1} parent=5 // pred_region
        %s4531 = ssub.s32 %s16, 2
        // Predicated region
        $region57: #{simple_cnn_forward.1} parent=55 // pred_check
          %p4532 = pneg %p197
        $region58: #{simple_cnn_forward.1} parent=55 // pred_check_branch
          %4534 = sbr.rel (%p4532) target = $region60
        $region59: #{simple_cnn_forward.1} parent=55 // pred_region
          %s4535 = sand.u32 %s182, 1
          %s4536 = scalar_lea.sflag [#allocation4], %s4535
          %s4537 = sand.u32 %s182, 1
          %s4538 = scalar_lea.vmem [#allocation3], %s4537
          %4540 = dma.done %s4536, 16
        $region60: #{simple_cnn_forward.1} parent=55 // pred_fallthru
          _
      $region56: #{simple_cnn_forward.1} parent=5 // pred_fallthru
        _
    $region6: #{simple_cnn_forward.1} parent=1 // loop_footer
      %s20 = sadd.s32 1, %s16
    $region7: #{simple_cnn_forward.1} parent=1 // loop_footer_branch
      %15 = sbr.rel target = $region3
    $region8: #{simple_cnn_forward.1} parent=1 // loop_exit
      _
    %4541 = vsyncpa [#allocation4], 1
    %s4542 = scalar_lea.sflag [#allocation4], 1
    %4543 = vsyncpa %s4542, 1

</llo_original>
